<compile_context>
chip_gen: v5e
topology: v5e:2x2
jax: 0.10.0
libtpu: 0.0.40
codegen_flags: <defaults>
</compile_context>

<pallas_src>
import math
import random
from functools import partial

import jax
import jax.numpy as jnp
from jax.experimental import pallas as pl
from jax.experimental.pallas import tpu as pltpu


# ----------------------------------------------------------------------------
# helpers
# ----------------------------------------------------------------------------
def _round_up(n, m):
    return (n + m - 1) // m * m


def _resident_spec(arr):
    """Full-array block with a constant index_map -> stays resident in VMEM."""
    nd = arr.ndim
    return pl.BlockSpec(arr.shape, lambda *_, _nd=nd: (0,) * _nd)


def _gru_gates(x, h, wih, whh, bih, bhh, hid):
    """torch.nn.GRU cell math. Gate order [r, z, n]; b_hn inside r*(...)."""
    gi = jnp.dot(x, wih, preferred_element_type=jnp.float32) + bih
    gh = jnp.dot(h, whh, preferred_element_type=jnp.float32) + bhh
    r = jax.nn.sigmoid(gi[:, :hid] + gh[:, :hid])
    z = jax.nn.sigmoid(gi[:, hid:2 * hid] + gh[:, hid:2 * hid])
    n = jnp.tanh(gi[:, 2 * hid:] + r * gh[:, 2 * hid:])
    return (1.0 - z) * n + z * h


# ----------------------------------------------------------------------------
# Encoder: all layers + both directions in ONE kernel, grid=(n_layers, S)
# ----------------------------------------------------------------------------
def _enc_kernel(x0_ref,
                wihf, whhf, bihf, bhhf,
                wihb, whhb, bibf_unused_guard=None, *maybe,  # placeholder (unused)
                **_):
    raise NotImplementedError  # replaced below (kept for readability)


def _enc_kernel(x0_ref,                                   # noqa: F811
                wihf, whhf, bihf, bhhf,
                wihb, whhb, bihb, bhhb,
                enc_ref, h0_ref,
                act, hf, hb, *, hid, S, n_layers):
    l = pl.program_id(0)
    s = pl.program_id(1)

    # One-time init: zero the ping-pong activation buffer and drop the embedded
    # source into the slot layer 0 reads from (slot 1 -> rows [S, 2S)).
    @pl.when((l == 0) & (s == 0))
    def _():
        act[...] = jnp.zeros_like(act)
        act[S:2 * S] = x0_ref[...]

    # Reset the recurrent state at the start of every layer.
    @pl.when(s == 0)
    def _():
        hf[...] = jnp.zeros_like(hf)
        hb[...] = jnp.zeros_like(hb)

    r_base = ((l + 1) % 2) * S        # slot the current layer reads from
    w_base = (l % 2) * S              # slot the current layer writes to

    xf = act[r_base + s]              # fwd input  = prev-layer output at time s
    xb = act[r_base + (S - 1 - s)]    # bwd input  = prev-layer output at time S-1-s

    hf_new = _gru_gates(xf, hf[...], wihf[0], whhf[0], bihf[0], bhhf[0], hid)
    hb_new = _gru_gates(xb, hb[...], wihb[0], whhb[0], bihb[0], bhhb[0], hid)
    hf[...] = hf_new
    hb[...] = hb_new

    # Stash this layer's outputs for the next layer (fwd half / bwd half).
    act[w_base + s, :, 0:hid] = hf_new
    act[w_base + (S - 1 - s), :, hid:2 * hid] = hb_new

    # Final hidden of both directions becomes available at s == S-1
    # (fwd just consumed x[S-1], bwd just consumed x[0]) -> decoder h0.
    @pl.when(s == S - 1)
    def _():
        h0_ref[0, :, 0:hid] = hf_new
        h0_ref[0, :, hid:2 * hid] = hb_new

    # After the very last step the write slot holds the complete top-layer
    # output sequence; emit it once as a single lane-dense (S, B, 2*hid) block.
    wlast = ((n_layers - 1) % 2) * S

    @pl.when((l == n_layers - 1) & (s == S - 1))
    def _():
        enc_ref[...] = act[wlast:wlast + S, :, 0:2 * hid]


def encoder_forward(params, src, hid_dim, n_layers):
    B, S = src.shape
    enc = params['enc']
    din = enc['wih_f'].shape[1]                           # unified layer-input width
    x = jnp.take(params['emb_en'], src.T, axis=0)         # (S, B, E)
    emb_dim = x.shape[-1]
    if emb_dim < din:
        x = jnp.pad(x, ((0, 0), (0, 0), (0, din - emb_dim)))

    w_names = ('wih_f', 'whh_f', 'bih_f', 'bhh_f',
               'wih_b', 'whh_b', 'bih_b', 'bhh_b')
    weights = [enc[n] for n in w_names]

    grid_spec = pltpu.PrefetchScalarGridSpec(
        num_scalar_prefetch=0,
        grid=(n_layers, S),
        in_specs=[pl.BlockSpec((S, B, din), lambda l, s: (0, 0, 0))]    # resident x
                 + [pl.BlockSpec((1,) + w.shape[1:], lambda l, s: (l, 0, 0))
                    for w in weights],                                  # per-layer stream
        out_specs=[pl.BlockSpec((S, B, 2 * hid_dim), lambda l, s: (0, 0, 0)),
                   pl.BlockSpec((1, B, 2 * hid_dim), lambda l, s: (l, 0, 0))],
        scratch_shapes=[pltpu.VMEM((2 * S, B, din), jnp.float32),   # ping-pong acts
                        pltpu.VMEM((B, hid_dim), jnp.float32),      # fwd hidden
                        pltpu.VMEM((B, hid_dim), jnp.float32)],     # bwd hidden
    )
    enc_out, h0 = pl.pallas_call(
        partial(_enc_kernel, hid=hid_dim, S=S, n_layers=n_layers),
        grid_spec=grid_spec,
        out_shape=(jax.ShapeDtypeStruct((S, B, 2 * hid_dim), jnp.float32),
                   jax.ShapeDtypeStruct((n_layers, B, 2 * hid_dim), jnp.float32)),
        compiler_params=pltpu.CompilerParams(
            dimension_semantics=("arbitrary", "arbitrary"),
            vmem_limit_bytes=32 * 1024 * 1024),
    )(x, *weights)
    return enc_out, h0


# ----------------------------------------------------------------------------
# Decoder: whole T-loop fused into one kernel (GRU stack + 3-layer projection)
# ----------------------------------------------------------------------------
def _dec_kernel(ut_ref, tgt_ref, h0_ref, emb_ref, *rest,
                n_layers, dec_hid, vocab, vocab_pad):
    nw = 4 * n_layers + 6
    w_refs = rest[:nw]
    out_ref, preds_ref = rest[nw], rest[nw + 1]
    h_st, tok_st = rest[nw + 2], rest[nw + 3]

    g = pl.program_id(0)
    tgt = tgt_ref[g]                                     # (B, 1) int32, no per-step DMA

    @pl.when(g == 0)
    def _():
        h_st[...] = h0_ref[...]                          # encoder hidden
        tok_st[...] = tgt

    # select input token: pre-drawn teacher-forcing flag (scalar prefetch)
    flag = ut_ref[g]                                     # int32 0/1
    tok = flag * tgt + (1 - flag) * tok_st[...]          # (B, 1) int32

    # in-kernel embedding lookup: one-hot @ table (MXU)
    B = tok.shape[0]
    lane = jax.lax.broadcasted_iota(jnp.int32, (B, vocab_pad), 1)
    onehot = (lane == tok).astype(jnp.float32)
    x = jnp.dot(onehot, emb_ref[...], preferred_element_type=jnp.float32)

    # stacked GRU layers, hidden carried in VMEM scratch
    for layer in range(n_layers):
        wih, whh, bih, bhh = (r[...] for r in w_refs[4 * layer: 4 * layer + 4])
        x = _gru_gates(x, h_st[layer], wih, whh, bih, bhh, dec_hid)
        h_st[layer] = x

    # 3-layer vocab projection (lane-dense, vocab padded to 128)
    w1, b1, w2, b2, w3, b3 = (r[...] for r in w_refs[4 * n_layers:])
    y = jnp.dot(x, w1, preferred_element_type=jnp.float32) + b1
    y = jnp.dot(y, w2, preferred_element_type=jnp.float32) + b2
    logits = jnp.dot(y, w3, preferred_element_type=jnp.float32) + b3
    out_ref[0] = logits

    # argmax over the real vocab (first-occurrence tie-break), carried as int,
    # and exported as a kernel output (kills the host-side argmax HBM pass).
    masked = jnp.where(lane < vocab, logits, jnp.float32(-1e30))
    rowmax = jnp.max(masked, axis=-1, keepdims=True)
    idx = jnp.min(jnp.where(masked == rowmax,
                            lane.astype(jnp.float32),
                            jnp.float32(vocab_pad)),
                  axis=-1, keepdims=True).astype(jnp.int32)
    tok_st[...] = idx
    preds_ref[0] = idx


def decoder_forward(params, target, h0, use_target_mask,
                    n_layers, dec_hid, cn_vocab):
    B, T = target.shape
    v_pad = _round_up(cn_vocab, 128)
    tgt_toks = target.T[:, :, None].astype(jnp.int32)    # (T, B, 1), VMEM-resident
    emb = params['emb_cn_pad']                           # (v_pad, E)

    layer_ws = []
    for layer in range(n_layers):
        p = params['dec'][layer]
        layer_ws += [p['wih'], p['whh'], p['bih'], p['bhh']]
    proj = params['proj']
    proj_ws = [proj['w1'], proj['b1'], proj['w2'], proj['b2'],
               proj['w3p'], proj['b3p']]

    in_specs = [
        _resident_spec(tgt_toks),                        # all target columns, one DMA
        _resident_spec(h0),                              # initial hidden
        _resident_spec(emb),                             # embedding table
    ] + [_resident_spec(w) for w in layer_ws + proj_ws]

    grid_spec = pltpu.PrefetchScalarGridSpec(
        num_scalar_prefetch=1,
        grid=(T - 1,),
        in_specs=in_specs,
        out_specs=[pl.BlockSpec((1, B, v_pad), lambda g, ut: (g, 0, 0)),
                   pl.BlockSpec((1, B, 1), lambda g, ut: (g, 0, 0))],
        scratch_shapes=[pltpu.VMEM((n_layers, B, dec_hid), jnp.float32),
                        pltpu.VMEM((B, 1), jnp.int32)],
    )
    logits_pad, preds_tm = pl.pallas_call(
        partial(_dec_kernel, n_layers=n_layers, dec_hid=dec_hid,
                vocab=cn_vocab, vocab_pad=v_pad),
        grid_spec=grid_spec,
        out_shape=(jax.ShapeDtypeStruct((T - 1, B, v_pad), jnp.float32),
                   jax.ShapeDtypeStruct((T - 1, B, 1), jnp.int32)),
        compiler_params=pltpu.CompilerParams(
            dimension_semantics=("arbitrary",),
            vmem_limit_bytes=32 * 1024 * 1024),
    )(use_target_mask, tgt_toks, h0, emb, *layer_ws, *proj_ws)
    return logits_pad, preds_tm


# ----------------------------------------------------------------------------
# Seq2Seq.forward
# ----------------------------------------------------------------------------
@partial(jax.jit, static_argnums=(4, 5, 6))
def _forward_jit(params, src, target, use_target_mask,
                 hid_dim, n_layers, cn_vocab):
    B, T = target.shape
    encoder_outputs, h0 = encoder_forward(params, src, hid_dim, n_layers)
    # TODO(synk): baseline HW8 decoder has no attention; encoder_outputs are
    # produced (as in the reference forward) but not consumed by the decoder.
    del encoder_outputs
    logits_pad, preds_tm = decoder_forward(params, target, h0, use_target_mask,
                                           n_layers, 2 * hid_dim, cn_vocab)
    logits = jnp.transpose(logits_pad[:, :, :cn_vocab], (1, 0, 2))    # (B, T-1, V)
    outputs = jnp.concatenate(
        [jnp.zeros((B, 1, cn_vocab), jnp.float32), logits], axis=1)   # t=0 stays 0
    preds = preds_tm[:, :, 0].T.astype(target.dtype)                  # (B, T-1)
    return outputs, preds


def seq2seq_forward(params, src, target, teacher_forcing_ratio,
                    hid_dim, n_layers, cn_vocab):
    T = target.shape[1]
    # host-side coin flips, same loop order as the PyTorch reference
    draws = [1 if random.random() <= teacher_forcing_ratio else 0
             for _ in range(1, T)]
    # input at decode step t=g+1: target[:, 0] at g==0, else draw from step g
    use_target = jnp.array([1] + draws[:-1], dtype=jnp.int32)        # (T-1,)
    return _forward_jit(params, src, target, use_target,
                        hid_dim, n_layers, cn_vocab)


# ----------------------------------------------------------------------------
# Parameter construction (deterministic, PyTorch-style uniform init)
# ----------------------------------------------------------------------------
def _uniform(key, shape, k):
    return jax.random.uniform(key, shape, jnp.float32, minval=-k, maxval=k)


def init_params(key, en_vocab, cn_vocab, emb_dim, hid_dim, n_layers):
    dec_hid = 2 * hid_dim
    v_pad = _round_up(cn_vocab, 128)
    din = max(emb_dim, 2 * hid_dim)          # unified encoder-layer input width
    keys = iter(jax.random.split(key, 256))
    params = {
        'emb_en': jax.random.normal(next(keys), (en_vocab, emb_dim), jnp.float32),
    }
    emb_cn = jax.random.normal(next(keys), (cn_vocab, emb_dim), jnp.float32)
    params['emb_cn_pad'] = jnp.pad(emb_cn, ((0, v_pad - cn_vocab), (0, 0)))

    # Encoder weights stacked along a leading layer axis so the fused kernel
    # can stream them with an (l, 0, 0) index_map.  Layer 0's input-to-hidden
    # matrix is zero-row-padded from emb_dim to din (matches the zero-padded x).
    k_enc = 1.0 / math.sqrt(hid_dim)
    enc = {n: [] for n in ('wih_f', 'whh_f', 'bih_f', 'bhh_f',
                           'wih_b', 'whh_b', 'bih_b', 'bhh_b')}
    for layer in range(n_layers):
        in_dim = emb_dim if layer == 0 else 2 * hid_dim
        for sfx in ('_f', '_b'):
            wih = _uniform(next(keys), (in_dim, 3 * hid_dim), k_enc)
            enc['wih' + sfx].append(jnp.pad(wih, ((0, din - in_dim), (0, 0))))
            enc['whh' + sfx].append(_uniform(next(keys), (hid_dim, 3 * hid_dim), k_enc))
            enc['bih' + sfx].append(_uniform(next(keys), (1, 3 * hid_dim), k_enc))
            enc['bhh' + sfx].append(_uniform(next(keys), (1, 3 * hid_dim), k_enc))
    params['enc'] = {k: jnp.stack(v, axis=0) for k, v in enc.items()}

    k_dec = 1.0 / math.sqrt(dec_hid)
    params['dec'] = []
    for layer in range(n_layers):
        in_dim = emb_dim if layer == 0 else dec_hid
        params['dec'].append({
            'wih': _uniform(next(keys), (in_dim, 3 * dec_hid), k_dec),
            'whh': _uniform(next(keys), (dec_hid, 3 * dec_hid), k_dec),
            'bih': _uniform(next(keys), (1, 3 * dec_hid), k_dec),
            'bhh': _uniform(next(keys), (1, 3 * dec_hid), k_dec),
        })

    w3 = _uniform(next(keys), (dec_hid * 4, cn_vocab), 1.0 / math.sqrt(dec_hid * 4))
    b3 = _uniform(next(keys), (1, cn_vocab), 1.0 / math.sqrt(dec_hid * 4))
    params['proj'] = {
        'w1': _uniform(next(keys), (dec_hid, dec_hid * 2), 1.0 / math.sqrt(dec_hid)),
        'b1': _uniform(next(keys), (1, dec_hid * 2), 1.0 / math.sqrt(dec_hid)),
        'w2': _uniform(next(keys), (dec_hid * 2, dec_hid * 4), 1.0 / math.sqrt(dec_hid * 2)),
        'b2': _uniform(next(keys), (1, dec_hid * 4), 1.0 / math.sqrt(dec_hid * 2)),
        # vocab projection padded to 128 lanes (zeros) for lane-dense stores
        'w3p': jnp.pad(w3, ((0, 0), (0, v_pad - cn_vocab))),
        'b3p': jnp.pad(b3, ((0, 0), (0, v_pad - cn_vocab))),
    }
    return params


# ----------------------------------------------------------------------------
if __name__ == "__main__":
    random.seed(0)

    # small, module-consistent shapes (B=8 fills the f32 sublane count)
    B, S, T = 8, 8, 8
    EMB, HID, N_LAYERS = 32, 32, 2
    EN_VOCAB, CN_VOCAB = 37, 43

    key = jax.random.PRNGKey(0)
    k_params, k_src, k_tgt = jax.random.split(key, 3)
    params = init_params(k_params, EN_VOCAB, CN_VOCAB, EMB, HID, N_LAYERS)

    src = jax.random.randint(k_src, (B, S), 0, EN_VOCAB, dtype=jnp.int32)
    target = jax.random.randint(k_tgt, (B, T), 0, CN_VOCAB, dtype=jnp.int32)

    # teacher forcing on (exercises the streamed-target path)
    outputs, preds = seq2seq_forward(
        params, src, target, teacher_forcing_ratio=1.0,
        hid_dim=HID, n_layers=N_LAYERS, cn_vocab=CN_VOCAB)
    outputs = jax.block_until_ready(outputs)
    preds = jax.block_until_ready(preds)

    assert outputs.shape == (B, T, CN_VOCAB), outputs.shape
    assert preds.shape == (B, T - 1), preds.shape
    assert bool(jnp.all(outputs[:, 0] == 0.0))          # t=0 slot left as zeros
    assert bool(jnp.all(jnp.isfinite(outputs)))
    # kernel-exported argmax must agree with argmax over the returned logits
    assert bool(jnp.array_equal(
        preds, jnp.argmax(outputs[:, 1:, :], axis=-1).astype(preds.dtype)))

    # teacher forcing off (exercises the in-kernel argmax carry path)
    outputs2, preds2 = seq2seq_forward(
        params, src, target, teacher_forcing_ratio=0.0,
        hid_dim=HID, n_layers=N_LAYERS, cn_vocab=CN_VOCAB)
    outputs2 = jax.block_until_ready(outputs2)
    preds2 = jax.block_until_ready(preds2)
    assert outputs2.shape == (B, T, CN_VOCAB)
    assert preds2.shape == (B, T - 1)
    assert bool(jnp.all(jnp.isfinite(outputs2)))
    assert bool(jnp.array_equal(
        preds2, jnp.argmax(outputs2[:, 1:, :], axis=-1).astype(preds2.dtype)))

    print("KERNEL_OK")
</pallas_src>

<mosaic_0001>
module attributes {stable_mosaic.version = 11 : i64} {
  func.func @_enc_kernel(%arg0: i32, %arg1: i32, %arg2: memref<8x8x64xf32, #tpu.memory_space<vmem>>, %arg3: memref<1x64x96xf32, #tpu.memory_space<vmem>>, %arg4: memref<1x32x96xf32, #tpu.memory_space<vmem>>, %arg5: memref<1x1x96xf32, #tpu.memory_space<vmem>>, %arg6: memref<1x1x96xf32, #tpu.memory_space<vmem>>, %arg7: memref<1x64x96xf32, #tpu.memory_space<vmem>>, %arg8: memref<1x32x96xf32, #tpu.memory_space<vmem>>, %arg9: memref<1x1x96xf32, #tpu.memory_space<vmem>>, %arg10: memref<1x1x96xf32, #tpu.memory_space<vmem>>, %arg11: memref<8x8x64xf32, #tpu.memory_space<vmem>>, %arg12: memref<1x8x64xf32, #tpu.memory_space<vmem>>, %arg13: memref<16x8x64xf32, #tpu.memory_space<vmem>>, %arg14: memref<8x32xf32, #tpu.memory_space<vmem>>, %arg15: memref<8x32xf32, #tpu.memory_space<vmem>>) attributes {dimension_semantics = [#tpu.dimension_semantics<arbitrary>, #tpu.dimension_semantics<arbitrary>], iteration_bounds = array<i64: 2, 8>, scalar_prefetch = 0 : i64, scratch_operands = 3 : i64, tpu.core_type = #tpu.core_type<tc>, window_params = [{pipeline_mode = #tpu.pipeline_mode<synchronous>, transform_indices = @transform_0, window_bounds = array<i64: 8, 8, 64>}, {transform_indices = @transform_1, window_bounds = array<i64: 1, 64, 96>}, {transform_indices = @transform_2, window_bounds = array<i64: 1, 32, 96>}, {transform_indices = @transform_3, window_bounds = array<i64: 1, 1, 96>}, {transform_indices = @transform_4, window_bounds = array<i64: 1, 1, 96>}, {transform_indices = @transform_5, window_bounds = array<i64: 1, 64, 96>}, {transform_indices = @transform_6, window_bounds = array<i64: 1, 32, 96>}, {transform_indices = @transform_7, window_bounds = array<i64: 1, 1, 96>}, {transform_indices = @transform_8, window_bounds = array<i64: 1, 1, 96>}, {pipeline_mode = #tpu.pipeline_mode<synchronous>, transform_indices = @transform_9, window_bounds = array<i64: 8, 8, 64>}, {transform_indices = @transform_10, window_bounds = array<i64: 1, 8, 64>}]} {
    %c0_i32 = arith.constant 0 : i32
    %0 = arith.cmpi eq, %arg0, %c0_i32 : i32
    %c0_i32_0 = arith.constant 0 : i32
    %1 = arith.cmpi eq, %arg1, %c0_i32_0 : i32
    %2 = arith.andi %0, %1 : i1
    %3 = arith.extui %2 : i1 to i32
    %c0_i32_1 = arith.constant 0 : i32
    %4 = arith.cmpi ne, %3, %c0_i32_1 : i32
    scf.if %4 {
      %cst_69 = arith.constant 0.000000e+00 : f32
      %143 = vector.broadcast %cst_69 : f32 to vector<16x8x64xf32>
      %c0_70 = arith.constant 0 : index
      %c0_71 = arith.constant 0 : index
      %c0_72 = arith.constant 0 : index
      %144 = vector.load %arg13[%c0_70, %c0_71, %c0_72] : memref<16x8x64xf32, #tpu.memory_space<vmem>>, vector<16x8x64xf32>
      tpu.vector_store %arg13[%c0_70, %c0_71, %c0_72], %143 {strides = array<i32>} : memref<16x8x64xf32, #tpu.memory_space<vmem>>, vector<16x8x64xf32>,
      %c0_73 = arith.constant 0 : index
      %c0_74 = arith.constant 0 : index
      %c0_75 = arith.constant 0 : index
      %145 = vector.load %arg2[%c0_73, %c0_74, %c0_75] : memref<8x8x64xf32, #tpu.memory_space<vmem>>, vector<8x8x64xf32>
      %c8 = arith.constant 8 : index
      %c0_76 = arith.constant 0 : index
      %c0_77 = arith.constant 0 : index
      %146 = vector.load %arg13[%c8, %c0_76, %c0_77] : memref<16x8x64xf32, #tpu.memory_space<vmem>>, vector<8x8x64xf32>
      tpu.vector_store %arg13[%c8, %c0_76, %c0_77], %145 {strides = array<i32>} : memref<16x8x64xf32, #tpu.memory_space<vmem>>, vector<8x8x64xf32>,
    } else {
    }
    %c0_i32_2 = arith.constant 0 : i32
    %5 = arith.cmpi eq, %arg1, %c0_i32_2 : i32
    %6 = arith.extui %5 : i1 to i32
    %c0_i32_3 = arith.constant 0 : i32
    %7 = arith.cmpi ne, %6, %c0_i32_3 : i32
    scf.if %7 {
      %cst_69 = arith.constant 0.000000e+00 : f32
      %143 = vector.broadcast %cst_69 : f32 to vector<8x32xf32>
      %c0_70 = arith.constant 0 : index
      %c0_71 = arith.constant 0 : index
      %144 = vector.load %arg14[%c0_70, %c0_71] : memref<8x32xf32, #tpu.memory_space<vmem>>, vector<8x32xf32>
      tpu.vector_store %arg14[%c0_70, %c0_71], %143 {strides = array<i32>} : memref<8x32xf32, #tpu.memory_space<vmem>>, vector<8x32xf32>,
      %cst_72 = arith.constant 0.000000e+00 : f32
      %145 = vector.broadcast %cst_72 : f32 to vector<8x32xf32>
      %c0_73 = arith.constant 0 : index
      %c0_74 = arith.constant 0 : index
      %146 = vector.load %arg15[%c0_73, %c0_74] : memref<8x32xf32, #tpu.memory_space<vmem>>, vector<8x32xf32>
      tpu.vector_store %arg15[%c0_73, %c0_74], %145 {strides = array<i32>} : memref<8x32xf32, #tpu.memory_space<vmem>>, vector<8x32xf32>,
    } else {
    }
    %c1_i32 = arith.constant 1 : i32
    %8 = arith.addi %arg0, %c1_i32 : i32
    %c2_i32 = arith.constant 2 : i32
    %c0_i32_4 = arith.constant 0 : i32
    %9 = arith.cmpi eq, %c2_i32, %c0_i32_4 : i32
    %c1_i32_5 = arith.constant 1 : i32
    %10 = arith.select %9, %c1_i32_5, %c2_i32 : i32
    %11 = arith.remsi %8, %10 : i32
    %c0_i32_6 = arith.constant 0 : i32
    %12 = arith.cmpi ne, %11, %c0_i32_6 : i32
    %c0_i32_7 = arith.constant 0 : i32
    %13 = arith.cmpi slt, %11, %c0_i32_7 : i32
    %c0_i32_8 = arith.constant 0 : i32
    %14 = arith.cmpi slt, %10, %c0_i32_8 : i32
    %15 = arith.xori %13, %14 : i1
    %16 = arith.andi %15, %12 : i1
    %17 = arith.addi %11, %10 : i32
    %18 = arith.select %16, %17, %11 : i32
    %c8_i32 = arith.constant 8 : i32
    %19 = arith.muli %18, %c8_i32 : i32
    %c2_i32_9 = arith.constant 2 : i32
    %c0_i32_10 = arith.constant 0 : i32
    %20 = arith.cmpi eq, %c2_i32_9, %c0_i32_10 : i32
    %c1_i32_11 = arith.constant 1 : i32
    %21 = arith.select %20, %c1_i32_11, %c2_i32_9 : i32
    %22 = arith.remsi %arg0, %21 : i32
    %c0_i32_12 = arith.constant 0 : i32
    %23 = arith.cmpi ne, %22, %c0_i32_12 : i32
    %c0_i32_13 = arith.constant 0 : i32
    %24 = arith.cmpi slt, %22, %c0_i32_13 : i32
    %c0_i32_14 = arith.constant 0 : i32
    %25 = arith.cmpi slt, %21, %c0_i32_14 : i32
    %26 = arith.xori %24, %25 : i1
    %27 = arith.andi %26, %23 : i1
    %28 = arith.addi %22, %21 : i32
    %29 = arith.select %27, %28, %22 : i32
    %c8_i32_15 = arith.constant 8 : i32
    %30 = arith.muli %29, %c8_i32_15 : i32
    %31 = arith.addi %19, %arg1 : i32
    %32 = arith.index_cast %31 : i32 to index
    %c0 = arith.constant 0 : index
    %c0_16 = arith.constant 0 : index
    %33 = vector.load %arg13[%32, %c0, %c0_16] : memref<16x8x64xf32, #tpu.memory_space<vmem>>, vector<1x8x64xf32>
    %34 = vector.shape_cast %33 : vector<1x8x64xf32> to vector<8x64xf32>
    %c7_i32 = arith.constant 7 : i32
    %35 = arith.subi %c7_i32, %arg1 : i32
    %36 = arith.addi %19, %35 : i32
    %37 = arith.index_cast %36 : i32 to index
    %c0_17 = arith.constant 0 : index
    %c0_18 = arith.constant 0 : index
    %38 = vector.load %arg13[%37, %c0_17, %c0_18] : memref<16x8x64xf32, #tpu.memory_space<vmem>>, vector<1x8x64xf32>
    %39 = vector.shape_cast %38 : vector<1x8x64xf32> to vector<8x64xf32>
    %c0_19 = arith.constant 0 : index
    %c0_20 = arith.constant 0 : index
    %40 = vector.load %arg14[%c0_19, %c0_20] : memref<8x32xf32, #tpu.memory_space<vmem>>, vector<8x32xf32>
    %c0_21 = arith.constant 0 : index
    %c0_22 = arith.constant 0 : index
    %c0_23 = arith.constant 0 : index
    %41 = vector.load %arg3[%c0_21, %c0_22, %c0_23] : memref<1x64x96xf32, #tpu.memory_space<vmem>>, vector<1x64x96xf32>
    %42 = vector.shape_cast %41 : vector<1x64x96xf32> to vector<64x96xf32>
    %c0_24 = arith.constant 0 : index
    %c0_25 = arith.constant 0 : index
    %c0_26 = arith.constant 0 : index
    %43 = vector.load %arg4[%c0_24, %c0_25, %c0_26] : memref<1x32x96xf32, #tpu.memory_space<vmem>>, vector<1x32x96xf32>
    %44 = vector.shape_cast %43 : vector<1x32x96xf32> to vector<32x96xf32>
    %c0_27 = arith.constant 0 : index
    %c0_28 = arith.constant 0 : index
    %c0_29 = arith.constant 0 : index
    %45 = vector.load %arg5[%c0_27, %c0_28, %c0_29] : memref<1x1x96xf32, #tpu.memory_space<vmem>>, vector<1x1x96xf32>
    %46 = vector.shape_cast %45 : vector<1x1x96xf32> to vector<1x96xf32>
    %c0_30 = arith.constant 0 : index
    %c0_31 = arith.constant 0 : index
    %c0_32 = arith.constant 0 : index
    %47 = vector.load %arg6[%c0_30, %c0_31, %c0_32] : memref<1x1x96xf32, #tpu.memory_space<vmem>>, vector<1x1x96xf32>
    %48 = vector.shape_cast %47 : vector<1x1x96xf32> to vector<1x96xf32>
    %cst = arith.constant dense<0.000000e+00> : vector<8x96xf32>
    %49 = tpu.matmul %34, %42, %cst {dimension_numbers = #tpu.dot_dimension_numbers<[1], [0], [0], [1], [0, 0, 1, 1], [], []>} : vector<8x64xf32>, vector<64x96xf32>, vector<8x96xf32> -> vector<8x96xf32>
    %50 = vector.broadcast %46 : vector<1x96xf32> to vector<8x96xf32>
    %51 = arith.addf %49, %50 : vector<8x96xf32>
    %cst_33 = arith.constant dense<0.000000e+00> : vector<8x96xf32>
    %52 = tpu.matmul %40, %44, %cst_33 {dimension_numbers = #tpu.dot_dimension_numbers<[1], [0], [0], [1], [0, 0, 1, 1], [], []>} : vector<8x32xf32>, vector<32x96xf32>, vector<8x96xf32> -> vector<8x96xf32>
    %53 = vector.broadcast %48 : vector<1x96xf32> to vector<8x96xf32>
    %54 = arith.addf %52, %53 : vector<8x96xf32>
    %55 = vector.extract_strided_slice %51 {offsets = [0, 0], sizes = [8, 32], strides = [1, 1]} : vector<8x96xf32> to vector<8x32xf32>
    %56 = vector.extract_strided_slice %54 {offsets = [0, 0], sizes = [8, 32], strides = [1, 1]} : vector<8x96xf32> to vector<8x32xf32>
    %57 = arith.addf %55, %56 : vector<8x32xf32>
    %58 = arith.negf %57 : vector<8x32xf32>
    %59 = math.exp %58 : vector<8x32xf32>
    %cst_34 = arith.constant 1.000000e+00 : f32
    %60 = vector.broadcast %cst_34 : f32 to vector<8x32xf32>
    %61 = arith.addf %60, %59 : vector<8x32xf32>
    %62 = arith.divf %60, %61 : vector<8x32xf32>
    %63 = vector.extract_strided_slice %51 {offsets = [0, 32], sizes = [8, 32], strides = [1, 1]} : vector<8x96xf32> to vector<8x32xf32>
    %64 = vector.extract_strided_slice %54 {offsets = [0, 32], sizes = [8, 32], strides = [1, 1]} : vector<8x96xf32> to vector<8x32xf32>
    %65 = arith.addf %63, %64 : vector<8x32xf32>
    %66 = arith.negf %65 : vector<8x32xf32>
    %67 = math.exp %66 : vector<8x32xf32>
    %cst_35 = arith.constant 1.000000e+00 : f32
    %68 = vector.broadcast %cst_35 : f32 to vector<8x32xf32>
    %69 = arith.addf %68, %67 : vector<8x32xf32>
    %70 = arith.divf %68, %69 : vector<8x32xf32>
    %71 = vector.extract_strided_slice %51 {offsets = [0, 64], sizes = [8, 32], strides = [1, 1]} : vector<8x96xf32> to vector<8x32xf32>
    %72 = vector.extract_strided_slice %54 {offsets = [0, 64], sizes = [8, 32], strides = [1, 1]} : vector<8x96xf32> to vector<8x32xf32>
    %73 = arith.mulf %62, %72 : vector<8x32xf32>
    %74 = arith.addf %71, %73 : vector<8x32xf32>
    %75 = math.tanh %74 : vector<8x32xf32>
    %cst_36 = arith.constant 1.000000e+00 : f32
    %76 = vector.broadcast %cst_36 : f32 to vector<8x32xf32>
    %77 = arith.subf %76, %70 : vector<8x32xf32>
    %78 = arith.mulf %77, %75 : vector<8x32xf32>
    %79 = arith.mulf %70, %40 : vector<8x32xf32>
    %80 = arith.addf %78, %79 : vector<8x32xf32>
    %c0_37 = arith.constant 0 : index
    %c0_38 = arith.constant 0 : index
    %81 = vector.load %arg15[%c0_37, %c0_38] : memref<8x32xf32, #tpu.memory_space<vmem>>, vector<8x32xf32>
    %c0_39 = arith.constant 0 : index
    %c0_40 = arith.constant 0 : index
    %c0_41 = arith.constant 0 : index
    %82 = vector.load %arg7[%c0_39, %c0_40, %c0_41] : memref<1x64x96xf32, #tpu.memory_space<vmem>>, vector<1x64x96xf32>
    %83 = vector.shape_cast %82 : vector<1x64x96xf32> to vector<64x96xf32>
    %c0_42 = arith.constant 0 : index
    %c0_43 = arith.constant 0 : index
    %c0_44 = arith.constant 0 : index
    %84 = vector.load %arg8[%c0_42, %c0_43, %c0_44] : memref<1x32x96xf32, #tpu.memory_space<vmem>>, vector<1x32x96xf32>
    %85 = vector.shape_cast %84 : vector<1x32x96xf32> to vector<32x96xf32>
    %c0_45 = arith.constant 0 : index
    %c0_46 = arith.constant 0 : index
    %c0_47 = arith.constant 0 : index
    %86 = vector.load %arg9[%c0_45, %c0_46, %c0_47] : memref<1x1x96xf32, #tpu.memory_space<vmem>>, vector<1x1x96xf32>
    %87 = vector.shape_cast %86 : vector<1x1x96xf32> to vector<1x96xf32>
    %c0_48 = arith.constant 0 : index
    %c0_49 = arith.constant 0 : index
    %c0_50 = arith.constant 0 : index
    %88 = vector.load %arg10[%c0_48, %c0_49, %c0_50] : memref<1x1x96xf32, #tpu.memory_space<vmem>>, vector<1x1x96xf32>
    %89 = vector.shape_cast %88 : vector<1x1x96xf32> to vector<1x96xf32>
    %cst_51 = arith.constant dense<0.000000e+00> : vector<8x96xf32>
    %90 = tpu.matmul %39, %83, %cst_51 {dimension_numbers = #tpu.dot_dimension_numbers<[1], [0], [0], [1], [0, 0, 1, 1], [], []>} : vector<8x64xf32>, vector<64x96xf32>, vector<8x96xf32> -> vector<8x96xf32>
    %91 = vector.broadcast %87 : vector<1x96xf32> to vector<8x96xf32>
    %92 = arith.addf %90, %91 : vector<8x96xf32>
    %cst_52 = arith.constant dense<0.000000e+00> : vector<8x96xf32>
    %93 = tpu.matmul %81, %85, %cst_52 {dimension_numbers = #tpu.dot_dimension_numbers<[1], [0], [0], [1], [0, 0, 1, 1], [], []>} : vector<8x32xf32>, vector<32x96xf32>, vector<8x96xf32> -> vector<8x96xf32>
    %94 = vector.broadcast %89 : vector<1x96xf32> to vector<8x96xf32>
    %95 = arith.addf %93, %94 : vector<8x96xf32>
    %96 = vector.extract_strided_slice %92 {offsets = [0, 0], sizes = [8, 32], strides = [1, 1]} : vector<8x96xf32> to vector<8x32xf32>
    %97 = vector.extract_strided_slice %95 {offsets = [0, 0], sizes = [8, 32], strides = [1, 1]} : vector<8x96xf32> to vector<8x32xf32>
    %98 = arith.addf %96, %97 : vector<8x32xf32>
    %99 = arith.negf %98 : vector<8x32xf32>
    %100 = math.exp %99 : vector<8x32xf32>
    %cst_53 = arith.constant 1.000000e+00 : f32
    %101 = vector.broadcast %cst_53 : f32 to vector<8x32xf32>
    %102 = arith.addf %101, %100 : vector<8x32xf32>
    %103 = arith.divf %101, %102 : vector<8x32xf32>
    %104 = vector.extract_strided_slice %92 {offsets = [0, 32], sizes = [8, 32], strides = [1, 1]} : vector<8x96xf32> to vector<8x32xf32>
    %105 = vector.extract_strided_slice %95 {offsets = [0, 32], sizes = [8, 32], strides = [1, 1]} : vector<8x96xf32> to vector<8x32xf32>
    %106 = arith.addf %104, %105 : vector<8x32xf32>
    %107 = arith.negf %106 : vector<8x32xf32>
    %108 = math.exp %107 : vector<8x32xf32>
    %cst_54 = arith.constant 1.000000e+00 : f32
    %109 = vector.broadcast %cst_54 : f32 to vector<8x32xf32>
    %110 = arith.addf %109, %108 : vector<8x32xf32>
    %111 = arith.divf %109, %110 : vector<8x32xf32>
    %112 = vector.extract_strided_slice %92 {offsets = [0, 64], sizes = [8, 32], strides = [1, 1]} : vector<8x96xf32> to vector<8x32xf32>
    %113 = vector.extract_strided_slice %95 {offsets = [0, 64], sizes = [8, 32], strides = [1, 1]} : vector<8x96xf32> to vector<8x32xf32>
    %114 = arith.mulf %103, %113 : vector<8x32xf32>
    %115 = arith.addf %112, %114 : vector<8x32xf32>
    %116 = math.tanh %115 : vector<8x32xf32>
    %cst_55 = arith.constant 1.000000e+00 : f32
    %117 = vector.broadcast %cst_55 : f32 to vector<8x32xf32>
    %118 = arith.subf %117, %111 : vector<8x32xf32>
    %119 = arith.mulf %118, %116 : vector<8x32xf32>
    %120 = arith.mulf %111, %81 : vector<8x32xf32>
    %121 = arith.addf %119, %120 : vector<8x32xf32>
    %c0_56 = arith.constant 0 : index
    %c0_57 = arith.constant 0 : index
    %122 = vector.load %arg14[%c0_56, %c0_57] : memref<8x32xf32, #tpu.memory_space<vmem>>, vector<8x32xf32>
    tpu.vector_store %arg14[%c0_56, %c0_57], %80 {strides = array<i32>} : memref<8x32xf32, #tpu.memory_space<vmem>>, vector<8x32xf32>,
    %c0_58 = arith.constant 0 : index
    %c0_59 = arith.constant 0 : index
    %123 = vector.load %arg15[%c0_58, %c0_59] : memref<8x32xf32, #tpu.memory_space<vmem>>, vector<8x32xf32>
    tpu.vector_store %arg15[%c0_58, %c0_59], %121 {strides = array<i32>} : memref<8x32xf32, #tpu.memory_space<vmem>>, vector<8x32xf32>,
    %124 = arith.addi %30, %arg1 : i32
    %125 = arith.index_cast %124 : i32 to index
    %c0_60 = arith.constant 0 : index
    %c0_61 = arith.constant 0 : index
    %126 = vector.load %arg13[%125, %c0_60, %c0_61] : memref<16x8x64xf32, #tpu.memory_space<vmem>>, vector<1x8x32xf32>
    %127 = vector.shape_cast %126 : vector<1x8x32xf32> to vector<8x32xf32>
    %128 = vector.shape_cast %80 : vector<8x32xf32> to vector<1x8x32xf32>
    tpu.vector_store %arg13[%125, %c0_60, %c0_61], %128 {strides = array<i32>} : memref<16x8x64xf32, #tpu.memory_space<vmem>>, vector<1x8x32xf32>,
    %c7_i32_62 = arith.constant 7 : i32
    %129 = arith.subi %c7_i32_62, %arg1 : i32
    %130 = arith.addi %30, %129 : i32
    %131 = arith.index_cast %130 : i32 to index
    %c0_63 = arith.constant 0 : index
    %c32 = arith.constant 32 : index
    %132 = vector.load %arg13[%131, %c0_63, %c32] : memref<16x8x64xf32, #tpu.memory_space<vmem>>, vector<1x8x32xf32>
    %133 = vector.shape_cast %132 : vector<1x8x32xf32> to vector<8x32xf32>
    %134 = vector.shape_cast %121 : vector<8x32xf32> to vector<1x8x32xf32>
    tpu.vector_store %arg13[%131, %c0_63, %c32], %134 {strides = array<i32>} : memref<16x8x64xf32, #tpu.memory_space<vmem>>, vector<1x8x32xf32>,
    %c7_i32_64 = arith.constant 7 : i32
    %135 = arith.cmpi eq, %arg1, %c7_i32_64 : i32
    %136 = arith.extui %135 : i1 to i32
    %c0_i32_65 = arith.constant 0 : i32
    %137 = arith.cmpi ne, %136, %c0_i32_65 : i32
    scf.if %137 {
      %c0_69 = arith.constant 0 : index
      %c0_70 = arith.constant 0 : index
      %c0_71 = arith.constant 0 : index
      %143 = vector.load %arg12[%c0_69, %c0_70, %c0_71] : memref<1x8x64xf32, #tpu.memory_space<vmem>>, vector<1x8x32xf32>
      %144 = vector.shape_cast %143 : vector<1x8x32xf32> to vector<8x32xf32>
      %145 = vector.shape_cast %80 : vector<8x32xf32> to vector<1x8x32xf32>
      tpu.vector_store %arg12[%c0_69, %c0_70, %c0_71], %145 {strides = array<i32>} : memref<1x8x64xf32, #tpu.memory_space<vmem>>, vector<1x8x32xf32>,
      %c0_72 = arith.constant 0 : index
      %c0_73 = arith.constant 0 : index
      %c32_74 = arith.constant 32 : index
      %146 = vector.load %arg12[%c0_72, %c0_73, %c32_74] : memref<1x8x64xf32, #tpu.memory_space<vmem>>, vector<1x8x32xf32>
      %147 = vector.shape_cast %146 : vector<1x8x32xf32> to vector<8x32xf32>
      %148 = vector.shape_cast %121 : vector<8x32xf32> to vector<1x8x32xf32>
      tpu.vector_store %arg12[%c0_72, %c0_73, %c32_74], %148 {strides = array<i32>} : memref<1x8x64xf32, #tpu.memory_space<vmem>>, vector<1x8x32xf32>,
    } else {
    }
    %c1_i32_66 = arith.constant 1 : i32
    %138 = arith.cmpi eq, %arg0, %c1_i32_66 : i32
    %c7_i32_67 = arith.constant 7 : i32
    %139 = arith.cmpi eq, %arg1, %c7_i32_67 : i32
    %140 = arith.andi %138, %139 : i1
    %141 = arith.extui %140 : i1 to i32
    %c0_i32_68 = arith.constant 0 : i32
    %142 = arith.cmpi ne, %141, %c0_i32_68 : i32
    scf.if %142 {
      %c8 = arith.constant 8 : index
      %c0_69 = arith.constant 0 : index
      %c0_70 = arith.constant 0 : index
      %143 = vector.load %arg13[%c8, %c0_69, %c0_70] : memref<16x8x64xf32, #tpu.memory_space<vmem>>, vector<8x8x64xf32>
      %c0_71 = arith.constant 0 : index
      %c0_72 = arith.constant 0 : index
      %c0_73 = arith.constant 0 : index
      %144 = vector.load %arg11[%c0_71, %c0_72, %c0_73] : memref<8x8x64xf32, #tpu.memory_space<vmem>>, vector<8x8x64xf32>
      tpu.vector_store %arg11[%c0_71, %c0_72, %c0_73], %143 {strides = array<i32>} : memref<8x8x64xf32, #tpu.memory_space<vmem>>, vector<8x8x64xf32>,
    } else {
    }
    return
  }
  func.func @transform_0(%arg0: i32, %arg1: i32) -> (i32, i32, i32) {
    %c0_i32 = arith.constant 0 : i32
    %c0_i32_0 = arith.constant 0 : i32
    %c0_i32_1 = arith.constant 0 : i32
    %c0_i32_2 = arith.constant 0 : i32
    return %c0_i32, %c0_i32_0, %c0_i32_1 : i32, i32, i32
  }
  func.func @transform_1(%arg0: i32, %arg1: i32) -> (i32, i32, i32) {
    %c0_i32 = arith.constant 0 : i32
    %c0_i32_0 = arith.constant 0 : i32
    %c0_i32_1 = arith.constant 0 : i32
    return %arg0, %c0_i32, %c0_i32_0 : i32, i32, i32
  }
  func.func @transform_2(%arg0: i32, %arg1: i32) -> (i32, i32, i32) {
    %c0_i32 = arith.constant 0 : i32
    %c0_i32_0 = arith.constant 0 : i32
    %c0_i32_1 = arith.constant 0 : i32
    return %arg0, %c0_i32, %c0_i32_0 : i32, i32, i32
  }
  func.func @transform_3(%arg0: i32, %arg1: i32) -> (i32, i32, i32) {
    %c0_i32 = arith.constant 0 : i32
    %c0_i32_0 = arith.constant 0 : i32
    %c0_i32_1 = arith.constant 0 : i32
    return %arg0, %c0_i32, %c0_i32_0 : i32, i32, i32
  }
  func.func @transform_4(%arg0: i32, %arg1: i32) -> (i32, i32, i32) {
    %c0_i32 = arith.constant 0 : i32
    %c0_i32_0 = arith.constant 0 : i32
    %c0_i32_1 = arith.constant 0 : i32
    return %arg0, %c0_i32, %c0_i32_0 : i32, i32, i32
  }
  func.func @transform_5(%arg0: i32, %arg1: i32) -> (i32, i32, i32) {
    %c0_i32 = arith.constant 0 : i32
    %c0_i32_0 = arith.constant 0 : i32
    %c0_i32_1 = arith.constant 0 : i32
    return %arg0, %c0_i32, %c0_i32_0 : i32, i32, i32
  }
  func.func @transform_6(%arg0: i32, %arg1: i32) -> (i32, i32, i32) {
    %c0_i32 = arith.constant 0 : i32
    %c0_i32_0 = arith.constant 0 : i32
    %c0_i32_1 = arith.constant 0 : i32
    return %arg0, %c0_i32, %c0_i32_0 : i32, i32, i32
  }
  func.func @transform_7(%arg0: i32, %arg1: i32) -> (i32, i32, i32) {
    %c0_i32 = arith.constant 0 : i32
    %c0_i32_0 = arith.constant 0 : i32
    %c0_i32_1 = arith.constant 0 : i32
    return %arg0, %c0_i32, %c0_i32_0 : i32, i32, i32
  }
  func.func @transform_8(%arg0: i32, %arg1: i32) -> (i32, i32, i32) {
    %c0_i32 = arith.constant 0 : i32
    %c0_i32_0 = arith.constant 0 : i32
    %c0_i32_1 = arith.constant 0 : i32
    return %arg0, %c0_i32, %c0_i32_0 : i32, i32, i32
  }
  func.func @transform_9(%arg0: i32, %arg1: i32) -> (i32, i32, i32) {
    %c0_i32 = arith.constant 0 : i32
    %c0_i32_0 = arith.constant 0 : i32
    %c0_i32_1 = arith.constant 0 : i32
    %c0_i32_2 = arith.constant 0 : i32
    return %c0_i32, %c0_i32_0, %c0_i32_1 : i32, i32, i32
  }
  func.func @transform_10(%arg0: i32, %arg1: i32) -> (i32, i32, i32) {
    %c0_i32 = arith.constant 0 : i32
    %c0_i32_0 = arith.constant 0 : i32
    %c0_i32_1 = arith.constant 0 : i32
    return %arg0, %c0_i32, %c0_i32_0 : i32, i32, i32
  }
}

module attributes {stable_mosaic.version = 11 : i64} {
  func.func @_dec_kernel(%arg0: i32, %arg1: memref<7xi32, #tpu.memory_space<smem>>, %arg2: memref<8x8x1xi32, #tpu.memory_space<vmem>>, %arg3: memref<2x8x64xf32, #tpu.memory_space<vmem>>, %arg4: memref<128x32xf32, #tpu.memory_space<vmem>>, %arg5: memref<32x192xf32, #tpu.memory_space<vmem>>, %arg6: memref<64x192xf32, #tpu.memory_space<vmem>>, %arg7: memref<1x192xf32, #tpu.memory_space<vmem>>, %arg8: memref<1x192xf32, #tpu.memory_space<vmem>>, %arg9: memref<64x192xf32, #tpu.memory_space<vmem>>, %arg10: memref<64x192xf32, #tpu.memory_space<vmem>>, %arg11: memref<1x192xf32, #tpu.memory_space<vmem>>, %arg12: memref<1x192xf32, #tpu.memory_space<vmem>>, %arg13: memref<64x128xf32, #tpu.memory_space<vmem>>, %arg14: memref<1x128xf32, #tpu.memory_space<vmem>>, %arg15: memref<128x256xf32, #tpu.memory_space<vmem>>, %arg16: memref<1x256xf32, #tpu.memory_space<vmem>>, %arg17: memref<256x128xf32, #tpu.memory_space<vmem>>, %arg18: memref<1x128xf32, #tpu.memory_space<vmem>>, %arg19: memref<1x8x128xf32, #tpu.memory_space<vmem>>, %arg20: memref<1x8x1xi32, #tpu.memory_space<vmem>>, %arg21: memref<2x8x64xf32, #tpu.memory_space<vmem>>, %arg22: memref<8x1xi32, #tpu.memory_space<vmem>>) attributes {dimension_semantics = [#tpu.dimension_semantics<arbitrary>], iteration_bounds = array<i64: 7>, scalar_prefetch = 1 : i64, scratch_operands = 2 : i64, tpu.core_type = #tpu.core_type<tc>, window_params = [{pipeline_mode = #tpu.pipeline_mode<synchronous>, transform_indices = @transform_0, window_bounds = array<i64: 8, 8, 1>}, {pipeline_mode = #tpu.pipeline_mode<synchronous>, transform_indices = @transform_1, window_bounds = array<i64: 2, 8, 64>}, {pipeline_mode = #tpu.pipeline_mode<synchronous>, transform_indices = @transform_2, window_bounds = array<i64: 128, 32>}, {pipeline_mode = #tpu.pipeline_mode<synchronous>, transform_indices = @transform_3, window_bounds = array<i64: 32, 192>}, {pipeline_mode = #tpu.pipeline_mode<synchronous>, transform_indices = @transform_4, window_bounds = array<i64: 64, 192>}, {pipeline_mode = #tpu.pipeline_mode<synchronous>, transform_indices = @transform_5, window_bounds = array<i64: 1, 192>}, {pipeline_mode = #tpu.pipeline_mode<synchronous>, transform_indices = @transform_6, window_bounds = array<i64: 1, 192>}, {pipeline_mode = #tpu.pipeline_mode<synchronous>, transform_indices = @transform_7, window_bounds = array<i64: 64, 192>}, {pipeline_mode = #tpu.pipeline_mode<synchronous>, transform_indices = @transform_8, window_bounds = array<i64: 64, 192>}, {pipeline_mode = #tpu.pipeline_mode<synchronous>, transform_indices = @transform_9, window_bounds = array<i64: 1, 192>}, {pipeline_mode = #tpu.pipeline_mode<synchronous>, transform_indices = @transform_10, window_bounds = array<i64: 1, 192>}, {pipeline_mode = #tpu.pipeline_mode<synchronous>, transform_indices = @transform_11, window_bounds = array<i64: 64, 128>}, {pipeline_mode = #tpu.pipeline_mode<synchronous>, transform_indices = @transform_12, window_bounds = array<i64: 1, 128>}, {pipeline_mode = #tpu.pipeline_mode<synchronous>, transform_indices = @transform_13, window_bounds = array<i64: 128, 256>}, {pipeline_mode = #tpu.pipeline_mode<synchronous>, transform_indices = @transform_14, window_bounds = array<i64: 1, 256>}, {pipeline_mode = #tpu.pipeline_mode<synchronous>, transform_indices = @transform_15, window_bounds = array<i64: 256, 128>}, {pipeline_mode = #tpu.pipeline_mode<synchronous>, transform_indices = @transform_16, window_bounds = array<i64: 1, 128>}, {transform_indices = @transform_17, window_bounds = array<i64: 1, 8, 128>}, {transform_indices = @transform_18, window_bounds = array<i64: 1, 8, 1>}]} {
    %0 = arith.index_cast %arg0 : i32 to index
    %c0 = arith.constant 0 : index
    %c0_0 = arith.constant 0 : index
    %1 = vector.load %arg2[%0, %c0, %c0_0] : memref<8x8x1xi32, #tpu.memory_space<vmem>>, vector<1x8x1xi32>
    %2 = vector.shape_cast %1 : vector<1x8x1xi32> to vector<8x1xi32>
    %c0_i32 = arith.constant 0 : i32
    %3 = arith.cmpi eq, %arg0, %c0_i32 : i32
    %4 = arith.extui %3 : i1 to i32
    %c0_i32_1 = arith.constant 0 : i32
    %5 = arith.cmpi ne, %4, %c0_i32_1 : i32
    scf.if %5 {
      %c0_70 = arith.constant 0 : index
      %c0_71 = arith.constant 0 : index
      %c0_72 = arith.constant 0 : index
      %140 = vector.load %arg3[%c0_70, %c0_71, %c0_72] : memref<2x8x64xf32, #tpu.memory_space<vmem>>, vector<2x8x64xf32>
      %c0_73 = arith.constant 0 : index
      %c0_74 = arith.constant 0 : index
      %c0_75 = arith.constant 0 : index
      %141 = vector.load %arg21[%c0_73, %c0_74, %c0_75] : memref<2x8x64xf32, #tpu.memory_space<vmem>>, vector<2x8x64xf32>
      tpu.vector_store %arg21[%c0_73, %c0_74, %c0_75], %140 {strides = array<i32>} : memref<2x8x64xf32, #tpu.memory_space<vmem>>, vector<2x8x64xf32>,
      %c0_76 = arith.constant 0 : index
      %c0_77 = arith.constant 0 : index
      %142 = vector.load %arg22[%c0_76, %c0_77] : memref<8x1xi32, #tpu.memory_space<vmem>>, vector<8x1xi32>
      tpu.vector_store %arg22[%c0_76, %c0_77], %2 {strides = array<i32>} : memref<8x1xi32, #tpu.memory_space<vmem>>, vector<8x1xi32>,
    } else {
    }
    %6 = arith.index_cast %arg0 : i32 to index
    %7 = memref.load %arg1[%6] : memref<7xi32, #tpu.memory_space<smem>>
    %8 = vector.broadcast %7 : i32 to vector<8x1xi32>
    %9 = arith.muli %8, %2 : vector<8x1xi32>
    %c1_i32 = arith.constant 1 : i32
    %10 = arith.subi %c1_i32, %7 : i32
    %c0_2 = arith.constant 0 : index
    %c0_3 = arith.constant 0 : index
    %11 = vector.load %arg22[%c0_2, %c0_3] : memref<8x1xi32, #tpu.memory_space<vmem>>, vector<8x1xi32>
    %12 = vector.broadcast %10 : i32 to vector<8x1xi32>
    %13 = arith.muli %12, %11 : vector<8x1xi32>
    %14 = arith.addi %9, %13 : vector<8x1xi32>
    %15 = tpu.iota {dimensions = array<i32: 1>} : vector<8x128xi32>
    %16 = vector.broadcast %14 : vector<8x1xi32> to vector<8x128xi32>
    %17 = arith.cmpi eq, %15, %16 : vector<8x128xi32>
    %18 = arith.extui %17 : vector<8x128xi1> to vector<8x128xi32>
    %19 = arith.sitofp %18 : vector<8x128xi32> to vector<8x128xf32>
    %c0_4 = arith.constant 0 : index
    %c0_5 = arith.constant 0 : index
    %20 = vector.load %arg4[%c0_4, %c0_5] : memref<128x32xf32, #tpu.memory_space<vmem>>, vector<128x32xf32>
    %cst = arith.constant dense<0.000000e+00> : vector<8x32xf32>
    %21 = tpu.matmul %19, %20, %cst {dimension_numbers = #tpu.dot_dimension_numbers<[1], [0], [0], [1], [0, 0, 1, 1], [], []>} : vector<8x128xf32>, vector<128x32xf32>, vector<8x32xf32> -> vector<8x32xf32>
    %c0_6 = arith.constant 0 : index
    %c0_7 = arith.constant 0 : index
    %22 = vector.load %arg5[%c0_6, %c0_7] : memref<32x192xf32, #tpu.memory_space<vmem>>, vector<32x192xf32>
    %c0_8 = arith.constant 0 : index
    %c0_9 = arith.constant 0 : index
    %23 = vector.load %arg6[%c0_8, %c0_9] : memref<64x192xf32, #tpu.memory_space<vmem>>, vector<64x192xf32>
    %c0_10 = arith.constant 0 : index
    %c0_11 = arith.constant 0 : index
    %24 = vector.load %arg7[%c0_10, %c0_11] : memref<1x192xf32, #tpu.memory_space<vmem>>, vector<1x192xf32>
    %c0_12 = arith.constant 0 : index
    %c0_13 = arith.constant 0 : index
    %25 = vector.load %arg8[%c0_12, %c0_13] : memref<1x192xf32, #tpu.memory_space<vmem>>, vector<1x192xf32>
    %c0_14 = arith.constant 0 : index
    %c0_15 = arith.constant 0 : index
    %c0_16 = arith.constant 0 : index
    %26 = vector.load %arg21[%c0_14, %c0_15, %c0_16] : memref<2x8x64xf32, #tpu.memory_space<vmem>>, vector<1x8x64xf32>
    %27 = vector.shape_cast %26 : vector<1x8x64xf32> to vector<8x64xf32>
    %cst_17 = arith.constant dense<0.000000e+00> : vector<8x192xf32>
    %28 = tpu.matmul %21, %22, %cst_17 {dimension_numbers = #tpu.dot_dimension_numbers<[1], [0], [0], [1], [0, 0, 1, 1], [], []>} : vector<8x32xf32>, vector<32x192xf32>, vector<8x192xf32> -> vector<8x192xf32>
    %29 = vector.broadcast %24 : vector<1x192xf32> to vector<8x192xf32>
    %30 = arith.addf %28, %29 : vector<8x192xf32>
    %cst_18 = arith.constant dense<0.000000e+00> : vector<8x192xf32>
    %31 = tpu.matmul %27, %23, %cst_18 {dimension_numbers = #tpu.dot_dimension_numbers<[1], [0], [0], [1], [0, 0, 1, 1], [], []>} : vector<8x64xf32>, vector<64x192xf32>, vector<8x192xf32> -> vector<8x192xf32>
    %32 = vector.broadcast %25 : vector<1x192xf32> to vector<8x192xf32>
    %33 = arith.addf %31, %32 : vector<8x192xf32>
    %34 = vector.extract_strided_slice %30 {offsets = [0, 0], sizes = [8, 64], strides = [1, 1]} : vector<8x192xf32> to vector<8x64xf32>
    %35 = vector.extract_strided_slice %33 {offsets = [0, 0], sizes = [8, 64], strides = [1, 1]} : vector<8x192xf32> to vector<8x64xf32>
    %36 = arith.addf %34, %35 : vector<8x64xf32>
    %37 = arith.negf %36 : vector<8x64xf32>
    %38 = math.exp %37 : vector<8x64xf32>
    %cst_19 = arith.constant 1.000000e+00 : f32
    %39 = vector.broadcast %cst_19 : f32 to vector<8x64xf32>
    %40 = arith.addf %39, %38 : vector<8x64xf32>
    %41 = arith.divf %39, %40 : vector<8x64xf32>
    %42 = vector.extract_strided_slice %30 {offsets = [0, 64], sizes = [8, 64], strides = [1, 1]} : vector<8x192xf32> to vector<8x64xf32>
    %43 = vector.extract_strided_slice %33 {offsets = [0, 64], sizes = [8, 64], strides = [1, 1]} : vector<8x192xf32> to vector<8x64xf32>
    %44 = arith.addf %42, %43 : vector<8x64xf32>
    %45 = arith.negf %44 : vector<8x64xf32>
    %46 = math.exp %45 : vector<8x64xf32>
    %cst_20 = arith.constant 1.000000e+00 : f32
    %47 = vector.broadcast %cst_20 : f32 to vector<8x64xf32>
    %48 = arith.addf %47, %46 : vector<8x64xf32>
    %49 = arith.divf %47, %48 : vector<8x64xf32>
    %50 = vector.extract_strided_slice %30 {offsets = [0, 128], sizes = [8, 64], strides = [1, 1]} : vector<8x192xf32> to vector<8x64xf32>
    %51 = vector.extract_strided_slice %33 {offsets = [0, 128], sizes = [8, 64], strides = [1, 1]} : vector<8x192xf32> to vector<8x64xf32>
    %52 = arith.mulf %41, %51 : vector<8x64xf32>
    %53 = arith.addf %50, %52 : vector<8x64xf32>
    %54 = math.tanh %53 : vector<8x64xf32>
    %cst_21 = arith.constant 1.000000e+00 : f32
    %55 = vector.broadcast %cst_21 : f32 to vector<8x64xf32>
    %56 = arith.subf %55, %49 : vector<8x64xf32>
    %57 = arith.mulf %56, %54 : vector<8x64xf32>
    %58 = arith.mulf %49, %27 : vector<8x64xf32>
    %59 = arith.addf %57, %58 : vector<8x64xf32>
    %c0_22 = arith.constant 0 : index
    %c0_23 = arith.constant 0 : index
    %c0_24 = arith.constant 0 : index
    %60 = vector.load %arg21[%c0_22, %c0_23, %c0_24] : memref<2x8x64xf32, #tpu.memory_space<vmem>>, vector<1x8x64xf32>
    %61 = vector.shape_cast %60 : vector<1x8x64xf32> to vector<8x64xf32>
    %62 = vector.shape_cast %59 : vector<8x64xf32> to vector<1x8x64xf32>
    tpu.vector_store %arg21[%c0_22, %c0_23, %c0_24], %62 {strides = array<i32>} : memref<2x8x64xf32, #tpu.memory_space<vmem>>, vector<1x8x64xf32>,
    %c0_25 = arith.constant 0 : index
    %c0_26 = arith.constant 0 : index
    %63 = vector.load %arg9[%c0_25, %c0_26] : memref<64x192xf32, #tpu.memory_space<vmem>>, vector<64x192xf32>
    %c0_27 = arith.constant 0 : index
    %c0_28 = arith.constant 0 : index
    %64 = vector.load %arg10[%c0_27, %c0_28] : memref<64x192xf32, #tpu.memory_space<vmem>>, vector<64x192xf32>
    %c0_29 = arith.constant 0 : index
    %c0_30 = arith.constant 0 : index
    %65 = vector.load %arg11[%c0_29, %c0_30] : memref<1x192xf32, #tpu.memory_space<vmem>>, vector<1x192xf32>
    %c0_31 = arith.constant 0 : index
    %c0_32 = arith.constant 0 : index
    %66 = vector.load %arg12[%c0_31, %c0_32] : memref<1x192xf32, #tpu.memory_space<vmem>>, vector<1x192xf32>
    %c1 = arith.constant 1 : index
    %c0_33 = arith.constant 0 : index
    %c0_34 = arith.constant 0 : index
    %67 = vector.load %arg21[%c1, %c0_33, %c0_34] : memref<2x8x64xf32, #tpu.memory_space<vmem>>, vector<1x8x64xf32>
    %68 = vector.shape_cast %67 : vector<1x8x64xf32> to vector<8x64xf32>
    %cst_35 = arith.constant dense<0.000000e+00> : vector<8x192xf32>
    %69 = tpu.matmul %59, %63, %cst_35 {dimension_numbers = #tpu.dot_dimension_numbers<[1], [0], [0], [1], [0, 0, 1, 1], [], []>} : vector<8x64xf32>, vector<64x192xf32>, vector<8x192xf32> -> vector<8x192xf32>
    %70 = vector.broadcast %65 : vector<1x192xf32> to vector<8x192xf32>
    %71 = arith.addf %69, %70 : vector<8x192xf32>
    %cst_36 = arith.constant dense<0.000000e+00> : vector<8x192xf32>
    %72 = tpu.matmul %68, %64, %cst_36 {dimension_numbers = #tpu.dot_dimension_numbers<[1], [0], [0], [1], [0, 0, 1, 1], [], []>} : vector<8x64xf32>, vector<64x192xf32>, vector<8x192xf32> -> vector<8x192xf32>
    %73 = vector.broadcast %66 : vector<1x192xf32> to vector<8x192xf32>
    %74 = arith.addf %72, %73 : vector<8x192xf32>
    %75 = vector.extract_strided_slice %71 {offsets = [0, 0], sizes = [8, 64], strides = [1, 1]} : vector<8x192xf32> to vector<8x64xf32>
    %76 = vector.extract_strided_slice %74 {offsets = [0, 0], sizes = [8, 64], strides = [1, 1]} : vector<8x192xf32> to vector<8x64xf32>
    %77 = arith.addf %75, %76 : vector<8x64xf32>
    %78 = arith.negf %77 : vector<8x64xf32>
    %79 = math.exp %78 : vector<8x64xf32>
    %cst_37 = arith.constant 1.000000e+00 : f32
    %80 = vector.broadcast %cst_37 : f32 to vector<8x64xf32>
    %81 = arith.addf %80, %79 : vector<8x64xf32>
    %82 = arith.divf %80, %81 : vector<8x64xf32>
    %83 = vector.extract_strided_slice %71 {offsets = [0, 64], sizes = [8, 64], strides = [1, 1]} : vector<8x192xf32> to vector<8x64xf32>
    %84 = vector.extract_strided_slice %74 {offsets = [0, 64], sizes = [8, 64], strides = [1, 1]} : vector<8x192xf32> to vector<8x64xf32>
    %85 = arith.addf %83, %84 : vector<8x64xf32>
    %86 = arith.negf %85 : vector<8x64xf32>
    %87 = math.exp %86 : vector<8x64xf32>
    %cst_38 = arith.constant 1.000000e+00 : f32
    %88 = vector.broadcast %cst_38 : f32 to vector<8x64xf32>
    %89 = arith.addf %88, %87 : vector<8x64xf32>
    %90 = arith.divf %88, %89 : vector<8x64xf32>
    %91 = vector.extract_strided_slice %71 {offsets = [0, 128], sizes = [8, 64], strides = [1, 1]} : vector<8x192xf32> to vector<8x64xf32>
    %92 = vector.extract_strided_slice %74 {offsets = [0, 128], sizes = [8, 64], strides = [1, 1]} : vector<8x192xf32> to vector<8x64xf32>
    %93 = arith.mulf %82, %92 : vector<8x64xf32>
    %94 = arith.addf %91, %93 : vector<8x64xf32>
    %95 = math.tanh %94 : vector<8x64xf32>
    %cst_39 = arith.constant 1.000000e+00 : f32
    %96 = vector.broadcast %cst_39 : f32 to vector<8x64xf32>
    %97 = arith.subf %96, %90 : vector<8x64xf32>
    %98 = arith.mulf %97, %95 : vector<8x64xf32>
    %99 = arith.mulf %90, %68 : vector<8x64xf32>
    %100 = arith.addf %98, %99 : vector<8x64xf32>
    %c1_40 = arith.constant 1 : index
    %c0_41 = arith.constant 0 : index
    %c0_42 = arith.constant 0 : index
    %101 = vector.load %arg21[%c1_40, %c0_41, %c0_42] : memref<2x8x64xf32, #tpu.memory_space<vmem>>, vector<1x8x64xf32>
    %102 = vector.shape_cast %101 : vector<1x8x64xf32> to vector<8x64xf32>
    %103 = vector.shape_cast %100 : vector<8x64xf32> to vector<1x8x64xf32>
    tpu.vector_store %arg21[%c1_40, %c0_41, %c0_42], %103 {strides = array<i32>} : memref<2x8x64xf32, #tpu.memory_space<vmem>>, vector<1x8x64xf32>,
    %c0_43 = arith.constant 0 : index
    %c0_44 = arith.constant 0 : index
    %104 = vector.load %arg13[%c0_43, %c0_44] : memref<64x128xf32, #tpu.memory_space<vmem>>, vector<64x128xf32>
    %c0_45 = arith.constant 0 : index
    %c0_46 = arith.constant 0 : index
    %105 = vector.load %arg14[%c0_45, %c0_46] : memref<1x128xf32, #tpu.memory_space<vmem>>, vector<1x128xf32>
    %c0_47 = arith.constant 0 : index
    %c0_48 = arith.constant 0 : index
    %106 = vector.load %arg15[%c0_47, %c0_48] : memref<128x256xf32, #tpu.memory_space<vmem>>, vector<128x256xf32>
    %c0_49 = arith.constant 0 : index
    %c0_50 = arith.constant 0 : index
    %107 = vector.load %arg16[%c0_49, %c0_50] : memref<1x256xf32, #tpu.memory_space<vmem>>, vector<1x256xf32>
    %c0_51 = arith.constant 0 : index
    %c0_52 = arith.constant 0 : index
    %108 = vector.load %arg17[%c0_51, %c0_52] : memref<256x128xf32, #tpu.memory_space<vmem>>, vector<256x128xf32>
    %c0_53 = arith.constant 0 : index
    %c0_54 = arith.constant 0 : index
    %109 = vector.load %arg18[%c0_53, %c0_54] : memref<1x128xf32, #tpu.memory_space<vmem>>, vector<1x128xf32>
    %cst_55 = arith.constant dense<0.000000e+00> : vector<8x128xf32>
    %110 = tpu.matmul %100, %104, %cst_55 {dimension_numbers = #tpu.dot_dimension_numbers<[1], [0], [0], [1], [0, 0, 1, 1], [], []>} : vector<8x64xf32>, vector<64x128xf32>, vector<8x128xf32> -> vector<8x128xf32>
    %111 = vector.broadcast %105 : vector<1x128xf32> to vector<8x128xf32>
    %112 = arith.addf %110, %111 : vector<8x128xf32>
    %cst_56 = arith.constant dense<0.000000e+00> : vector<8x256xf32>
    %113 = tpu.matmul %112, %106, %cst_56 {dimension_numbers = #tpu.dot_dimension_numbers<[1], [0], [0], [1], [0, 0, 1, 1], [], []>} : vector<8x128xf32>, vector<128x256xf32>, vector<8x256xf32> -> vector<8x256xf32>
    %114 = vector.broadcast %107 : vector<1x256xf32> to vector<8x256xf32>
    %115 = arith.addf %113, %114 : vector<8x256xf32>
    %cst_57 = arith.constant dense<0.000000e+00> : vector<8x128xf32>
    %116 = tpu.matmul %115, %108, %cst_57 {dimension_numbers = #tpu.dot_dimension_numbers<[1], [0], [0], [1], [0, 0, 1, 1], [], []>} : vector<8x256xf32>, vector<256x128xf32>, vector<8x128xf32> -> vector<8x128xf32>
    %117 = vector.broadcast %109 : vector<1x128xf32> to vector<8x128xf32>
    %118 = arith.addf %116, %117 : vector<8x128xf32>
    %c0_58 = arith.constant 0 : index
    %c0_59 = arith.constant 0 : index
    %c0_60 = arith.constant 0 : index
    %119 = vector.load %arg19[%c0_58, %c0_59, %c0_60] : memref<1x8x128xf32, #tpu.memory_space<vmem>>, vector<1x8x128xf32>
    %120 = vector.shape_cast %119 : vector<1x8x128xf32> to vector<8x128xf32>
    %121 = vector.shape_cast %118 : vector<8x128xf32> to vector<1x8x128xf32>
    tpu.vector_store %arg19[%c0_58, %c0_59, %c0_60], %121 {strides = array<i32>} : memref<1x8x128xf32, #tpu.memory_space<vmem>>, vector<1x8x128xf32>,
    %c43_i32 = arith.constant 43 : i32
    %122 = vector.broadcast %c43_i32 : i32 to vector<8x128xi32>
    %123 = arith.cmpi slt, %15, %122 : vector<8x128xi32>
    %cst_61 = arith.constant -1.000000e+30 : f32
    %124 = vector.broadcast %cst_61 : f32 to vector<8x128xf32>
    %125 = arith.select %123, %118, %124 : vector<8x128xi1>, vector<8x128xf32>
    %cst_62 = arith.constant dense<0xFF800000> : vector<8xf32>
    %126 = vector.multi_reduction <maximumf>, %125, %cst_62 [1] : vector<8x128xf32> to vector<8xf32>
    %127 = vector.shape_cast %126 : vector<8xf32> to vector<8x1xf32>
    %128 = vector.broadcast %127 : vector<8x1xf32> to vector<8x128xf32>
    %129 = arith.cmpf oeq, %125, %128 : vector<8x128xf32>
    %130 = arith.sitofp %15 : vector<8x128xi32> to vector<8x128xf32>
    %cst_63 = arith.constant 1.280000e+02 : f32
    %131 = vector.broadcast %cst_63 : f32 to vector<8x128xf32>
    %132 = arith.select %129, %130, %131 : vector<8x128xi1>, vector<8x128xf32>
    %cst_64 = arith.constant dense<0x7F800000> : vector<8xf32>
    %133 = vector.multi_reduction <minimumf>, %132, %cst_64 [1] : vector<8x128xf32> to vector<8xf32>
    %134 = vector.shape_cast %133 : vector<8xf32> to vector<8x1xf32>
    %135 = arith.fptosi %134 : vector<8x1xf32> to vector<8x1xi32>
    %c0_65 = arith.constant 0 : index
    %c0_66 = arith.constant 0 : index
    %136 = vector.load %arg22[%c0_65, %c0_66] : memref<8x1xi32, #tpu.memory_space<vmem>>, vector<8x1xi32>
    tpu.vector_store %arg22[%c0_65, %c0_66], %135 {strides = array<i32>} : memref<8x1xi32, #tpu.memory_space<vmem>>, vector<8x1xi32>,
    %c0_67 = arith.constant 0 : index
    %c0_68 = arith.constant 0 : index
    %c0_69 = arith.constant 0 : index
    %137 = vector.load %arg20[%c0_67, %c0_68, %c0_69] : memref<1x8x1xi32, #tpu.memory_space<vmem>>, vector<1x8x1xi32>
    %138 = vector.shape_cast %137 : vector<1x8x1xi32> to vector<8x1xi32>
    %139 = vector.shape_cast %135 : vector<8x1xi32> to vector<1x8x1xi32>
    tpu.vector_store %arg20[%c0_67, %c0_68, %c0_69], %139 {strides = array<i32>} : memref<1x8x1xi32, #tpu.memory_space<vmem>>, vector<1x8x1xi32>,
    return
  }
  func.func @transform_0(%arg0: i32, %arg1: memref<7xi32, #tpu.memory_space<smem>>) -> (i32, i32, i32) {
    %c0_i32 = arith.constant 0 : i32
    %c0_i32_0 = arith.constant 0 : i32
    %c0_i32_1 = arith.constant 0 : i32
    %c0_i32_2 = arith.constant 0 : i32
    return %c0_i32, %c0_i32_0, %c0_i32_1 : i32, i32, i32
  }
  func.func @transform_1(%arg0: i32, %arg1: memref<7xi32, #tpu.memory_space<smem>>) -> (i32, i32, i32) {
    %c0_i32 = arith.constant 0 : i32
    %c0_i32_0 = arith.constant 0 : i32
    %c0_i32_1 = arith.constant 0 : i32
    %c0_i32_2 = arith.constant 0 : i32
    return %c0_i32, %c0_i32_0, %c0_i32_1 : i32, i32, i32
  }
  func.func @transform_2(%arg0: i32, %arg1: memref<7xi32, #tpu.memory_space<smem>>) -> (i32, i32) {
    %c0_i32 = arith.constant 0 : i32
    %c0_i32_0 = arith.constant 0 : i32
    %c0_i32_1 = arith.constant 0 : i32
    return %c0_i32, %c0_i32_0 : i32, i32
  }
  func.func @transform_3(%arg0: i32, %arg1: memref<7xi32, #tpu.memory_space<smem>>) -> (i32, i32) {
    %c0_i32 = arith.constant 0 : i32
    %c0_i32_0 = arith.constant 0 : i32
    %c0_i32_1 = arith.constant 0 : i32
    return %c0_i32, %c0_i32_0 : i32, i32
  }
  func.func @transform_4(%arg0: i32, %arg1: memref<7xi32, #tpu.memory_space<smem>>) -> (i32, i32) {
    %c0_i32 = arith.constant 0 : i32
    %c0_i32_0 = arith.constant 0 : i32
    %c0_i32_1 = arith.constant 0 : i32
    return %c0_i32, %c0_i32_0 : i32, i32
  }
  func.func @transform_5(%arg0: i32, %arg1: memref<7xi32, #tpu.memory_space<smem>>) -> (i32, i32) {
    %c0_i32 = arith.constant 0 : i32
    %c0_i32_0 = arith.constant 0 : i32
    %c0_i32_1 = arith.constant 0 : i32
    return %c0_i32, %c0_i32_0 : i32, i32
  }
  func.func @transform_6(%arg0: i32, %arg1: memref<7xi32, #tpu.memory_space<smem>>) -> (i32, i32) {
    %c0_i32 = arith.constant 0 : i32
    %c0_i32_0 = arith.constant 0 : i32
    %c0_i32_1 = arith.constant 0 : i32
    return %c0_i32, %c0_i32_0 : i32, i32
  }
  func.func @transform_7(%arg0: i32, %arg1: memref<7xi32, #tpu.memory_space<smem>>) -> (i32, i32) {
    %c0_i32 = arith.constant 0 : i32
    %c0_i32_0 = arith.constant 0 : i32
    %c0_i32_1 = arith.constant 0 : i32
    return %c0_i32, %c0_i32_0 : i32, i32
  }
  func.func @transform_8(%arg0: i32, %arg1: memref<7xi32, #tpu.memory_space<smem>>) -> (i32, i32) {
    %c0_i32 = arith.constant 0 : i32
    %c0_i32_0 = arith.constant 0 : i32
    %c0_i32_1 = arith.constant 0 : i32
    return %c0_i32, %c0_i32_0 : i32, i32
  }
  func.func @transform_9(%arg0: i32, %arg1: memref<7xi32, #tpu.memory_space<smem>>) -> (i32, i32) {
    %c0_i32 = arith.constant 0 : i32
    %c0_i32_0 = arith.constant 0 : i32
    %c0_i32_1 = arith.constant 0 : i32
    return %c0_i32, %c0_i32_0 : i32, i32
  }
  func.func @transform_10(%arg0: i32, %arg1: memref<7xi32, #tpu.memory_space<smem>>) -> (i32, i32) {
    %c0_i32 = arith.constant 0 : i32
    %c0_i32_0 = arith.constant 0 : i32
    %c0_i32_1 = arith.constant 0 : i32
    return %c0_i32, %c0_i32_0 : i32, i32
  }
  func.func @transform_11(%arg0: i32, %arg1: memref<7xi32, #tpu.memory_space<smem>>) -> (i32, i32) {
    %c0_i32 = arith.constant 0 : i32
    %c0_i32_0 = arith.constant 0 : i32
    %c0_i32_1 = arith.constant 0 : i32
    return %c0_i32, %c0_i32_0 : i32, i32
  }
  func.func @transform_12(%arg0: i32, %arg1: memref<7xi32, #tpu.memory_space<smem>>) -> (i32, i32) {
    %c0_i32 = arith.constant 0 : i32
    %c0_i32_0 = arith.constant 0 : i32
    %c0_i32_1 = arith.constant 0 : i32
    return %c0_i32, %c0_i32_0 : i32, i32
  }
  func.func @transform_13(%arg0: i32, %arg1: memref<7xi32, #tpu.memory_space<smem>>) -> (i32, i32) {
    %c0_i32 = arith.constant 0 : i32
    %c0_i32_0 = arith.constant 0 : i32
    %c0_i32_1 = arith.constant 0 : i32
    return %c0_i32, %c0_i32_0 : i32, i32
  }
  func.func @transform_14(%arg0: i32, %arg1: memref<7xi32, #tpu.memory_space<smem>>) -> (i32, i32) {
    %c0_i32 = arith.constant 0 : i32
    %c0_i32_0 = arith.constant 0 : i32
    %c0_i32_1 = arith.constant 0 : i32
    return %c0_i32, %c0_i32_0 : i32, i32
  }
  func.func @transform_15(%arg0: i32, %arg1: memref<7xi32, #tpu.memory_space<smem>>) -> (i32, i32) {
    %c0_i32 = arith.constant 0 : i32
    %c0_i32_0 = arith.constant 0 : i32
    %c0_i32_1 = arith.constant 0 : i32
    return %c0_i32, %c0_i32_0 : i32, i32
  }
  func.func @transform_16(%arg0: i32, %arg1: memref<7xi32, #tpu.memory_space<smem>>) -> (i32, i32) {
    %c0_i32 = arith.constant 0 : i32
    %c0_i32_0 = arith.constant 0 : i32
    %c0_i32_1 = arith.constant 0 : i32
    return %c0_i32, %c0_i32_0 : i32, i32
  }
  func.func @transform_17(%arg0: i32, %arg1: memref<7xi32, #tpu.memory_space<smem>>) -> (i32, i32, i32) {
    %c0_i32 = arith.constant 0 : i32
    %c0_i32_0 = arith.constant 0 : i32
    %c0_i32_1 = arith.constant 0 : i32
    return %arg0, %c0_i32, %c0_i32_0 : i32, i32, i32
  }
  func.func @transform_18(%arg0: i32, %arg1: memref<7xi32, #tpu.memory_space<smem>>) -> (i32, i32, i32) {
    %c0_i32 = arith.constant 0 : i32
    %c0_i32_0 = arith.constant 0 : i32
    %c0_i32_1 = arith.constant 0 : i32
    return %arg0, %c0_i32, %c0_i32_0 : i32, i32, i32
  }
}

</mosaic_0001>

<llo_original>
// kernel: _forward_jit.2
$region0: #{_forward_jit.2}
  #allocation0 [shape = 'u32[]', space=smem, size = 0x4, offset = 0x4, fixed_abs, tag = 'smem constant byte address 0x4 - core index']
  #allocation1 [shape = 'u32[72,128]{1,0:T(1,128)}', space=vmem, size = 0x9000, scoped, tag = 'internal scratch']
  #allocation2 [shape = 'f32[16,8,64]{2,1,0:T(8,128)}', space=vmem, size = 0x10000, scoped, tag = 'scratch operand']
  #allocation3 [shape = 'f32[8,32]{1,0:T(8,128)}', space=vmem, size = 0x1000, scoped, tag = 'scratch operand']
  #allocation4 [shape = 'f32[8,32]{1,0:T(8,128)}', space=vmem, size = 0x1000, scoped, tag = 'scratch operand']
  %s0 = inlined_call_operand.vmem [shape: f32[8,8,64], index: 0, kind: input, shape index: {}]
  %s1 = inlined_call_operand.vmem [shape: f32[2,64,96], index: 1, kind: input, shape index: {}]
  %s2 = inlined_call_operand.vmem [shape: f32[2,32,96], index: 2, kind: input, shape index: {}]
  %s3 = inlined_call_operand.vmem [shape: f32[2,1,96], index: 3, kind: input, shape index: {}]
  %s4 = inlined_call_operand.vmem [shape: f32[2,1,96], index: 4, kind: input, shape index: {}]
  %s5 = inlined_call_operand.vmem [shape: f32[2,64,96], index: 5, kind: input, shape index: {}]
  %s6 = inlined_call_operand.hbm [shape: f32[2,32,96], index: 6, kind: input, shape index: {}]
  %s7 = inlined_call_operand.vmem [shape: f32[2,1,96], index: 7, kind: input, shape index: {}]
  %s8 = inlined_call_operand.vmem [shape: f32[2,1,96], index: 8, kind: input, shape index: {}]
  %s9 = inlined_call_operand.hbm [shape: f32[8,8,64], index: 9, kind: output, shape index: {0}]
  %s10 = inlined_call_operand.vmem [shape: f32[2,8,64], index: 10, kind: output, shape index: {1}]
  %11 = xla_tuple %s9, %s10
  %s12 = sld [smem:[#allocation0]]
  $region97: #{_forward_jit.2} parent=0
    _
  %s14 = ssub.s32 1, %s12
  %s15 = scalar_select 0, %s14, %s12
  $region1: #{_forward_jit.2} parent=0
    #allocation5 [shape = 'u8[32768]{0}', space=vmem, size = 0x8000, scoped, tag = 'input window, operand 6']
    #allocation6 [shape = 's32[2]{0}', space=sflag, size = 0x8, scoped, tag = 'scoped memory for _forward_jit.2']
    #allocation7 [shape = 's32[2]{0}', space=sflag, size = 0x8, scoped, tag = 'scoped memory for _forward_jit.2']
    #allocation8 [shape = 'u8[32768]{0}', space=vmem, size = 0x8000, scoped, tag = 'output window, operand 0, single buffered']
    %16 = vsyncpa [#allocation6], 0
    %s17 = scalar_lea.sflag [#allocation6], 1
    %18 = vsyncpa %s17, 0
    %19 = vsyncpa [#allocation7], 0
    loop: start=0, step=1, limit=18
    $region2: #{_forward_jit.2} parent=1 // loop_pre_header
      _
    $region3: #{_forward_jit.2} parent=1 // loop_header
      %s21 = sphi 0, %s25
      %p22 = scmp.ge.s32.totalorder %s21, 18
      %s28 = sphi 0, %s40
      %s29 = sphi 0, %s36
      %s30 = sphi 0, %s28
      %s31 = sphi 0, %s29
      %s32 = sphi 0, %s30
      %s33 = sphi 0, %s31
      %s41 = sphi 0, %s41
      %s43 = sphi 0, %s41
      %s44 = sphi 0, %s43
      %s58 = sphi 0, %s44
      %s64 = sphi 0, %s66
      %s67 = sphi 0, %s64
      %s68 = sphi 0, %s67
      %s84 = sphi 0, %s68
      %s90 = sphi 0, %s92
      %s93 = sphi 0, %s90
      %s94 = sphi 0, %s93
      %s110 = sphi 0, %s94
      %s116 = sphi 0, %s118
      %s119 = sphi 0, %s116
      %s120 = sphi 0, %s119
      %s136 = sphi 0, %s120
      %s142 = sphi 0, %s144
      %s145 = sphi 0, %s142
      %s146 = sphi 0, %s145
      %s162 = sphi 0, %s146
      %s168 = sphi 0, %s170
      %s171 = sphi 0, %s168
      %s172 = sphi 0, %s171
      %s188 = sphi 0, %s172
      %s194 = sphi 0, %s196
      %s197 = sphi 0, %s194
      %s198 = sphi 0, %s197
      %s214 = sphi 0, %s198
      %s220 = sphi 0, %s222
      %s223 = sphi 0, %s220
      %s224 = sphi 0, %s223
      %s240 = sphi 0, %s224
      %s246 = sphi 0, %s248
      %s249 = sphi 0, %s246
      %s250 = sphi 0, %s249
      %s266 = sphi 0, %s250
      %s270 = sphi 0, %s270
      %s272 = sphi 0, %s270
      %s273 = sphi 0, %s272
      %s287 = sphi 0, %s273
      %s293 = sphi 0, %s295
      %s296 = sphi 0, %s293
      %s297 = sphi 0, %s296
      %s313 = sphi 0, %s297
    $region4: #{_forward_jit.2} parent=1 // loop_header_branch
      %24 = sbr.rel (%p22) target = $region8
    $region5: #{_forward_jit.2} parent=1 // loop_body
      %s26 = ssub.s32 %s21, 1
      %s27 = ssub.s32 %s21, 2
      %s34 = sadd.s32 1, %s29
      %p35 = scmp.ge.s32.totalorder %s34, 8
      %s36 = scalar_select %p35, 0, %s34
      %s37 = sadd.s32 1, %s28
      %s38 = scalar_select %p35, %s37, %s28
      %p39 = scmp.ge.s32.totalorder %s38, 2
      %s40 = scalar_select %p39, 0, %s38
      %s42 = sadd.s32 %s41, 1
      %p45 = scmp.eq.s32.totalorder %s21, 15
      %p46 = scmp.ne.s32.totalorder %s41, %s43
      %p47 = scmp.eq.s32.totalorder %s21, 0
      %p48 = por %p46, %p47
      %p49 = scmp.ne.s32.totalorder %s41, %s43
      %p50 = scmp.eq.s32.totalorder %s26, 15
      %p51 = por %p49, %p50
      %p52 = scmp.ne.s32.totalorder %s43, %s44
      %p53 = scmp.eq.s32.totalorder %s26, 0
      %p54 = por %p52, %p53
      %p55 = scmp.ne.s32.totalorder %s43, %s44
      %p56 = scmp.eq.s32.totalorder %s27, 15
      %p57 = por %p55, %p56
      %p59 = scmp.ne.s32.totalorder %s44, %s58
      %p60 = scmp.eq.s32.totalorder %s27, 0
      %p61 = por %p59, %p60
      %s62 = ssub.s32 %s28, %s40
      %p63 = scmp.eq.s32.totalorder %s62, 0
      %s65 = sadd.s32 %s64, 1
      %s66 = scalar_select %p63, %s64, %s65
      %p69 = pneg %p63
      %p70 = scmp.eq.s32.totalorder %s21, 15
      %p71 = por %p69, %p70
      %p72 = scmp.ne.s32.totalorder %s64, %s67
      %p73 = scmp.eq.s32.totalorder %s21, 0
      %p74 = por %p72, %p73
      %p75 = scmp.ne.s32.totalorder %s64, %s67
      %p76 = scmp.eq.s32.totalorder %s26, 15
      %p77 = por %p75, %p76
      %p78 = scmp.ne.s32.totalorder %s67, %s68
      %p79 = scmp.eq.s32.totalorder %s26, 0
      %p80 = por %p78, %p79
      %p81 = scmp.ne.s32.totalorder %s67, %s68
      %p82 = scmp.eq.s32.totalorder %s27, 15
      %p83 = por %p81, %p82
      %p85 = scmp.ne.s32.totalorder %s68, %s84
      %p86 = scmp.eq.s32.totalorder %s27, 0
      %p87 = por %p85, %p86
      %s88 = ssub.s32 %s28, %s40
      %p89 = scmp.eq.s32.totalorder %s88, 0
      %s91 = sadd.s32 %s90, 1
      %s92 = scalar_select %p89, %s90, %s91
      %p95 = pneg %p89
      %p96 = scmp.eq.s32.totalorder %s21, 15
      %p97 = por %p95, %p96
      %p98 = scmp.ne.s32.totalorder %s90, %s93
      %p99 = scmp.eq.s32.totalorder %s21, 0
      %p100 = por %p98, %p99
      %p101 = scmp.ne.s32.totalorder %s90, %s93
      %p102 = scmp.eq.s32.totalorder %s26, 15
      %p103 = por %p101, %p102
      %p104 = scmp.ne.s32.totalorder %s93, %s94
      %p105 = scmp.eq.s32.totalorder %s26, 0
      %p106 = por %p104, %p105
      %p107 = scmp.ne.s32.totalorder %s93, %s94
      %p108 = scmp.eq.s32.totalorder %s27, 15
      %p109 = por %p107, %p108
      %p111 = scmp.ne.s32.totalorder %s94, %s110
      %p112 = scmp.eq.s32.totalorder %s27, 0
      %p113 = por %p111, %p112
      %s114 = ssub.s32 %s28, %s40
      %p115 = scmp.eq.s32.totalorder %s114, 0
      %s117 = sadd.s32 %s116, 1
      %s118 = scalar_select %p115, %s116, %s117
      %p121 = pneg %p115
      %p122 = scmp.eq.s32.totalorder %s21, 15
      %p123 = por %p121, %p122
      %p124 = scmp.ne.s32.totalorder %s116, %s119
      %p125 = scmp.eq.s32.totalorder %s21, 0
      %p126 = por %p124, %p125
      %p127 = scmp.ne.s32.totalorder %s116, %s119
      %p128 = scmp.eq.s32.totalorder %s26, 15
      %p129 = por %p127, %p128
      %p130 = scmp.ne.s32.totalorder %s119, %s120
      %p131 = scmp.eq.s32.totalorder %s26, 0
      %p132 = por %p130, %p131
      %p133 = scmp.ne.s32.totalorder %s119, %s120
      %p134 = scmp.eq.s32.totalorder %s27, 15
      %p135 = por %p133, %p134
      %p137 = scmp.ne.s32.totalorder %s120, %s136
      %p138 = scmp.eq.s32.totalorder %s27, 0
      %p139 = por %p137, %p138
      %s140 = ssub.s32 %s28, %s40
      %p141 = scmp.eq.s32.totalorder %s140, 0
      %s143 = sadd.s32 %s142, 1
      %s144 = scalar_select %p141, %s142, %s143
      %p147 = pneg %p141
      %p148 = scmp.eq.s32.totalorder %s21, 15
      %p149 = por %p147, %p148
      %p150 = scmp.ne.s32.totalorder %s142, %s145
      %p151 = scmp.eq.s32.totalorder %s21, 0
      %p152 = por %p150, %p151
      %p153 = scmp.ne.s32.totalorder %s142, %s145
      %p154 = scmp.eq.s32.totalorder %s26, 15
      %p155 = por %p153, %p154
      %p156 = scmp.ne.s32.totalorder %s145, %s146
      %p157 = scmp.eq.s32.totalorder %s26, 0
      %p158 = por %p156, %p157
      %p159 = scmp.ne.s32.totalorder %s145, %s146
      %p160 = scmp.eq.s32.totalorder %s27, 15
      %p161 = por %p159, %p160
      %p163 = scmp.ne.s32.totalorder %s146, %s162
      %p164 = scmp.eq.s32.totalorder %s27, 0
      %p165 = por %p163, %p164
      %s166 = ssub.s32 %s28, %s40
      %p167 = scmp.eq.s32.totalorder %s166, 0
      %s169 = sadd.s32 %s168, 1
      %s170 = scalar_select %p167, %s168, %s169
      %p173 = pneg %p167
      %p174 = scmp.eq.s32.totalorder %s21, 15
      %p175 = por %p173, %p174
      %p176 = scmp.ne.s32.totalorder %s168, %s171
      %p177 = scmp.eq.s32.totalorder %s21, 0
      %p178 = por %p176, %p177
      %p179 = scmp.ne.s32.totalorder %s168, %s171
      %p180 = scmp.eq.s32.totalorder %s26, 15
      %p181 = por %p179, %p180
      %p182 = scmp.ne.s32.totalorder %s171, %s172
      %p183 = scmp.eq.s32.totalorder %s26, 0
      %p184 = por %p182, %p183
      %p185 = scmp.ne.s32.totalorder %s171, %s172
      %p186 = scmp.eq.s32.totalorder %s27, 15
      %p187 = por %p185, %p186
      %p189 = scmp.ne.s32.totalorder %s172, %s188
      %p190 = scmp.eq.s32.totalorder %s27, 0
      %p191 = por %p189, %p190
      %s192 = ssub.s32 %s28, %s40
      %p193 = scmp.eq.s32.totalorder %s192, 0
      %s195 = sadd.s32 %s194, 1
      %s196 = scalar_select %p193, %s194, %s195
      %p199 = pneg %p193
      %p200 = scmp.eq.s32.totalorder %s21, 15
      %p201 = por %p199, %p200
      %p202 = scmp.ne.s32.totalorder %s194, %s197
      %p203 = scmp.eq.s32.totalorder %s21, 0
      %p204 = por %p202, %p203
      %p205 = scmp.ne.s32.totalorder %s194, %s197
      %p206 = scmp.eq.s32.totalorder %s26, 15
      %p207 = por %p205, %p206
      %p208 = scmp.ne.s32.totalorder %s197, %s198
      %p209 = scmp.eq.s32.totalorder %s26, 0
      %p210 = por %p208, %p209
      %p211 = scmp.ne.s32.totalorder %s197, %s198
      %p212 = scmp.eq.s32.totalorder %s27, 15
      %p213 = por %p211, %p212
      %p215 = scmp.ne.s32.totalorder %s198, %s214
      %p216 = scmp.eq.s32.totalorder %s27, 0
      %p217 = por %p215, %p216
      %s218 = ssub.s32 %s28, %s40
      %p219 = scmp.eq.s32.totalorder %s218, 0
      %s221 = sadd.s32 %s220, 1
      %s222 = scalar_select %p219, %s220, %s221
      %p225 = pneg %p219
      %p226 = scmp.eq.s32.totalorder %s21, 15
      %p227 = por %p225, %p226
      %p228 = scmp.ne.s32.totalorder %s220, %s223
      %p229 = scmp.eq.s32.totalorder %s21, 0
      %p230 = por %p228, %p229
      %p231 = scmp.ne.s32.totalorder %s220, %s223
      %p232 = scmp.eq.s32.totalorder %s26, 15
      %p233 = por %p231, %p232
      %p234 = scmp.ne.s32.totalorder %s223, %s224
      %p235 = scmp.eq.s32.totalorder %s26, 0
      %p236 = por %p234, %p235
      %p237 = scmp.ne.s32.totalorder %s223, %s224
      %p238 = scmp.eq.s32.totalorder %s27, 15
      %p239 = por %p237, %p238
      %p241 = scmp.ne.s32.totalorder %s224, %s240
      %p242 = scmp.eq.s32.totalorder %s27, 0
      %p243 = por %p241, %p242
      %s244 = ssub.s32 %s28, %s40
      %p245 = scmp.eq.s32.totalorder %s244, 0
      %s247 = sadd.s32 %s246, 1
      %s248 = scalar_select %p245, %s246, %s247
      %p251 = pneg %p245
      %p252 = scmp.eq.s32.totalorder %s21, 15
      %p253 = por %p251, %p252
      %p254 = scmp.ne.s32.totalorder %s246, %s249
      %p255 = scmp.eq.s32.totalorder %s21, 0
      %p256 = por %p254, %p255
      %p257 = scmp.ne.s32.totalorder %s246, %s249
      %p258 = scmp.eq.s32.totalorder %s26, 15
      %p259 = por %p257, %p258
      %p260 = scmp.ne.s32.totalorder %s249, %s250
      %p261 = scmp.eq.s32.totalorder %s26, 0
      %p262 = por %p260, %p261
      %p263 = scmp.ne.s32.totalorder %s249, %s250
      %p264 = scmp.eq.s32.totalorder %s27, 15
      %p265 = por %p263, %p264
      %p267 = scmp.ne.s32.totalorder %s250, %s266
      %p268 = scmp.eq.s32.totalorder %s27, 0
      %p269 = por %p267, %p268
      %s271 = sadd.s32 %s270, 1
      %p274 = scmp.eq.s32.totalorder %s21, 15
      %p275 = scmp.ne.s32.totalorder %s270, %s272
      %p276 = scmp.eq.s32.totalorder %s21, 0
      %p277 = por %p275, %p276
      %p278 = scmp.ne.s32.totalorder %s270, %s272
      %p279 = scmp.eq.s32.totalorder %s26, 15
      %p280 = por %p278, %p279
      %p281 = scmp.ne.s32.totalorder %s272, %s273
      %p282 = scmp.eq.s32.totalorder %s26, 0
      %p283 = por %p281, %p282
      %p284 = scmp.ne.s32.totalorder %s272, %s273
      %p285 = scmp.eq.s32.totalorder %s27, 15
      %p286 = por %p284, %p285
      %p288 = scmp.ne.s32.totalorder %s273, %s287
      %p289 = scmp.eq.s32.totalorder %s27, 0
      %p290 = por %p288, %p289
      %s291 = ssub.s32 %s28, %s40
      %p292 = scmp.eq.s32.totalorder %s291, 0
      %s294 = sadd.s32 %s293, 1
      %s295 = scalar_select %p292, %s293, %s294
      %p298 = pneg %p292
      %p299 = scmp.eq.s32.totalorder %s21, 15
      %p300 = por %p298, %p299
      %p301 = scmp.ne.s32.totalorder %s293, %s296
      %p302 = scmp.eq.s32.totalorder %s21, 0
      %p303 = por %p301, %p302
      %p304 = scmp.ne.s32.totalorder %s293, %s296
      %p305 = scmp.eq.s32.totalorder %s26, 15
      %p306 = por %p304, %p305
      %p307 = scmp.ne.s32.totalorder %s296, %s297
      %p308 = scmp.eq.s32.totalorder %s26, 0
      %p309 = por %p307, %p308
      %p310 = scmp.ne.s32.totalorder %s296, %s297
      %p311 = scmp.eq.s32.totalorder %s27, 15
      %p312 = por %p310, %p311
      %p314 = scmp.ne.s32.totalorder %s297, %s313
      %p315 = scmp.eq.s32.totalorder %s27, 0
      %p316 = por %p314, %p315
      %p317 = scmp.le.s32.totalorder 1, %s21
      %p318 = scmp.lt.s32.totalorder %s21, 17
      %p319 = pnand %p317, %p318
      %p320 = pneg %p319
      // Predicated region
      $region9: #{_forward_jit.2} parent=5 // pred_check
        _
      $region10: #{_forward_jit.2} parent=5 // pred_check_branch
        %322 = sbr.rel (%p319) target = $region12
      $region11: #{_forward_jit.2} parent=5 // pred_region
        %s323 = ssub.s32 %s21, 1
        // Predicated region
        $region13: #{_forward_jit.2} parent=11 // pred_check
          %p324 = pneg %p54
        $region14: #{_forward_jit.2} parent=11 // pred_check_branch
          %326 = sbr.rel (%p324) target = $region16
        $region15: #{_forward_jit.2} parent=11 // pred_region
          _
        $region16: #{_forward_jit.2} parent=11 // pred_fallthru
          _
      $region12: #{_forward_jit.2} parent=5 // pred_fallthru
        _
      %p327 = scmp.lt.s32.totalorder %s21, 16
      // Predicated region
      $region17: #{_forward_jit.2} parent=5 // pred_check
        %p328 = pneg %p327
      $region18: #{_forward_jit.2} parent=5 // pred_check_branch
        %330 = sbr.rel (%p328) target = $region20
      $region19: #{_forward_jit.2} parent=5 // pred_region
        // Predicated region
        $region21: #{_forward_jit.2} parent=19 // pred_check
          %p331 = pneg %p74
        $region22: #{_forward_jit.2} parent=19 // pred_check_branch
          %333 = sbr.rel (%p331) target = $region24
        $region23: #{_forward_jit.2} parent=19 // pred_region
          %p334 = scmp.lt.s32.totalorder %s28, 1
          %s335 = scalar_select %p334, %s28, 1
          %s336 = smul.addr %s335, 8
          %s337 = smul.addr %s336, 8
          %s338 = scalar_lea.vmem %s1, %s337
        $region24: #{_forward_jit.2} parent=19 // pred_fallthru
          _
        // Predicated region
        $region25: #{_forward_jit.2} parent=19 // pred_check
          %p339 = pneg %p100
        $region26: #{_forward_jit.2} parent=19 // pred_check_branch
          %341 = sbr.rel (%p339) target = $region28
        $region27: #{_forward_jit.2} parent=19 // pred_region
          %p342 = scmp.lt.s32.totalorder %s28, 1
          %s343 = scalar_select %p342, %s28, 1
          %s344 = smul.addr %s343, 4
          %s345 = smul.addr %s344, 8
          %s346 = scalar_lea.vmem %s2, %s345
        $region28: #{_forward_jit.2} parent=19 // pred_fallthru
          _
        // Predicated region
        $region29: #{_forward_jit.2} parent=19 // pred_check
          %p347 = pneg %p126
        $region30: #{_forward_jit.2} parent=19 // pred_check_branch
          %349 = sbr.rel (%p347) target = $region32
        $region31: #{_forward_jit.2} parent=19 // pred_region
          %p350 = scmp.lt.s32.totalorder %s28, 1
          %s351 = scalar_select %p350, %s28, 1
          %s352 = scalar_lea.vmem %s3, %s351
        $region32: #{_forward_jit.2} parent=19 // pred_fallthru
          _
        // Predicated region
        $region33: #{_forward_jit.2} parent=19 // pred_check
          %p353 = pneg %p152
        $region34: #{_forward_jit.2} parent=19 // pred_check_branch
          %355 = sbr.rel (%p353) target = $region36
        $region35: #{_forward_jit.2} parent=19 // pred_region
          %p356 = scmp.lt.s32.totalorder %s28, 1
          %s357 = scalar_select %p356, %s28, 1
          %s358 = scalar_lea.vmem %s4, %s357
        $region36: #{_forward_jit.2} parent=19 // pred_fallthru
          _
        // Predicated region
        $region37: #{_forward_jit.2} parent=19 // pred_check
          %p359 = pneg %p178
        $region38: #{_forward_jit.2} parent=19 // pred_check_branch
          %361 = sbr.rel (%p359) target = $region40
        $region39: #{_forward_jit.2} parent=19 // pred_region
          %p362 = scmp.lt.s32.totalorder %s28, 1
          %s363 = scalar_select %p362, %s28, 1
          %s364 = smul.addr %s363, 8
          %s365 = smul.addr %s364, 8
          %s366 = scalar_lea.vmem %s5, %s365
        $region40: #{_forward_jit.2} parent=19 // pred_fallthru
          _
        // Predicated region
        $region41: #{_forward_jit.2} parent=19 // pred_check
          %p367 = pneg %p204
        $region42: #{_forward_jit.2} parent=19 // pred_check_branch
          %369 = sbr.rel (%p367) target = $region44
        $region43: #{_forward_jit.2} parent=19 // pred_region
          %s370 = sand.u32 %s194, 1
          %s371 = scalar_lea.sflag [#allocation6], %s370
          %s372 = sand.u32 %s194, 1
          %s373 = smul.addr %s372, 32
          %s374 = scalar_lea.vmem [#allocation5], %s373
          %376 = vsyncadd %s371, 0
          %s377 = smul.addr %s28, 4
          %s378 = smul.addr %s377, 8
          %s379 = scalar_lea.hbm %s6, %s378
          %s380 = sshll.u32 %s379, 4
          %s381 = int_to_ptr.hbm [resolvable:$true] %s380
          %s382 = sshll.u32 %s374, 4
          %s383 = int_to_ptr.vmem [resolvable:$true] %s382
          %388 = dma.hbm_to_vmem [thread:$0]  %s381, 512, %s383, %s371, 128, 128, 8
        $region44: #{_forward_jit.2} parent=19 // pred_fallthru
          _
        // Predicated region
        $region45: #{_forward_jit.2} parent=19 // pred_check
          %p389 = pneg %p230
        $region46: #{_forward_jit.2} parent=19 // pred_check_branch
          %391 = sbr.rel (%p389) target = $region48
        $region47: #{_forward_jit.2} parent=19 // pred_region
          %p392 = scmp.lt.s32.totalorder %s28, 1
          %s393 = scalar_select %p392, %s28, 1
          %s394 = scalar_lea.vmem %s7, %s393
        $region48: #{_forward_jit.2} parent=19 // pred_fallthru
          _
        // Predicated region
        $region49: #{_forward_jit.2} parent=19 // pred_check
          %p395 = pneg %p256
        $region50: #{_forward_jit.2} parent=19 // pred_check_branch
          %397 = sbr.rel (%p395) target = $region52
        $region51: #{_forward_jit.2} parent=19 // pred_region
          %p398 = scmp.lt.s32.totalorder %s28, 1
          %s399 = scalar_select %p398, %s28, 1
          %s400 = scalar_lea.vmem %s8, %s399
        $region52: #{_forward_jit.2} parent=19 // pred_fallthru
          _
      $region20: #{_forward_jit.2} parent=5 // pred_fallthru
        _
      %p401 = scmp.le.s32.totalorder 1, %s21
      %p402 = scmp.lt.s32.totalorder %s21, 17
      %p403 = pnand %p401, %p402
      %p404 = pneg %p403
      // Predicated region
      $region53: #{_forward_jit.2} parent=5 // pred_check
        _
      $region54: #{_forward_jit.2} parent=5 // pred_check_branch
        %406 = sbr.rel (%p403) target = $region56
      $region55: #{_forward_jit.2} parent=5 // pred_region
        %s407 = ssub.s32 %s21, 1
        %s408 = sand.u32 %s197, 1
        %s409 = scalar_lea.sflag [#allocation6], %s408
        %s410 = sand.u32 %s197, 1
        %s411 = smul.addr %s410, 32
        %s412 = scalar_lea.vmem [#allocation5], %s411
        // Predicated region
        $region57: #{_forward_jit.2} parent=55 // pred_check
          %p413 = pneg %p210
        $region58: #{_forward_jit.2} parent=55 // pred_check_branch
          %415 = sbr.rel (%p413) target = $region60
        $region59: #{_forward_jit.2} parent=55 // pred_region
          %417 = dma.done %s409, 512
        $region60: #{_forward_jit.2} parent=55 // pred_fallthru
          _
        %p418 = pneg %p54
        %p419 = pneg %p51
        %p420 = scmp.lt.s32.totalorder %s30, 1
        %s421 = scalar_select %p420, %s30, 1
        %s422 = smul.addr %s421, 8
        %s423 = smul.addr %s422, 8
        %s424 = scalar_lea.vmem %s1, %s423
        %p425 = pneg %p80
        %p426 = pneg %p77
        %p427 = scmp.lt.s32.totalorder %s30, 1
        %s428 = scalar_select %p427, %s30, 1
        %s429 = smul.addr %s428, 4
        %s430 = smul.addr %s429, 8
        %s431 = scalar_lea.vmem %s2, %s430
        %p432 = pneg %p106
        %p433 = pneg %p103
        %p434 = scmp.lt.s32.totalorder %s30, 1
        %s435 = scalar_select %p434, %s30, 1
        %s436 = scalar_lea.vmem %s3, %s435
        %p437 = pneg %p132
        %p438 = pneg %p129
        %p439 = scmp.lt.s32.totalorder %s30, 1
        %s440 = scalar_select %p439, %s30, 1
        %s441 = scalar_lea.vmem %s4, %s440
        %p442 = pneg %p158
        %p443 = pneg %p155
        %p444 = scmp.lt.s32.totalorder %s30, 1
        %s445 = scalar_select %p444, %s30, 1
        %s446 = smul.addr %s445, 8
        %s447 = smul.addr %s446, 8
        %s448 = scalar_lea.vmem %s5, %s447
        %p449 = pneg %p184
        %p450 = pneg %p181
        %s451 = sand.u32 %s197, 1
        %s452 = scalar_lea.sflag [#allocation6], %s451
        %s453 = sand.u32 %s197, 1
        %s454 = smul.addr %s453, 32
        %s455 = scalar_lea.vmem [#allocation5], %s454
        %p456 = pneg %p210
        %p457 = pneg %p207
        %p458 = scmp.lt.s32.totalorder %s30, 1
        %s459 = scalar_select %p458, %s30, 1
        %s460 = scalar_lea.vmem %s7, %s459
        %p461 = pneg %p236
        %p462 = pneg %p233
        %p463 = scmp.lt.s32.totalorder %s30, 1
        %s464 = scalar_select %p463, %s30, 1
        %s465 = scalar_lea.vmem %s8, %s464
        %p466 = pneg %p262
        %p467 = pneg %p259
        %p468 = pneg %p283
        %p469 = pneg %p280
        %p470 = pneg %p309
        %p471 = pneg %p306
        %p472 = scmp.lt.s32.totalorder %s30, 1
        %s473 = scalar_select %p472, %s30, 1
        %s474 = smul.addr %s473, 8
        %s475 = scalar_lea.vmem %s10, %s474
        %p476 = scmp.lt.s32.totalorder %s30, 1
        %s477 = scalar_select %p476, %s30, 1
        %s478 = smul.addr %s477, 8
        %s479 = smul.addr %s478, 8
        %s480 = scalar_lea.vmem %s1, %s479
        %p481 = scmp.lt.s32.totalorder %s30, 1
        %s482 = scalar_select %p481, %s30, 1
        %s483 = smul.addr %s482, 4
        %s484 = smul.addr %s483, 8
        %s485 = scalar_lea.vmem %s2, %s484
        %p486 = scmp.lt.s32.totalorder %s30, 1
        %s487 = scalar_select %p486, %s30, 1
        %s488 = scalar_lea.vmem %s3, %s487
        %p489 = scmp.lt.s32.totalorder %s30, 1
        %s490 = scalar_select %p489, %s30, 1
        %s491 = scalar_lea.vmem %s4, %s490
        %p492 = scmp.lt.s32.totalorder %s30, 1
        %s493 = scalar_select %p492, %s30, 1
        %s494 = smul.addr %s493, 8
        %s495 = smul.addr %s494, 8
        %s496 = scalar_lea.vmem %s5, %s495
        %p497 = scmp.lt.s32.totalorder %s30, 1
        %s498 = scalar_select %p497, %s30, 1
        %s499 = scalar_lea.vmem %s7, %s498
        %p500 = scmp.lt.s32.totalorder %s30, 1
        %s501 = scalar_select %p500, %s30, 1
        %s502 = scalar_lea.vmem %s8, %s501
        %p503 = scmp.lt.s32.totalorder %s30, 1
        %s504 = scalar_select %p503, %s30, 1
        %s505 = smul.addr %s504, 8
        %s506 = scalar_lea.vmem %s10, %s505
        %p507 = scmp.eq.s32.totalorder %s30, 0
        %p508 = scmp.eq.s32.totalorder %s31, 0
        %p509 = pnand %p507, %p508
        %p510 = pneg %p509
        // Predicated region
        $region61: #{_forward_jit.2} parent=55 // pred_check
          _
        $region62: #{_forward_jit.2} parent=55 // pred_check_branch
          %512 = sbr.rel (%p509) target = $region64
        $region63: #{_forward_jit.2} parent=55 // pred_region
          %vm513 = vcmask 523264
          %514 = vst.msk [vmem:[#allocation2] sm:$0xff] %vm513, 0.0
          %515 = vst.msk [vmem:[#allocation2 + $0x8] sm:$0xff] %vm513, 0.0
          %516 = vst.msk [vmem:[#allocation2 + $0x10] sm:$0xff] %vm513, 0.0
          %517 = vst.msk [vmem:[#allocation2 + $0x18] sm:$0xff] %vm513, 0.0
          %518 = vst.msk [vmem:[#allocation2 + $0x20] sm:$0xff] %vm513, 0.0
          %519 = vst.msk [vmem:[#allocation2 + $0x28] sm:$0xff] %vm513, 0.0
          %520 = vst.msk [vmem:[#allocation2 + $0x30] sm:$0xff] %vm513, 0.0
          %521 = vst.msk [vmem:[#allocation2 + $0x38] sm:$0xff] %vm513, 0.0
          %522 = vst.msk [vmem:[#allocation2 + $0x40] sm:$0xff] %vm513, 0.0
          %523 = vst.msk [vmem:[#allocation2 + $0x48] sm:$0xff] %vm513, 0.0
          %524 = vst.msk [vmem:[#allocation2 + $0x50] sm:$0xff] %vm513, 0.0
          %525 = vst.msk [vmem:[#allocation2 + $0x58] sm:$0xff] %vm513, 0.0
          %526 = vst.msk [vmem:[#allocation2 + $0x60] sm:$0xff] %vm513, 0.0
          %527 = vst.msk [vmem:[#allocation2 + $0x68] sm:$0xff] %vm513, 0.0
          %528 = vst.msk [vmem:[#allocation2 + $0x70] sm:$0xff] %vm513, 0.0
          %529 = vst.msk [vmem:[#allocation2 + $0x78] sm:$0xff] %vm513, 0.0
          %v530 = vld [vmem:[%s0] sm:$0xff]
          %v531 = vld [vmem:[%s0 + $0x8] sm:$0xff]
          %v532 = vld [vmem:[%s0 + $0x10] sm:$0xff]
          %v533 = vld [vmem:[%s0 + $0x18] sm:$0xff]
          %v534 = vld [vmem:[%s0 + $0x20] sm:$0xff]
          %v535 = vld [vmem:[%s0 + $0x28] sm:$0xff]
          %v536 = vld [vmem:[%s0 + $0x30] sm:$0xff]
          %v537 = vld [vmem:[%s0 + $0x38] sm:$0xff]
          %s538 = scalar_lea.vmem [#allocation2], 64
          %539 = vst.msk [vmem:[%s538] sm:$0xff] %vm513, %v530
          %540 = vst.msk [vmem:[%s538 + $0x8] sm:$0xff] %vm513, %v531
          %541 = vst.msk [vmem:[%s538 + $0x10] sm:$0xff] %vm513, %v532
          %542 = vst.msk [vmem:[%s538 + $0x18] sm:$0xff] %vm513, %v533
          %543 = vst.msk [vmem:[%s538 + $0x20] sm:$0xff] %vm513, %v534
          %544 = vst.msk [vmem:[%s538 + $0x28] sm:$0xff] %vm513, %v535
          %545 = vst.msk [vmem:[%s538 + $0x30] sm:$0xff] %vm513, %v536
          %546 = vst.msk [vmem:[%s538 + $0x38] sm:$0xff] %vm513, %v537
        $region64: #{_forward_jit.2} parent=55 // pred_fallthru
          _
        // Predicated region
        $region65: #{_forward_jit.2} parent=55 // pred_check
          %p547 = pneg %p508
        $region66: #{_forward_jit.2} parent=55 // pred_check_branch
          %549 = sbr.rel (%p547) target = $region68
        $region67: #{_forward_jit.2} parent=55 // pred_region
          %vm550 = vcmask 261120
          %551 = vst.msk [vmem:[#allocation3] sm:$0xff] %vm550, 0.0
          %552 = vst.msk [vmem:[#allocation4] sm:$0xff] %vm550, 0.0
        $region68: #{_forward_jit.2} parent=55 // pred_fallthru
          _
        %s553 = sadd.s32 %s30, 1
        %p554 = scmp.lt.s32.totalorder %s553, 0
        %s555 = ssub.s32 0, %s553
        %s556 = scalar_select %p554, %s555, %s553
        %s557 = sand.u32 %s556, 1
        %s558 = ssub.s32 0, %s557
        %s559 = scalar_select %p554, %s558, %s557
        %p560 = scmp.ne.s32.totalorder %s559, 0
        %p561 = scmp.lt.s32.totalorder %s559, 0
        %p562 = pnand %p561, %p560
        %p563 = pneg %p562
        %s564 = sadd.s32 %s559, 2
        %s565 = scalar_select %p563, %s564, %s559
        %s566 = smul.u32 %s565, 8
        %p567 = scmp.lt.s32.totalorder %s30, 0
        %s568 = ssub.s32 0, %s30
        %s569 = scalar_select %p567, %s568, %s30
        %s570 = sand.u32 %s569, 1
        %s571 = ssub.s32 0, %s570
        %s572 = scalar_select %p567, %s571, %s570
        %p573 = scmp.ne.s32.totalorder %s572, 0
        %p574 = scmp.lt.s32.totalorder %s572, 0
        %p575 = pnand %p574, %p573
        %p576 = pneg %p575
        %s577 = sadd.s32 %s572, 2
        %s578 = scalar_select %p576, %s577, %s572
        %s579 = smul.u32 %s578, 8
        %s580 = sadd.s32 %s566, %s31
        %s581 = smul.u32 %s580, 8
        %s582 = scalar_lea.vmem [#allocation2], %s581
        %v583 = vld [vmem:[%s582] sm:$0xff]
        %s584 = ssub.s32 7, %s31
        %s585 = sadd.s32 %s566, %s584
        %s586 = smul.u32 %s585, 8
        %s587 = scalar_lea.vmem [#allocation2], %s586
        %v588 = vld [vmem:[%s587] sm:$0xff]
        %v589 = vld [vmem:[#allocation3] sm:$0xff]
        %v590 = vld [vmem:[%s480] sm:$0xff]
        %v591 = vld [vmem:[%s480 + $0x8] sm:$0xff]
        %v592 = vld [vmem:[%s480 + $0x10] sm:$0xff]
        %v593 = vld [vmem:[%s480 + $0x18] sm:$0xff]
        %v594 = vld [vmem:[%s480 + $0x20] sm:$0xff]
        %v595 = vld [vmem:[%s480 + $0x28] sm:$0xff]
        %v596 = vld [vmem:[%s480 + $0x30] sm:$0xff]
        %v597 = vld [vmem:[%s480 + $0x38] sm:$0xff]
        %v598 = vld [vmem:[%s485] sm:$0xff]
        %v599 = vld [vmem:[%s485 + $0x8] sm:$0xff]
        %v600 = vld [vmem:[%s485 + $0x10] sm:$0xff]
        %v601 = vld [vmem:[%s485 + $0x18] sm:$0xff]
        %v602 = vld [vmem:[%s488] sm:$0x1]
        %v603 = vld [vmem:[%s491] sm:$0x1]
        %v605 = vperm.slane %v602, 0
        %vm607 = vcmask 523264
        %v609 = vsel %vm607, %v583, 0
        %611 = vmatpush.msra.mxu0 0.0
        %612 = vmatpush.msra.mxu0 0.0
        %613 = vmatpush.msra.mxu0 0.0
        %614 = vmatpush.msra.mxu0 0.0
        %615 = vmatpush.msra.mxu0 0.0
        %616 = vmatpush.msra.mxu0 0.0
        %617 = vmatpush.msra.mxu0 0.0
        %618 = vmatpush.msra.mxu0 0.0
        %619 = vmatpush.msra.mxu0 %v597
        %620 = vmatpush.msra.mxu0 %v596
        %621 = vmatpush.msra.mxu0 %v595
        %622 = vmatpush.msra.mxu0 %v594
        %623 = vmatpush.msra.mxu0 %v593
        %624 = vmatpush.msra.mxu0 %v592
        %625 = vmatpush.msra.mxu0 %v591
        %626 = vmatpush.msra.mxu0 %v590
        %627 = vmatmul.f32.gmra.mxu0 %v609
        %v628 = vpop.f32.mrf.mxu0
        %v629 = vadd.f32 %v605, %v628
        %630 = vdwg.mxu0
        %v632 = vperm.slane %v603, 0
        %vm634 = vcmask 261120
        %v636 = vsel %vm634, %v589, 0
        %638 = vmatpush.msra.mxu0 0.0
        %639 = vmatpush.msra.mxu0 0.0
        %640 = vmatpush.msra.mxu0 0.0
        %641 = vmatpush.msra.mxu0 0.0
        %642 = vmatpush.msra.mxu0 0.0
        %643 = vmatpush.msra.mxu0 0.0
        %644 = vmatpush.msra.mxu0 0.0
        %645 = vmatpush.msra.mxu0 0.0
        %646 = vmatpush.msra.mxu0 0.0
        %647 = vmatpush.msra.mxu0 0.0
        %648 = vmatpush.msra.mxu0 0.0
        %649 = vmatpush.msra.mxu0 0.0
        %650 = vmatpush.msra.mxu0 %v601
        %651 = vmatpush.msra.mxu0 %v600
        %652 = vmatpush.msra.mxu0 %v599
        %653 = vmatpush.msra.mxu0 %v598
        %654 = vmatmul.f32.gmra.mxu0 %v636
        %v655 = vpop.f32.mrf.mxu0
        %v656 = vadd.f32 %v632, %v655
        %657 = vdwg.mxu0
        %v658 = vadd.f32 %v629, %v656
        %v659 = vxor.u32 %v658, 2147483648
        %v660 = vmul.f32 %v659, 1.442695
        %v661 = vpow.pop %v660
        %v662 = vadd.f32 %v661, 1.0
        %v663 = vrcp.pop %v662
        %v664 = vmul.f32 %v662, %v663
        %v665 = vsub.f32 1.0, %v664
        %v666 = vmul.f32 %v663, %v665
        %v667 = vadd.f32 %v663, %v666
        %vm668 = vweird.f32 %v662
        %vm669 = vweird.f32 %v663
        %vm670 = vmor %vm668, %vm669
        %v671 = vsel %vm670, %v663, %v667
        %v672 = vand.u32 2147483647, %v662
        %vm673 = vcmp.eq.f32.partialorder %v672, 8.507059e+37
        %v674 = vand.u32 %v662, 2147483648
        %v675 = vor.u32 1.1754944e-38, %v674
        %v676 = vsel %vm673, %v675, %v671
        %v677 = vmul.f32 1.0, %v676
        %679 = vrot.lane.b32.xlu0 %v656, 64
        %v680 = vpop.permute.xlu0 %679
        %v682 = vmul.f32 %v677, %v680
        %684 = vrot.lane.b32.xlu0 %v682, 64
        %v685 = vpop.permute.xlu0 %684
        %v687 = vadd.f32 %v629, %v685
        %v688 = vtanh.pop %v687
        %v689 = vsub.f32 1.0, %v677
        %691 = vrot.lane.b32.xlu0 %v688, 96
        %v692 = vpop.permute.xlu0 %691
        %v694 = vmul.f32 %v689, %v692
        %695 = vrot.lane.b32.xlu0 %v589, 32
        %v696 = vpop.permute.xlu0 %695
        %v698 = vmul.f32 %v677, %v696
        %v699 = vadd.f32 %v694, %v698
        %v700 = vld [vmem:[#allocation4] sm:$0xff]
        %v701 = vld [vmem:[%s496] sm:$0xff]
        %v702 = vld [vmem:[%s496 + $0x8] sm:$0xff]
        %v703 = vld [vmem:[%s496 + $0x10] sm:$0xff]
        %v704 = vld [vmem:[%s496 + $0x18] sm:$0xff]
        %v705 = vld [vmem:[%s496 + $0x20] sm:$0xff]
        %v706 = vld [vmem:[%s496 + $0x28] sm:$0xff]
        %v707 = vld [vmem:[%s496 + $0x30] sm:$0xff]
        %v708 = vld [vmem:[%s496 + $0x38] sm:$0xff]
        %v709 = vld [vmem:[%s412] sm:$0xff]
        %v710 = vld [vmem:[%s412 + $0x8] sm:$0xff]
        %v711 = vld [vmem:[%s412 + $0x10] sm:$0xff]
        %v712 = vld [vmem:[%s412 + $0x18] sm:$0xff]
        %v713 = vld [vmem:[%s499] sm:$0x1]
        %v714 = vld [vmem:[%s502] sm:$0x1]
        %v716 = vperm.slane %v713, 0
        %v719 = vsel %vm607, %v588, 0
        %721 = vmatpush.msra.mxu0 0.0
        %722 = vmatpush.msra.mxu0 0.0
        %723 = vmatpush.msra.mxu0 0.0
        %724 = vmatpush.msra.mxu0 0.0
        %725 = vmatpush.msra.mxu0 0.0
        %726 = vmatpush.msra.mxu0 0.0
        %727 = vmatpush.msra.mxu0 0.0
        %728 = vmatpush.msra.mxu0 0.0
        %729 = vmatpush.msra.mxu0 %v708
        %730 = vmatpush.msra.mxu0 %v707
        %731 = vmatpush.msra.mxu0 %v706
        %732 = vmatpush.msra.mxu0 %v705
        %733 = vmatpush.msra.mxu0 %v704
        %734 = vmatpush.msra.mxu0 %v703
        %735 = vmatpush.msra.mxu0 %v702
        %736 = vmatpush.msra.mxu0 %v701
        %737 = vmatmul.f32.gmra.mxu0 %v719
        %v738 = vpop.f32.mrf.mxu0
        %v739 = vadd.f32 %v716, %v738
        %740 = vdwg.mxu0
        %v742 = vperm.slane %v714, 0
        %v745 = vsel %vm634, %v700, 0
        %747 = vmatpush.msra.mxu0 0.0
        %748 = vmatpush.msra.mxu0 0.0
        %749 = vmatpush.msra.mxu0 0.0
        %750 = vmatpush.msra.mxu0 0.0
        %751 = vmatpush.msra.mxu0 0.0
        %752 = vmatpush.msra.mxu0 0.0
        %753 = vmatpush.msra.mxu0 0.0
        %754 = vmatpush.msra.mxu0 0.0
        %755 = vmatpush.msra.mxu0 0.0
        %756 = vmatpush.msra.mxu0 0.0
        %757 = vmatpush.msra.mxu0 0.0
        %758 = vmatpush.msra.mxu0 0.0
        %759 = vmatpush.msra.mxu0 %v712
        %760 = vmatpush.msra.mxu0 %v711
        %761 = vmatpush.msra.mxu0 %v710
        %762 = vmatpush.msra.mxu0 %v709
        %763 = vmatmul.f32.gmra.mxu0 %v745
        %v764 = vpop.f32.mrf.mxu0
        %v765 = vadd.f32 %v742, %v764
        %766 = vdwg.mxu0
        %v767 = vadd.f32 %v739, %v765
        %v768 = vxor.u32 %v767, 2147483648
        %v769 = vmul.f32 %v768, 1.442695
        %v770 = vpow.pop %v769
        %v771 = vadd.f32 %v770, 1.0
        %v772 = vrcp.pop %v771
        %v773 = vmul.f32 %v771, %v772
        %v774 = vsub.f32 1.0, %v773
        %v775 = vmul.f32 %v772, %v774
        %v776 = vadd.f32 %v772, %v775
        %vm777 = vweird.f32 %v771
        %vm778 = vweird.f32 %v772
        %vm779 = vmor %vm777, %vm778
        %v780 = vsel %vm779, %v772, %v776
        %v781 = vand.u32 2147483647, %v771
        %vm782 = vcmp.eq.f32.partialorder %v781, 8.507059e+37
        %v783 = vand.u32 %v771, 2147483648
        %v784 = vor.u32 1.1754944e-38, %v783
        %v785 = vsel %vm782, %v784, %v780
        %v786 = vmul.f32 1.0, %v785
        %788 = vrot.lane.b32.xlu0 %v765, 64
        %v789 = vpop.permute.xlu0 %788
        %v791 = vmul.f32 %v786, %v789
        %793 = vrot.lane.b32.xlu0 %v791, 64
        %v794 = vpop.permute.xlu0 %793
        %v796 = vadd.f32 %v739, %v794
        %v797 = vtanh.pop %v796
        %v798 = vsub.f32 1.0, %v786
        %800 = vrot.lane.b32.xlu0 %v797, 96
        %v801 = vpop.permute.xlu0 %800
        %v803 = vmul.f32 %v798, %v801
        %804 = vrot.lane.b32.xlu0 %v700, 32
        %v805 = vpop.permute.xlu0 %804
        %v807 = vmul.f32 %v786, %v805
        %v808 = vadd.f32 %v803, %v807
        %810 = vrot.lane.b32.xlu0 %v699, 96
        %v811 = vpop.permute.xlu0 %810
        %813 = vst.msk [vmem:[#allocation3] sm:$0xff] %vm634, %v811
        %815 = vrot.lane.b32.xlu0 %v808, 96
        %v816 = vpop.permute.xlu0 %815
        %818 = vst.msk [vmem:[#allocation4] sm:$0xff] %vm634, %v816
        %s819 = sadd.s32 %s579, %s31
        %s820 = smul.u32 %s819, 8
        %s821 = scalar_lea.vmem [#allocation2], %s820
        %822 = vst.msk [vmem:[%s821] sm:$0xff] %vm634, %v811
        %s823 = sadd.s32 %s579, %s584
        %s824 = smul.u32 %s823, 8
        %s825 = scalar_lea.vmem [#allocation2], %s824
        %vm826 = vcmask 523520
        %827 = vst.msk [vmem:[%s825] sm:$0xff] %vm826, %v808
        %p828 = scmp.eq.s32.totalorder %s31, 7
        // Predicated region
        $region69: #{_forward_jit.2} parent=55 // pred_check
          %p829 = pneg %p828
        $region70: #{_forward_jit.2} parent=55 // pred_check_branch
          %831 = sbr.rel (%p829) target = $region72
        $region71: #{_forward_jit.2} parent=55 // pred_region
          %832 = vst.msk [vmem:[%s506] sm:$0xff] %vm634, %v811
          %833 = vst.msk [vmem:[%s506] sm:$0xff] %vm826, %v808
        $region72: #{_forward_jit.2} parent=55 // pred_fallthru
          _
        %p834 = scmp.eq.s32.totalorder %s30, 1
        %p835 = pnand %p834, %p828
        %p836 = pneg %p835
        // Predicated region
        $region73: #{_forward_jit.2} parent=55 // pred_check
          _
        $region74: #{_forward_jit.2} parent=55 // pred_check_branch
          %838 = sbr.rel (%p835) target = $region76
        $region75: #{_forward_jit.2} parent=55 // pred_region
          %s839 = scalar_lea.vmem [#allocation2], 64
          %v840 = vld [vmem:[%s839] sm:$0xff]
          %v841 = vld [vmem:[%s839 + $0x8] sm:$0xff]
          %v842 = vld [vmem:[%s839 + $0x10] sm:$0xff]
          %v843 = vld [vmem:[%s839 + $0x18] sm:$0xff]
          %v844 = vld [vmem:[%s839 + $0x20] sm:$0xff]
          %v845 = vld [vmem:[%s839 + $0x28] sm:$0xff]
          %v846 = vld [vmem:[%s839 + $0x30] sm:$0xff]
          %v847 = vld [vmem:[%s839 + $0x38] sm:$0xff]
          %848 = vst.msk [vmem:[#allocation8] sm:$0xff] %vm607, %v840
          %849 = vst.msk [vmem:[#allocation8 + $0x8] sm:$0xff] %vm607, %v841
          %850 = vst.msk [vmem:[#allocation8 + $0x10] sm:$0xff] %vm607, %v842
          %851 = vst.msk [vmem:[#allocation8 + $0x18] sm:$0xff] %vm607, %v843
          %852 = vst.msk [vmem:[#allocation8 + $0x20] sm:$0xff] %vm607, %v844
          %853 = vst.msk [vmem:[#allocation8 + $0x28] sm:$0xff] %vm607, %v845
          %854 = vst.msk [vmem:[#allocation8 + $0x30] sm:$0xff] %vm607, %v846
          %855 = vst.msk [vmem:[#allocation8 + $0x38] sm:$0xff] %vm607, %v847
        $region76: #{_forward_jit.2} parent=55 // pred_fallthru
          _
        %p856 = scmp.lt.s32.totalorder %s30, 1
        %s857 = scalar_select %p856, %s30, 1
        %s858 = smul.addr %s857, 8
        %s859 = scalar_lea.vmem %s10, %s858
        // Predicated region
        $region77: #{_forward_jit.2} parent=55 // pred_check
          %p860 = pneg %p280
        $region78: #{_forward_jit.2} parent=55 // pred_check_branch
          %862 = sbr.rel (%p860) target = $region80
        $region79: #{_forward_jit.2} parent=55 // pred_region
          %864 = vsyncadd [#allocation7], 0
          %s865 = sshll.u32 [#allocation8], 4
          %s866 = int_to_ptr.vmem [resolvable:$true] %s865
          %s867 = sshll.u32 %s9, 4
          %s868 = int_to_ptr.hbm [resolvable:$true] %s867
          %873 = dma.vmem_to_hbm [thread:$0]  %s866, 1024, %s868, [#allocation7], 128, 128, 8
        $region80: #{_forward_jit.2} parent=55 // pred_fallthru
          _
        // Predicated region
        $region81: #{_forward_jit.2} parent=55 // pred_check
          %p874 = pneg %p306
        $region82: #{_forward_jit.2} parent=55 // pred_check_branch
          %876 = sbr.rel (%p874) target = $region84
        $region83: #{_forward_jit.2} parent=55 // pred_region
          _
        $region84: #{_forward_jit.2} parent=55 // pred_fallthru
          _
        // Predicated region
        $region85: #{_forward_jit.2} parent=55 // pred_check
          %p877 = pneg %p280
        $region86: #{_forward_jit.2} parent=55 // pred_check_branch
          %879 = sbr.rel (%p877) target = $region88
        $region87: #{_forward_jit.2} parent=55 // pred_region
          %881 = dma.done [#allocation7], 1024
        $region88: #{_forward_jit.2} parent=55 // pred_fallthru
          _
      $region56: #{_forward_jit.2} parent=5 // pred_fallthru
        _
      %p882 = scmp.le.s32.totalorder 2, %s21
      // Predicated region
      $region89: #{_forward_jit.2} parent=5 // pred_check
        %p883 = pneg %p882
      $region90: #{_forward_jit.2} parent=5 // pred_check_branch
        %885 = sbr.rel (%p883) target = $region92
      $region91: #{_forward_jit.2} parent=5 // pred_region
        %s886 = ssub.s32 %s21, 2
        // Predicated region
        $region93: #{_forward_jit.2} parent=91 // pred_check
          %p887 = pneg %p312
        $region94: #{_forward_jit.2} parent=91 // pred_check_branch
          %889 = sbr.rel (%p887) target = $region96
        $region95: #{_forward_jit.2} parent=91 // pred_region
          %p890 = scmp.lt.s32.totalorder %s32, 1
          %s891 = scalar_select %p890, %s32, 1
          %s892 = smul.addr %s891, 8
          %s893 = scalar_lea.vmem %s10, %s892
        $region96: #{_forward_jit.2} parent=91 // pred_fallthru
          _
      $region92: #{_forward_jit.2} parent=5 // pred_fallthru
        _
    $region6: #{_forward_jit.2} parent=1 // loop_footer
      %s25 = sadd.s32 1, %s21
    $region7: #{_forward_jit.2} parent=1 // loop_footer_branch
      %20 = sbr.rel target = $region3
    $region8: #{_forward_jit.2} parent=1 // loop_exit
      _
    %894 = vsyncpa [#allocation6], 1
    %s895 = scalar_lea.sflag [#allocation6], 1
    %896 = vsyncpa %s895, 1
    %897 = vsyncpa [#allocation7], 1
    %s898 = scalar_lea.sflag [#allocation7], 1
    %899 = vsyncpa %s898, 1

// kernel: _forward_jit.3
$region0: #{_forward_jit.3}
  #allocation0 [shape = 'u32[]', space=smem, size = 0x4, offset = 0x4, fixed_abs, tag = 'smem constant byte address 0x4 - core index']
  #allocation1 [shape = 'u32[72,128]{1,0:T(1,128)}', space=vmem, size = 0x9000, scoped, tag = 'internal scratch']
  #allocation2 [shape = 'f32[2,8,64]{2,1,0:T(8,128)}', space=vmem, size = 0x2000, scoped, tag = 'scratch operand']
  #allocation3 [shape = 's32[8,1]{1,0:T(8,128)}', space=vmem, size = 0x1000, scoped, tag = 'scratch operand']
  #allocation4 [shape = 's32[1]{0}', space=sflag, size = 0x4, scoped, tag = 'scoped memory for _forward_jit.3']
  #allocation5 [shape = 'u8[512]{0}', space=smem, size = 0x200, scoped, tag = 'prefetched SMEM operand 0']
  %s0 = inlined_call_operand.vmem [shape: s32[7], index: 0, kind: input, shape index: {}]
  %s1 = inlined_call_operand.vmem [shape: s32[8,8,1], index: 1, kind: input, shape index: {}]
  %s2 = inlined_call_operand.vmem [shape: f32[2,8,64], index: 2, kind: input, shape index: {}]
  %s3 = inlined_call_operand.vmem [shape: f32[128,32], index: 3, kind: input, shape index: {}]
  %s4 = inlined_call_operand.hbm [shape: f32[32,192], index: 4, kind: input, shape index: {}]
  %s5 = inlined_call_operand.vmem [shape: f32[64,192], index: 5, kind: input, shape index: {}]
  %s6 = inlined_call_operand.vmem [shape: f32[1,192], index: 6, kind: input, shape index: {}]
  %s7 = inlined_call_operand.vmem [shape: f32[1,192], index: 7, kind: input, shape index: {}]
  %s8 = inlined_call_operand.vmem [shape: f32[64,192], index: 8, kind: input, shape index: {}]
  %s9 = inlined_call_operand.hbm [shape: f32[64,192], index: 9, kind: input, shape index: {}]
  %s10 = inlined_call_operand.vmem [shape: f32[1,192], index: 10, kind: input, shape index: {}]
  %s11 = inlined_call_operand.vmem [shape: f32[1,192], index: 11, kind: input, shape index: {}]
  %s12 = inlined_call_operand.hbm [shape: f32[64,128], index: 12, kind: input, shape index: {}]
  %s13 = inlined_call_operand.vmem [shape: f32[1,128], index: 13, kind: input, shape index: {}]
  %s14 = inlined_call_operand.vmem [shape: f32[128,256], index: 14, kind: input, shape index: {}]
  %s15 = inlined_call_operand.vmem [shape: f32[1,256], index: 15, kind: input, shape index: {}]
  %s16 = inlined_call_operand.vmem [shape: f32[256,128], index: 16, kind: input, shape index: {}]
  %s17 = inlined_call_operand.vmem [shape: f32[1,128], index: 17, kind: input, shape index: {}]
  %s18 = inlined_call_operand.vmem [shape: f32[7,8,128], index: 18, kind: output, shape index: {0}]
  %s19 = inlined_call_operand.vmem [shape: s32[7,8,1], index: 19, kind: output, shape index: {1}]
  %20 = xla_tuple %s18, %s19
  %s21 = sld [smem:[#allocation0]]
  $region125: #{_forward_jit.3} parent=0
    _
  %s23 = ssub.s32 1, %s21
  %s24 = scalar_select 0, %s23, %s21
  %s26 = sshll.u32 %s0, 4
  %s27 = int_to_ptr.vmem [resolvable:$true] %s26
  %29 = dma.vmem_to_smem %s27, 16, [#allocation5], [#allocation4]
  %31 = dma.done [#allocation4], 16
  %32 = sfence
  $region1: #{_forward_jit.3} parent=0
    #allocation6 [shape = 'u8[32768]{0}', space=vmem, size = 0x8000, scoped, tag = 'input window, operand 4, single buffered']
    #allocation7 [shape = 's32[2]{0}', space=sflag, size = 0x8, scoped, tag = 'scoped memory for _forward_jit.3']
    #allocation8 [shape = 'u8[65536]{0}', space=vmem, size = 0x10000, scoped, tag = 'input window, operand 9, single buffered']
    #allocation9 [shape = 's32[1]{0}', space=sflag, size = 0x4, scoped, tag = 'scoped memory for _forward_jit.3']
    #allocation10 [shape = 'u8[32768]{0}', space=vmem, size = 0x8000, scoped, tag = 'input window, operand 12, single buffered']
    %33 = vsyncpa [#allocation7], 0
    %34 = vsyncpa [#allocation9], 0
    loop: start=0, step=1, limit=9
    $region2: #{_forward_jit.3} parent=1 // loop_pre_header
      _
    $region3: #{_forward_jit.3} parent=1 // loop_header
      %s36 = sphi 0, %s40
      %p37 = scmp.ge.s32.totalorder %s36, 9
      %s44 = sphi 0, %s44
      %s46 = sphi 0, %s44
      %s47 = sphi 0, %s46
      %s61 = sphi 0, %s47
      %s65 = sphi 0, %s65
      %s67 = sphi 0, %s65
      %s68 = sphi 0, %s67
      %s82 = sphi 0, %s68
      %s86 = sphi 0, %s86
      %s88 = sphi 0, %s86
      %s89 = sphi 0, %s88
      %s103 = sphi 0, %s89
      %s107 = sphi 0, %s107
      %s109 = sphi 0, %s107
      %s110 = sphi 0, %s109
      %s124 = sphi 0, %s110
      %s128 = sphi 0, %s128
      %s130 = sphi 0, %s128
      %s131 = sphi 0, %s130
      %s145 = sphi 0, %s131
      %s149 = sphi 0, %s149
      %s151 = sphi 0, %s149
      %s152 = sphi 0, %s151
      %s166 = sphi 0, %s152
      %s170 = sphi 0, %s170
      %s172 = sphi 0, %s170
      %s173 = sphi 0, %s172
      %s187 = sphi 0, %s173
      %s191 = sphi 0, %s191
      %s193 = sphi 0, %s191
      %s194 = sphi 0, %s193
      %s208 = sphi 0, %s194
      %s212 = sphi 0, %s212
      %s214 = sphi 0, %s212
      %s215 = sphi 0, %s214
      %s229 = sphi 0, %s215
      %s233 = sphi 0, %s233
      %s235 = sphi 0, %s233
      %s236 = sphi 0, %s235
      %s250 = sphi 0, %s236
      %s254 = sphi 0, %s254
      %s256 = sphi 0, %s254
      %s257 = sphi 0, %s256
      %s271 = sphi 0, %s257
      %s275 = sphi 0, %s275
      %s277 = sphi 0, %s275
      %s278 = sphi 0, %s277
      %s292 = sphi 0, %s278
      %s296 = sphi 0, %s296
      %s298 = sphi 0, %s296
      %s299 = sphi 0, %s298
      %s313 = sphi 0, %s299
      %s317 = sphi 0, %s317
      %s319 = sphi 0, %s317
      %s320 = sphi 0, %s319
      %s334 = sphi 0, %s320
      %s338 = sphi 0, %s338
      %s340 = sphi 0, %s338
      %s341 = sphi 0, %s340
      %s355 = sphi 0, %s341
      %s359 = sphi 0, %s359
      %s361 = sphi 0, %s359
      %s362 = sphi 0, %s361
      %s376 = sphi 0, %s362
      %s380 = sphi 0, %s380
      %s382 = sphi 0, %s380
      %s383 = sphi 0, %s382
      %s397 = sphi 0, %s383
      %s403 = sphi 0, %s405
      %s406 = sphi 0, %s403
      %s407 = sphi 0, %s406
      %s423 = sphi 0, %s407
      %s429 = sphi 0, %s431
      %s432 = sphi 0, %s429
      %s433 = sphi 0, %s432
      %s449 = sphi 0, %s433
    $region4: #{_forward_jit.3} parent=1 // loop_header_branch
      %39 = sbr.rel (%p37) target = $region8
    $region5: #{_forward_jit.3} parent=1 // loop_body
      %s41 = ssub.s32 %s36, 1
      %s42 = ssub.s32 %s36, 2
      %s43 = sadd.s32 %s36, 1
      %s45 = sadd.s32 %s44, 1
      %p48 = scmp.eq.s32.totalorder %s36, 6
      %p49 = scmp.ne.s32.totalorder %s44, %s46
      %p50 = scmp.eq.s32.totalorder %s36, 0
      %p51 = por %p49, %p50
      %p52 = scmp.ne.s32.totalorder %s44, %s46
      %p53 = scmp.eq.s32.totalorder %s41, 6
      %p54 = por %p52, %p53
      %p55 = scmp.ne.s32.totalorder %s46, %s47
      %p56 = scmp.eq.s32.totalorder %s41, 0
      %p57 = por %p55, %p56
      %p58 = scmp.ne.s32.totalorder %s46, %s47
      %p59 = scmp.eq.s32.totalorder %s42, 6
      %p60 = por %p58, %p59
      %p62 = scmp.ne.s32.totalorder %s47, %s61
      %p63 = scmp.eq.s32.totalorder %s42, 0
      %p64 = por %p62, %p63
      %s66 = sadd.s32 %s65, 1
      %p69 = scmp.eq.s32.totalorder %s36, 6
      %p70 = scmp.ne.s32.totalorder %s65, %s67
      %p71 = scmp.eq.s32.totalorder %s36, 0
      %p72 = por %p70, %p71
      %p73 = scmp.ne.s32.totalorder %s65, %s67
      %p74 = scmp.eq.s32.totalorder %s41, 6
      %p75 = por %p73, %p74
      %p76 = scmp.ne.s32.totalorder %s67, %s68
      %p77 = scmp.eq.s32.totalorder %s41, 0
      %p78 = por %p76, %p77
      %p79 = scmp.ne.s32.totalorder %s67, %s68
      %p80 = scmp.eq.s32.totalorder %s42, 6
      %p81 = por %p79, %p80
      %p83 = scmp.ne.s32.totalorder %s68, %s82
      %p84 = scmp.eq.s32.totalorder %s42, 0
      %p85 = por %p83, %p84
      %s87 = sadd.s32 %s86, 1
      %p90 = scmp.eq.s32.totalorder %s36, 6
      %p91 = scmp.ne.s32.totalorder %s86, %s88
      %p92 = scmp.eq.s32.totalorder %s36, 0
      %p93 = por %p91, %p92
      %p94 = scmp.ne.s32.totalorder %s86, %s88
      %p95 = scmp.eq.s32.totalorder %s41, 6
      %p96 = por %p94, %p95
      %p97 = scmp.ne.s32.totalorder %s88, %s89
      %p98 = scmp.eq.s32.totalorder %s41, 0
      %p99 = por %p97, %p98
      %p100 = scmp.ne.s32.totalorder %s88, %s89
      %p101 = scmp.eq.s32.totalorder %s42, 6
      %p102 = por %p100, %p101
      %p104 = scmp.ne.s32.totalorder %s89, %s103
      %p105 = scmp.eq.s32.totalorder %s42, 0
      %p106 = por %p104, %p105
      %s108 = sadd.s32 %s107, 1
      %p111 = scmp.eq.s32.totalorder %s36, 6
      %p112 = scmp.ne.s32.totalorder %s107, %s109
      %p113 = scmp.eq.s32.totalorder %s36, 0
      %p114 = por %p112, %p113
      %p115 = scmp.ne.s32.totalorder %s107, %s109
      %p116 = scmp.eq.s32.totalorder %s41, 6
      %p117 = por %p115, %p116
      %p118 = scmp.ne.s32.totalorder %s109, %s110
      %p119 = scmp.eq.s32.totalorder %s41, 0
      %p120 = por %p118, %p119
      %p121 = scmp.ne.s32.totalorder %s109, %s110
      %p122 = scmp.eq.s32.totalorder %s42, 6
      %p123 = por %p121, %p122
      %p125 = scmp.ne.s32.totalorder %s110, %s124
      %p126 = scmp.eq.s32.totalorder %s42, 0
      %p127 = por %p125, %p126
      %s129 = sadd.s32 %s128, 1
      %p132 = scmp.eq.s32.totalorder %s36, 6
      %p133 = scmp.ne.s32.totalorder %s128, %s130
      %p134 = scmp.eq.s32.totalorder %s36, 0
      %p135 = por %p133, %p134
      %p136 = scmp.ne.s32.totalorder %s128, %s130
      %p137 = scmp.eq.s32.totalorder %s41, 6
      %p138 = por %p136, %p137
      %p139 = scmp.ne.s32.totalorder %s130, %s131
      %p140 = scmp.eq.s32.totalorder %s41, 0
      %p141 = por %p139, %p140
      %p142 = scmp.ne.s32.totalorder %s130, %s131
      %p143 = scmp.eq.s32.totalorder %s42, 6
      %p144 = por %p142, %p143
      %p146 = scmp.ne.s32.totalorder %s131, %s145
      %p147 = scmp.eq.s32.totalorder %s42, 0
      %p148 = por %p146, %p147
      %s150 = sadd.s32 %s149, 1
      %p153 = scmp.eq.s32.totalorder %s36, 6
      %p154 = scmp.ne.s32.totalorder %s149, %s151
      %p155 = scmp.eq.s32.totalorder %s36, 0
      %p156 = por %p154, %p155
      %p157 = scmp.ne.s32.totalorder %s149, %s151
      %p158 = scmp.eq.s32.totalorder %s41, 6
      %p159 = por %p157, %p158
      %p160 = scmp.ne.s32.totalorder %s151, %s152
      %p161 = scmp.eq.s32.totalorder %s41, 0
      %p162 = por %p160, %p161
      %p163 = scmp.ne.s32.totalorder %s151, %s152
      %p164 = scmp.eq.s32.totalorder %s42, 6
      %p165 = por %p163, %p164
      %p167 = scmp.ne.s32.totalorder %s152, %s166
      %p168 = scmp.eq.s32.totalorder %s42, 0
      %p169 = por %p167, %p168
      %s171 = sadd.s32 %s170, 1
      %p174 = scmp.eq.s32.totalorder %s36, 6
      %p175 = scmp.ne.s32.totalorder %s170, %s172
      %p176 = scmp.eq.s32.totalorder %s36, 0
      %p177 = por %p175, %p176
      %p178 = scmp.ne.s32.totalorder %s170, %s172
      %p179 = scmp.eq.s32.totalorder %s41, 6
      %p180 = por %p178, %p179
      %p181 = scmp.ne.s32.totalorder %s172, %s173
      %p182 = scmp.eq.s32.totalorder %s41, 0
      %p183 = por %p181, %p182
      %p184 = scmp.ne.s32.totalorder %s172, %s173
      %p185 = scmp.eq.s32.totalorder %s42, 6
      %p186 = por %p184, %p185
      %p188 = scmp.ne.s32.totalorder %s173, %s187
      %p189 = scmp.eq.s32.totalorder %s42, 0
      %p190 = por %p188, %p189
      %s192 = sadd.s32 %s191, 1
      %p195 = scmp.eq.s32.totalorder %s36, 6
      %p196 = scmp.ne.s32.totalorder %s191, %s193
      %p197 = scmp.eq.s32.totalorder %s36, 0
      %p198 = por %p196, %p197
      %p199 = scmp.ne.s32.totalorder %s191, %s193
      %p200 = scmp.eq.s32.totalorder %s41, 6
      %p201 = por %p199, %p200
      %p202 = scmp.ne.s32.totalorder %s193, %s194
      %p203 = scmp.eq.s32.totalorder %s41, 0
      %p204 = por %p202, %p203
      %p205 = scmp.ne.s32.totalorder %s193, %s194
      %p206 = scmp.eq.s32.totalorder %s42, 6
      %p207 = por %p205, %p206
      %p209 = scmp.ne.s32.totalorder %s194, %s208
      %p210 = scmp.eq.s32.totalorder %s42, 0
      %p211 = por %p209, %p210
      %s213 = sadd.s32 %s212, 1
      %p216 = scmp.eq.s32.totalorder %s36, 6
      %p217 = scmp.ne.s32.totalorder %s212, %s214
      %p218 = scmp.eq.s32.totalorder %s36, 0
      %p219 = por %p217, %p218
      %p220 = scmp.ne.s32.totalorder %s212, %s214
      %p221 = scmp.eq.s32.totalorder %s41, 6
      %p222 = por %p220, %p221
      %p223 = scmp.ne.s32.totalorder %s214, %s215
      %p224 = scmp.eq.s32.totalorder %s41, 0
      %p225 = por %p223, %p224
      %p226 = scmp.ne.s32.totalorder %s214, %s215
      %p227 = scmp.eq.s32.totalorder %s42, 6
      %p228 = por %p226, %p227
      %p230 = scmp.ne.s32.totalorder %s215, %s229
      %p231 = scmp.eq.s32.totalorder %s42, 0
      %p232 = por %p230, %p231
      %s234 = sadd.s32 %s233, 1
      %p237 = scmp.eq.s32.totalorder %s36, 6
      %p238 = scmp.ne.s32.totalorder %s233, %s235
      %p239 = scmp.eq.s32.totalorder %s36, 0
      %p240 = por %p238, %p239
      %p241 = scmp.ne.s32.totalorder %s233, %s235
      %p242 = scmp.eq.s32.totalorder %s41, 6
      %p243 = por %p241, %p242
      %p244 = scmp.ne.s32.totalorder %s235, %s236
      %p245 = scmp.eq.s32.totalorder %s41, 0
      %p246 = por %p244, %p245
      %p247 = scmp.ne.s32.totalorder %s235, %s236
      %p248 = scmp.eq.s32.totalorder %s42, 6
      %p249 = por %p247, %p248
      %p251 = scmp.ne.s32.totalorder %s236, %s250
      %p252 = scmp.eq.s32.totalorder %s42, 0
      %p253 = por %p251, %p252
      %s255 = sadd.s32 %s254, 1
      %p258 = scmp.eq.s32.totalorder %s36, 6
      %p259 = scmp.ne.s32.totalorder %s254, %s256
      %p260 = scmp.eq.s32.totalorder %s36, 0
      %p261 = por %p259, %p260
      %p262 = scmp.ne.s32.totalorder %s254, %s256
      %p263 = scmp.eq.s32.totalorder %s41, 6
      %p264 = por %p262, %p263
      %p265 = scmp.ne.s32.totalorder %s256, %s257
      %p266 = scmp.eq.s32.totalorder %s41, 0
      %p267 = por %p265, %p266
      %p268 = scmp.ne.s32.totalorder %s256, %s257
      %p269 = scmp.eq.s32.totalorder %s42, 6
      %p270 = por %p268, %p269
      %p272 = scmp.ne.s32.totalorder %s257, %s271
      %p273 = scmp.eq.s32.totalorder %s42, 0
      %p274 = por %p272, %p273
      %s276 = sadd.s32 %s275, 1
      %p279 = scmp.eq.s32.totalorder %s36, 6
      %p280 = scmp.ne.s32.totalorder %s275, %s277
      %p281 = scmp.eq.s32.totalorder %s36, 0
      %p282 = por %p280, %p281
      %p283 = scmp.ne.s32.totalorder %s275, %s277
      %p284 = scmp.eq.s32.totalorder %s41, 6
      %p285 = por %p283, %p284
      %p286 = scmp.ne.s32.totalorder %s277, %s278
      %p287 = scmp.eq.s32.totalorder %s41, 0
      %p288 = por %p286, %p287
      %p289 = scmp.ne.s32.totalorder %s277, %s278
      %p290 = scmp.eq.s32.totalorder %s42, 6
      %p291 = por %p289, %p290
      %p293 = scmp.ne.s32.totalorder %s278, %s292
      %p294 = scmp.eq.s32.totalorder %s42, 0
      %p295 = por %p293, %p294
      %s297 = sadd.s32 %s296, 1
      %p300 = scmp.eq.s32.totalorder %s36, 6
      %p301 = scmp.ne.s32.totalorder %s296, %s298
      %p302 = scmp.eq.s32.totalorder %s36, 0
      %p303 = por %p301, %p302
      %p304 = scmp.ne.s32.totalorder %s296, %s298
      %p305 = scmp.eq.s32.totalorder %s41, 6
      %p306 = por %p304, %p305
      %p307 = scmp.ne.s32.totalorder %s298, %s299
      %p308 = scmp.eq.s32.totalorder %s41, 0
      %p309 = por %p307, %p308
      %p310 = scmp.ne.s32.totalorder %s298, %s299
      %p311 = scmp.eq.s32.totalorder %s42, 6
      %p312 = por %p310, %p311
      %p314 = scmp.ne.s32.totalorder %s299, %s313
      %p315 = scmp.eq.s32.totalorder %s42, 0
      %p316 = por %p314, %p315
      %s318 = sadd.s32 %s317, 1
      %p321 = scmp.eq.s32.totalorder %s36, 6
      %p322 = scmp.ne.s32.totalorder %s317, %s319
      %p323 = scmp.eq.s32.totalorder %s36, 0
      %p324 = por %p322, %p323
      %p325 = scmp.ne.s32.totalorder %s317, %s319
      %p326 = scmp.eq.s32.totalorder %s41, 6
      %p327 = por %p325, %p326
      %p328 = scmp.ne.s32.totalorder %s319, %s320
      %p329 = scmp.eq.s32.totalorder %s41, 0
      %p330 = por %p328, %p329
      %p331 = scmp.ne.s32.totalorder %s319, %s320
      %p332 = scmp.eq.s32.totalorder %s42, 6
      %p333 = por %p331, %p332
      %p335 = scmp.ne.s32.totalorder %s320, %s334
      %p336 = scmp.eq.s32.totalorder %s42, 0
      %p337 = por %p335, %p336
      %s339 = sadd.s32 %s338, 1
      %p342 = scmp.eq.s32.totalorder %s36, 6
      %p343 = scmp.ne.s32.totalorder %s338, %s340
      %p344 = scmp.eq.s32.totalorder %s36, 0
      %p345 = por %p343, %p344
      %p346 = scmp.ne.s32.totalorder %s338, %s340
      %p347 = scmp.eq.s32.totalorder %s41, 6
      %p348 = por %p346, %p347
      %p349 = scmp.ne.s32.totalorder %s340, %s341
      %p350 = scmp.eq.s32.totalorder %s41, 0
      %p351 = por %p349, %p350
      %p352 = scmp.ne.s32.totalorder %s340, %s341
      %p353 = scmp.eq.s32.totalorder %s42, 6
      %p354 = por %p352, %p353
      %p356 = scmp.ne.s32.totalorder %s341, %s355
      %p357 = scmp.eq.s32.totalorder %s42, 0
      %p358 = por %p356, %p357
      %s360 = sadd.s32 %s359, 1
      %p363 = scmp.eq.s32.totalorder %s36, 6
      %p364 = scmp.ne.s32.totalorder %s359, %s361
      %p365 = scmp.eq.s32.totalorder %s36, 0
      %p366 = por %p364, %p365
      %p367 = scmp.ne.s32.totalorder %s359, %s361
      %p368 = scmp.eq.s32.totalorder %s41, 6
      %p369 = por %p367, %p368
      %p370 = scmp.ne.s32.totalorder %s361, %s362
      %p371 = scmp.eq.s32.totalorder %s41, 0
      %p372 = por %p370, %p371
      %p373 = scmp.ne.s32.totalorder %s361, %s362
      %p374 = scmp.eq.s32.totalorder %s42, 6
      %p375 = por %p373, %p374
      %p377 = scmp.ne.s32.totalorder %s362, %s376
      %p378 = scmp.eq.s32.totalorder %s42, 0
      %p379 = por %p377, %p378
      %s381 = sadd.s32 %s380, 1
      %p384 = scmp.eq.s32.totalorder %s36, 6
      %p385 = scmp.ne.s32.totalorder %s380, %s382
      %p386 = scmp.eq.s32.totalorder %s36, 0
      %p387 = por %p385, %p386
      %p388 = scmp.ne.s32.totalorder %s380, %s382
      %p389 = scmp.eq.s32.totalorder %s41, 6
      %p390 = por %p388, %p389
      %p391 = scmp.ne.s32.totalorder %s382, %s383
      %p392 = scmp.eq.s32.totalorder %s41, 0
      %p393 = por %p391, %p392
      %p394 = scmp.ne.s32.totalorder %s382, %s383
      %p395 = scmp.eq.s32.totalorder %s42, 6
      %p396 = por %p394, %p395
      %p398 = scmp.ne.s32.totalorder %s383, %s397
      %p399 = scmp.eq.s32.totalorder %s42, 0
      %p400 = por %p398, %p399
      %s401 = ssub.s32 %s36, %s43
      %p402 = scmp.eq.s32.totalorder %s401, 0
      %s404 = sadd.s32 %s403, 1
      %s405 = scalar_select %p402, %s403, %s404
      %p408 = pneg %p402
      %p409 = scmp.eq.s32.totalorder %s36, 6
      %p410 = por %p408, %p409
      %p411 = scmp.ne.s32.totalorder %s403, %s406
      %p412 = scmp.eq.s32.totalorder %s36, 0
      %p413 = por %p411, %p412
      %p414 = scmp.ne.s32.totalorder %s403, %s406
      %p415 = scmp.eq.s32.totalorder %s41, 6
      %p416 = por %p414, %p415
      %p417 = scmp.ne.s32.totalorder %s406, %s407
      %p418 = scmp.eq.s32.totalorder %s41, 0
      %p419 = por %p417, %p418
      %p420 = scmp.ne.s32.totalorder %s406, %s407
      %p421 = scmp.eq.s32.totalorder %s42, 6
      %p422 = por %p420, %p421
      %p424 = scmp.ne.s32.totalorder %s407, %s423
      %p425 = scmp.eq.s32.totalorder %s42, 0
      %p426 = por %p424, %p425
      %s427 = ssub.s32 %s36, %s43
      %p428 = scmp.eq.s32.totalorder %s427, 0
      %s430 = sadd.s32 %s429, 1
      %s431 = scalar_select %p428, %s429, %s430
      %p434 = pneg %p428
      %p435 = scmp.eq.s32.totalorder %s36, 6
      %p436 = por %p434, %p435
      %p437 = scmp.ne.s32.totalorder %s429, %s432
      %p438 = scmp.eq.s32.totalorder %s36, 0
      %p439 = por %p437, %p438
      %p440 = scmp.ne.s32.totalorder %s429, %s432
      %p441 = scmp.eq.s32.totalorder %s41, 6
      %p442 = por %p440, %p441
      %p443 = scmp.ne.s32.totalorder %s432, %s433
      %p444 = scmp.eq.s32.totalorder %s41, 0
      %p445 = por %p443, %p444
      %p446 = scmp.ne.s32.totalorder %s432, %s433
      %p447 = scmp.eq.s32.totalorder %s42, 6
      %p448 = por %p446, %p447
      %p450 = scmp.ne.s32.totalorder %s433, %s449
      %p451 = scmp.eq.s32.totalorder %s42, 0
      %p452 = por %p450, %p451
      %p453 = scmp.le.s32.totalorder 1, %s36
      %p454 = scmp.lt.s32.totalorder %s36, 8
      %p455 = pnand %p453, %p454
      %p456 = pneg %p455
      // Predicated region
      $region9: #{_forward_jit.3} parent=5 // pred_check
        _
      $region10: #{_forward_jit.3} parent=5 // pred_check_branch
        %458 = sbr.rel (%p455) target = $region12
      $region11: #{_forward_jit.3} parent=5 // pred_region
        %s459 = ssub.s32 %s36, 1
        // Predicated region
        $region13: #{_forward_jit.3} parent=11 // pred_check
          %p460 = pneg %p57
        $region14: #{_forward_jit.3} parent=11 // pred_check_branch
          %462 = sbr.rel (%p460) target = $region16
        $region15: #{_forward_jit.3} parent=11 // pred_region
          _
        $region16: #{_forward_jit.3} parent=11 // pred_fallthru
          _
        // Predicated region
        $region17: #{_forward_jit.3} parent=11 // pred_check
          %p463 = pneg %p78
        $region18: #{_forward_jit.3} parent=11 // pred_check_branch
          %465 = sbr.rel (%p463) target = $region20
        $region19: #{_forward_jit.3} parent=11 // pred_region
          _
        $region20: #{_forward_jit.3} parent=11 // pred_fallthru
          _
        // Predicated region
        $region21: #{_forward_jit.3} parent=11 // pred_check
          %p466 = pneg %p99
        $region22: #{_forward_jit.3} parent=11 // pred_check_branch
          %468 = sbr.rel (%p466) target = $region24
        $region23: #{_forward_jit.3} parent=11 // pred_region
          _
        $region24: #{_forward_jit.3} parent=11 // pred_fallthru
          _
        // Predicated region
        $region25: #{_forward_jit.3} parent=11 // pred_check
          %p469 = pneg %p120
        $region26: #{_forward_jit.3} parent=11 // pred_check_branch
          %471 = sbr.rel (%p469) target = $region28
        $region27: #{_forward_jit.3} parent=11 // pred_region
          %473 = vsyncadd [#allocation7], 0
          %s474 = sshll.u32 %s4, 4
          %s475 = int_to_ptr.hbm [resolvable:$true] %s474
          %s476 = sshll.u32 [#allocation6], 4
          %s477 = int_to_ptr.vmem [resolvable:$true] %s476
          %482 = dma.hbm_to_vmem [thread:$0]  %s475, 1024, %s477, [#allocation7], 256, 256, 16
        $region28: #{_forward_jit.3} parent=11 // pred_fallthru
          _
        // Predicated region
        $region29: #{_forward_jit.3} parent=11 // pred_check
          %p483 = pneg %p141
        $region30: #{_forward_jit.3} parent=11 // pred_check_branch
          %485 = sbr.rel (%p483) target = $region32
        $region31: #{_forward_jit.3} parent=11 // pred_region
          _
        $region32: #{_forward_jit.3} parent=11 // pred_fallthru
          _
        // Predicated region
        $region33: #{_forward_jit.3} parent=11 // pred_check
          %p486 = pneg %p162
        $region34: #{_forward_jit.3} parent=11 // pred_check_branch
          %488 = sbr.rel (%p486) target = $region36
        $region35: #{_forward_jit.3} parent=11 // pred_region
          _
        $region36: #{_forward_jit.3} parent=11 // pred_fallthru
          _
        // Predicated region
        $region37: #{_forward_jit.3} parent=11 // pred_check
          %p489 = pneg %p183
        $region38: #{_forward_jit.3} parent=11 // pred_check_branch
          %491 = sbr.rel (%p489) target = $region40
        $region39: #{_forward_jit.3} parent=11 // pred_region
          _
        $region40: #{_forward_jit.3} parent=11 // pred_fallthru
          _
        // Predicated region
        $region41: #{_forward_jit.3} parent=11 // pred_check
          %p492 = pneg %p204
        $region42: #{_forward_jit.3} parent=11 // pred_check_branch
          %494 = sbr.rel (%p492) target = $region44
        $region43: #{_forward_jit.3} parent=11 // pred_region
          _
        $region44: #{_forward_jit.3} parent=11 // pred_fallthru
          _
        // Predicated region
        $region45: #{_forward_jit.3} parent=11 // pred_check
          %p495 = pneg %p225
        $region46: #{_forward_jit.3} parent=11 // pred_check_branch
          %497 = sbr.rel (%p495) target = $region48
        $region47: #{_forward_jit.3} parent=11 // pred_region
          %499 = vsyncadd [#allocation9], 0
          %s500 = sshll.u32 %s9, 4
          %s501 = int_to_ptr.hbm [resolvable:$true] %s500
          %s502 = sshll.u32 [#allocation8], 4
          %s503 = int_to_ptr.vmem [resolvable:$true] %s502
          %508 = dma.hbm_to_vmem [thread:$0]  %s501, 2048, %s503, [#allocation9], 256, 256, 16
        $region48: #{_forward_jit.3} parent=11 // pred_fallthru
          _
        // Predicated region
        $region49: #{_forward_jit.3} parent=11 // pred_check
          %p509 = pneg %p246
        $region50: #{_forward_jit.3} parent=11 // pred_check_branch
          %511 = sbr.rel (%p509) target = $region52
        $region51: #{_forward_jit.3} parent=11 // pred_region
          _
        $region52: #{_forward_jit.3} parent=11 // pred_fallthru
          _
        // Predicated region
        $region53: #{_forward_jit.3} parent=11 // pred_check
          %p512 = pneg %p267
        $region54: #{_forward_jit.3} parent=11 // pred_check_branch
          %514 = sbr.rel (%p512) target = $region56
        $region55: #{_forward_jit.3} parent=11 // pred_region
          _
        $region56: #{_forward_jit.3} parent=11 // pred_fallthru
          _
        // Predicated region
        $region57: #{_forward_jit.3} parent=11 // pred_check
          %p515 = pneg %p288
        $region58: #{_forward_jit.3} parent=11 // pred_check_branch
          %517 = sbr.rel (%p515) target = $region60
        $region59: #{_forward_jit.3} parent=11 // pred_region
          %519 = vsyncadd [#allocation9], 0
          %s520 = sshll.u32 %s12, 4
          %s521 = int_to_ptr.hbm [resolvable:$true] %s520
          %s522 = sshll.u32 [#allocation10], 4
          %s523 = int_to_ptr.vmem [resolvable:$true] %s522
          %528 = dma.hbm_to_vmem [thread:$0]  %s521, 1024, %s523, [#allocation9], 128, 128, 8
        $region60: #{_forward_jit.3} parent=11 // pred_fallthru
          _
        // Predicated region
        $region61: #{_forward_jit.3} parent=11 // pred_check
          %p529 = pneg %p309
        $region62: #{_forward_jit.3} parent=11 // pred_check_branch
          %531 = sbr.rel (%p529) target = $region64
        $region63: #{_forward_jit.3} parent=11 // pred_region
          _
        $region64: #{_forward_jit.3} parent=11 // pred_fallthru
          _
        // Predicated region
        $region65: #{_forward_jit.3} parent=11 // pred_check
          %p532 = pneg %p330
        $region66: #{_forward_jit.3} parent=11 // pred_check_branch
          %534 = sbr.rel (%p532) target = $region68
        $region67: #{_forward_jit.3} parent=11 // pred_region
          _
        $region68: #{_forward_jit.3} parent=11 // pred_fallthru
          _
        // Predicated region
        $region69: #{_forward_jit.3} parent=11 // pred_check
          %p535 = pneg %p351
        $region70: #{_forward_jit.3} parent=11 // pred_check_branch
          %537 = sbr.rel (%p535) target = $region72
        $region71: #{_forward_jit.3} parent=11 // pred_region
          _
        $region72: #{_forward_jit.3} parent=11 // pred_fallthru
          _
        // Predicated region
        $region73: #{_forward_jit.3} parent=11 // pred_check
          %p538 = pneg %p372
        $region74: #{_forward_jit.3} parent=11 // pred_check_branch
          %540 = sbr.rel (%p538) target = $region76
        $region75: #{_forward_jit.3} parent=11 // pred_region
          _
        $region76: #{_forward_jit.3} parent=11 // pred_fallthru
          _
        // Predicated region
        $region77: #{_forward_jit.3} parent=11 // pred_check
          %p541 = pneg %p393
        $region78: #{_forward_jit.3} parent=11 // pred_check_branch
          %543 = sbr.rel (%p541) target = $region80
        $region79: #{_forward_jit.3} parent=11 // pred_region
          _
        $region80: #{_forward_jit.3} parent=11 // pred_fallthru
          _
      $region12: #{_forward_jit.3} parent=5 // pred_fallthru
        _
      %p544 = scmp.lt.s32.totalorder %s36, 7
      // Predicated region
      $region81: #{_forward_jit.3} parent=5 // pred_check
        %p545 = pneg %p544
      $region82: #{_forward_jit.3} parent=5 // pred_check_branch
        %547 = sbr.rel (%p545) target = $region84
      $region83: #{_forward_jit.3} parent=5 // pred_region
        _
      $region84: #{_forward_jit.3} parent=5 // pred_fallthru
        _
      %p548 = scmp.le.s32.totalorder 1, %s36
      %p549 = scmp.lt.s32.totalorder %s36, 8
      %p550 = pnand %p548, %p549
      %p551 = pneg %p550
      // Predicated region
      $region85: #{_forward_jit.3} parent=5 // pred_check
        _
      $region86: #{_forward_jit.3} parent=5 // pred_check_branch
        %553 = sbr.rel (%p550) target = $region88
      $region87: #{_forward_jit.3} parent=5 // pred_region
        %s554 = ssub.s32 %s36, 1
        // Predicated region
        $region89: #{_forward_jit.3} parent=87 // pred_check
          %p555 = pneg %p120
        $region90: #{_forward_jit.3} parent=87 // pred_check_branch
          %557 = sbr.rel (%p555) target = $region92
        $region91: #{_forward_jit.3} parent=87 // pred_region
          %559 = dma.done [#allocation7], 1024
        $region92: #{_forward_jit.3} parent=87 // pred_fallthru
          _
        // Predicated region
        $region93: #{_forward_jit.3} parent=87 // pred_check
          %p560 = pneg %p225
        $region94: #{_forward_jit.3} parent=87 // pred_check_branch
          %562 = sbr.rel (%p560) target = $region96
        $region95: #{_forward_jit.3} parent=87 // pred_region
          %564 = dma.done [#allocation9], 2048
        $region96: #{_forward_jit.3} parent=87 // pred_fallthru
          _
        // Predicated region
        $region97: #{_forward_jit.3} parent=87 // pred_check
          %p565 = pneg %p288
        $region98: #{_forward_jit.3} parent=87 // pred_check_branch
          %567 = sbr.rel (%p565) target = $region100
        $region99: #{_forward_jit.3} parent=87 // pred_region
          %569 = dma.done [#allocation9], 1024
        $region100: #{_forward_jit.3} parent=87 // pred_fallthru
          _
        %p570 = pneg %p57
        %p571 = pneg %p54
        %p572 = pneg %p78
        %p573 = pneg %p75
        %p574 = pneg %p99
        %p575 = pneg %p96
        %p576 = pneg %p120
        %p577 = pneg %p117
        %p578 = pneg %p141
        %p579 = pneg %p138
        %p580 = pneg %p162
        %p581 = pneg %p159
        %p582 = pneg %p183
        %p583 = pneg %p180
        %p584 = pneg %p204
        %p585 = pneg %p201
        %p586 = pneg %p225
        %p587 = pneg %p222
        %p588 = pneg %p246
        %p589 = pneg %p243
        %p590 = pneg %p267
        %p591 = pneg %p264
        %p592 = pneg %p288
        %p593 = pneg %p285
        %p594 = pneg %p309
        %p595 = pneg %p306
        %p596 = pneg %p330
        %p597 = pneg %p327
        %p598 = pneg %p351
        %p599 = pneg %p348
        %p600 = pneg %p372
        %p601 = pneg %p369
        %p602 = pneg %p393
        %p603 = pneg %p390
        %p604 = pneg %p419
        %p605 = pneg %p416
        %p606 = scmp.lt.s32.totalorder %s41, 6
        %s607 = scalar_select %p606, %s41, 6
        %s608 = smul.addr %s607, 8
        %s609 = scalar_lea.vmem %s18, %s608
        %p610 = pneg %p445
        %p611 = pneg %p442
        %p612 = scmp.lt.s32.totalorder %s41, 6
        %s613 = scalar_select %p612, %s41, 6
        %s614 = smul.addr %s613, 8
        %s615 = scalar_lea.vmem %s19, %s614
        %p616 = scmp.lt.s32.totalorder %s41, 6
        %s617 = scalar_select %p616, %s41, 6
        %s618 = smul.addr %s617, 8
        %s619 = scalar_lea.vmem %s18, %s618
        %p620 = scmp.lt.s32.totalorder %s41, 6
        %s621 = scalar_select %p620, %s41, 6
        %s622 = smul.addr %s621, 8
        %s623 = scalar_lea.vmem %s19, %s622
        %s624 = smul.u32 %s41, 8
        %s625 = scalar_lea.vmem %s1, %s624
        %v626 = vld [vmem:[%s625] sm:$0xff]
        %p627 = scmp.eq.s32.totalorder %s41, 0
        // Predicated region
        $region101: #{_forward_jit.3} parent=87 // pred_check
          %p628 = pneg %p627
        $region102: #{_forward_jit.3} parent=87 // pred_check_branch
          %630 = sbr.rel (%p628) target = $region104
        $region103: #{_forward_jit.3} parent=87 // pred_region
          %v631 = vld [vmem:[%s2] sm:$0xff]
          %v632 = vld [vmem:[%s2 + $0x8] sm:$0xff]
          %vm633 = vcmask 523264
          %634 = vst.msk [vmem:[#allocation2] sm:$0xff] %vm633, %v631
          %635 = vst.msk [vmem:[#allocation2 + $0x8] sm:$0xff] %vm633, %v632
          %vm636 = vcmask 7168
          %637 = vst.msk [vmem:[#allocation3] sm:$0xff] %vm636, %v626
        $region104: #{_forward_jit.3} parent=87 // pred_fallthru
          _
        %s638 = sld [smem:[#allocation5 + %s41]]
        %v639 = vstv %s638
        %v640 = vmul.u32 %v639, %v626
        %s641 = ssub.s32 1, %s638
        %v642 = vld [vmem:[#allocation3] sm:$0xff]
        %v643 = vstv %s641
        %v644 = vmul.u32 %v643, %v642
        %v645 = vadd.s32 %v640, %v644
        %v646 = vlaneseq
        %v647 = vand.u32 %v646, 127
        %648 = vset.pattern.permute.xlu0 0
        %649 = vperm.xlu0 %648, %v645
        %v650 = vpop.permute.xlu0 %649
        %vm651 = vcmp.eq.s32.totalorder %v647, %v650
        %v652 = vsel %vm651, 1, 0
        %v653 = vcvt.s32.f32 %v652
        %v654 = vld [vmem:[%s3] sm:$0xff]
        %v655 = vld [vmem:[%s3 + $0x8] sm:$0xff]
        %v656 = vld [vmem:[%s3 + $0x10] sm:$0xff]
        %v657 = vld [vmem:[%s3 + $0x18] sm:$0xff]
        %v658 = vld [vmem:[%s3 + $0x20] sm:$0xff]
        %v659 = vld [vmem:[%s3 + $0x28] sm:$0xff]
        %v660 = vld [vmem:[%s3 + $0x30] sm:$0xff]
        %v661 = vld [vmem:[%s3 + $0x38] sm:$0xff]
        %v662 = vld [vmem:[%s3 + $0x40] sm:$0xff]
        %v663 = vld [vmem:[%s3 + $0x48] sm:$0xff]
        %v664 = vld [vmem:[%s3 + $0x50] sm:$0xff]
        %v665 = vld [vmem:[%s3 + $0x58] sm:$0xff]
        %v666 = vld [vmem:[%s3 + $0x60] sm:$0xff]
        %v667 = vld [vmem:[%s3 + $0x68] sm:$0xff]
        %v668 = vld [vmem:[%s3 + $0x70] sm:$0xff]
        %v669 = vld [vmem:[%s3 + $0x78] sm:$0xff]
        %670 = vmatpush.msra.mxu0 %v669
        %671 = vmatpush.msra.mxu0 %v668
        %672 = vmatpush.msra.mxu0 %v667
        %673 = vmatpush.msra.mxu0 %v666
        %674 = vmatpush.msra.mxu0 %v665
        %675 = vmatpush.msra.mxu0 %v664
        %676 = vmatpush.msra.mxu0 %v663
        %677 = vmatpush.msra.mxu0 %v662
        %678 = vmatpush.msra.mxu0 %v661
        %679 = vmatpush.msra.mxu0 %v660
        %680 = vmatpush.msra.mxu0 %v659
        %681 = vmatpush.msra.mxu0 %v658
        %682 = vmatpush.msra.mxu0 %v657
        %683 = vmatpush.msra.mxu0 %v656
        %684 = vmatpush.msra.mxu0 %v655
        %685 = vmatpush.msra.mxu0 %v654
        %686 = vmatmul.f32.gmra.mxu0 %v653
        %v687 = vpop.f32.mrf.mxu0
        %v688 = vadd.f32 0.0, %v687
        %689 = vdwg.mxu0
        %v690 = vld [vmem:[#allocation6] sm:$0xff]
        %v691 = vld [vmem:[#allocation6 + $0x8] sm:$0xff]
        %v692 = vld [vmem:[#allocation6 + $0x10] sm:$0xff]
        %v693 = vld [vmem:[#allocation6 + $0x18] sm:$0xff]
        %v694 = vld [vmem:[#allocation6 + $0x20] sm:$0xff]
        %v695 = vld [vmem:[#allocation6 + $0x28] sm:$0xff]
        %v696 = vld [vmem:[#allocation6 + $0x30] sm:$0xff]
        %v697 = vld [vmem:[#allocation6 + $0x38] sm:$0xff]
        %v698 = vld [vmem:[%s5] sm:$0xff]
        %v699 = vld [vmem:[%s5 + $0x8] sm:$0xff]
        %v700 = vld [vmem:[%s5 + $0x10] sm:$0xff]
        %v701 = vld [vmem:[%s5 + $0x18] sm:$0xff]
        %v702 = vld [vmem:[%s5 + $0x20] sm:$0xff]
        %v703 = vld [vmem:[%s5 + $0x28] sm:$0xff]
        %v704 = vld [vmem:[%s5 + $0x30] sm:$0xff]
        %v705 = vld [vmem:[%s5 + $0x38] sm:$0xff]
        %v706 = vld [vmem:[%s5 + $0x40] sm:$0xff]
        %v707 = vld [vmem:[%s5 + $0x48] sm:$0xff]
        %v708 = vld [vmem:[%s5 + $0x50] sm:$0xff]
        %v709 = vld [vmem:[%s5 + $0x58] sm:$0xff]
        %v710 = vld [vmem:[%s5 + $0x60] sm:$0xff]
        %v711 = vld [vmem:[%s5 + $0x68] sm:$0xff]
        %v712 = vld [vmem:[%s5 + $0x70] sm:$0xff]
        %v713 = vld [vmem:[%s5 + $0x78] sm:$0xff]
        %v714 = vld [vmem:[%s6] sm:$0x3]
        %v715 = vld [vmem:[%s7] sm:$0x3]
        %v716 = vld [vmem:[#allocation2] sm:$0xff]
        %v718 = vperm.slane %v714, 0
        %v719 = vperm.slane %v714, 1
        %vm722 = vcmask 261120
        %v724 = vsel %vm722, %v688, 0
        %726 = vmatpush.msra.mxu0 0.0
        %727 = vmatpush.msra.mxu0 0.0
        %728 = vmatpush.msra.mxu0 0.0
        %729 = vmatpush.msra.mxu0 0.0
        %730 = vmatpush.msra.mxu0 0.0
        %731 = vmatpush.msra.mxu0 0.0
        %732 = vmatpush.msra.mxu0 0.0
        %733 = vmatpush.msra.mxu0 0.0
        %734 = vmatpush.msra.mxu0 0.0
        %735 = vmatpush.msra.mxu0 0.0
        %736 = vmatpush.msra.mxu0 0.0
        %737 = vmatpush.msra.mxu0 0.0
        %738 = vmatpush.msra.mxu0 %v696
        %739 = vmatpush.msra.mxu0 %v694
        %740 = vmatpush.msra.mxu0 %v692
        %741 = vmatpush.msra.mxu0 %v690
        %742 = vmatmul.f32.gmra.mxu0 %v724
        %v743 = vpop.f32.mrf.mxu0
        %v744 = vadd.f32 %v718, %v743
        %745 = vdwg.mxu0
        %746 = vmatpush.msra.mxu0 0.0
        %747 = vmatpush.msra.mxu0 0.0
        %748 = vmatpush.msra.mxu0 0.0
        %749 = vmatpush.msra.mxu0 0.0
        %750 = vmatpush.msra.mxu0 0.0
        %751 = vmatpush.msra.mxu0 0.0
        %752 = vmatpush.msra.mxu0 0.0
        %753 = vmatpush.msra.mxu0 0.0
        %754 = vmatpush.msra.mxu0 0.0
        %755 = vmatpush.msra.mxu0 0.0
        %756 = vmatpush.msra.mxu0 0.0
        %757 = vmatpush.msra.mxu0 0.0
        %758 = vmatpush.msra.mxu0 %v697
        %759 = vmatpush.msra.mxu0 %v695
        %760 = vmatpush.msra.mxu0 %v693
        %761 = vmatpush.msra.mxu0 %v691
        %762 = vmatmul.f32.gmra.mxu0 %v724
        %v763 = vpop.f32.mrf.mxu0
        %v764 = vadd.f32 %v719, %v763
        %765 = vdwg.mxu0
        %v767 = vperm.slane %v715, 0
        %v768 = vperm.slane %v715, 1
        %vm771 = vcmask 523264
        %v773 = vsel %vm771, %v716, 0
        %775 = vmatpush.msra.mxu0 0.0
        %776 = vmatpush.msra.mxu0 0.0
        %777 = vmatpush.msra.mxu0 0.0
        %778 = vmatpush.msra.mxu0 0.0
        %779 = vmatpush.msra.mxu0 0.0
        %780 = vmatpush.msra.mxu0 0.0
        %781 = vmatpush.msra.mxu0 0.0
        %782 = vmatpush.msra.mxu0 0.0
        %783 = vmatpush.msra.mxu0 %v712
        %784 = vmatpush.msra.mxu0 %v710
        %785 = vmatpush.msra.mxu0 %v708
        %786 = vmatpush.msra.mxu0 %v706
        %787 = vmatpush.msra.mxu0 %v704
        %788 = vmatpush.msra.mxu0 %v702
        %789 = vmatpush.msra.mxu0 %v700
        %790 = vmatpush.msra.mxu0 %v698
        %791 = vmatmul.f32.gmra.mxu0 %v773
        %v792 = vpop.f32.mrf.mxu0
        %v793 = vadd.f32 %v767, %v792
        %794 = vdwg.mxu0
        %795 = vmatpush.msra.mxu0 0.0
        %796 = vmatpush.msra.mxu0 0.0
        %797 = vmatpush.msra.mxu0 0.0
        %798 = vmatpush.msra.mxu0 0.0
        %799 = vmatpush.msra.mxu0 0.0
        %800 = vmatpush.msra.mxu0 0.0
        %801 = vmatpush.msra.mxu0 0.0
        %802 = vmatpush.msra.mxu0 0.0
        %803 = vmatpush.msra.mxu0 %v713
        %804 = vmatpush.msra.mxu0 %v711
        %805 = vmatpush.msra.mxu0 %v709
        %806 = vmatpush.msra.mxu0 %v707
        %807 = vmatpush.msra.mxu0 %v705
        %808 = vmatpush.msra.mxu0 %v703
        %809 = vmatpush.msra.mxu0 %v701
        %810 = vmatpush.msra.mxu0 %v699
        %811 = vmatmul.f32.gmra.mxu0 %v773
        %v812 = vpop.f32.mrf.mxu0
        %v813 = vadd.f32 %v768, %v812
        %814 = vdwg.mxu0
        %v815 = vadd.f32 %v744, %v793
        %v816 = vxor.u32 %v815, 2147483648
        %v817 = vmul.f32 %v816, 1.442695
        %v818 = vpow.pop %v817
        %v819 = vadd.f32 %v818, 1.0
        %v820 = vrcp.pop %v819
        %v821 = vmul.f32 %v819, %v820
        %v822 = vsub.f32 1.0, %v821
        %v823 = vmul.f32 %v820, %v822
        %v824 = vadd.f32 %v820, %v823
        %vm825 = vweird.f32 %v819
        %vm826 = vweird.f32 %v820
        %vm827 = vmor %vm825, %vm826
        %v828 = vsel %vm827, %v820, %v824
        %v829 = vand.u32 2147483647, %v819
        %vm830 = vcmp.eq.f32.partialorder %v829, 8.507059e+37
        %v831 = vand.u32 %v819, 2147483648
        %v832 = vor.u32 1.1754944e-38, %v831
        %v833 = vsel %vm830, %v832, %v828
        %v834 = vmul.f32 1.0, %v833
        %v835 = vmul.f32 %v834, %v813
        %v836 = vadd.f32 %v764, %v835
        %v837 = vtanh.pop %v836
        %v838 = vsub.f32 1.0, %v834
        %840 = vrot.lane.b32.xlu0 %v837, 64
        %v841 = vpop.permute.xlu0 %840
        %v843 = vmul.f32 %v838, %v841
        %844 = vrot.lane.b32.xlu0 %v716, 64
        %v845 = vpop.permute.xlu0 %844
        %v847 = vmul.f32 %v834, %v845
        %v848 = vadd.f32 %v843, %v847
        %850 = vrot.lane.b32.xlu0 %v848, 64
        %v851 = vpop.permute.xlu0 %850
        %853 = vst.msk [vmem:[#allocation2] sm:$0xff] %vm771, %v851
        %v854 = vld [vmem:[%s8] sm:$0xff]
        %v855 = vld [vmem:[%s8 + $0x8] sm:$0xff]
        %v856 = vld [vmem:[%s8 + $0x10] sm:$0xff]
        %v857 = vld [vmem:[%s8 + $0x18] sm:$0xff]
        %v858 = vld [vmem:[%s8 + $0x20] sm:$0xff]
        %v859 = vld [vmem:[%s8 + $0x28] sm:$0xff]
        %v860 = vld [vmem:[%s8 + $0x30] sm:$0xff]
        %v861 = vld [vmem:[%s8 + $0x38] sm:$0xff]
        %v862 = vld [vmem:[%s8 + $0x40] sm:$0xff]
        %v863 = vld [vmem:[%s8 + $0x48] sm:$0xff]
        %v864 = vld [vmem:[%s8 + $0x50] sm:$0xff]
        %v865 = vld [vmem:[%s8 + $0x58] sm:$0xff]
        %v866 = vld [vmem:[%s8 + $0x60] sm:$0xff]
        %v867 = vld [vmem:[%s8 + $0x68] sm:$0xff]
        %v868 = vld [vmem:[%s8 + $0x70] sm:$0xff]
        %v869 = vld [vmem:[%s8 + $0x78] sm:$0xff]
        %v870 = vld [vmem:[#allocation8] sm:$0xff]
        %v871 = vld [vmem:[#allocation8 + $0x8] sm:$0xff]
        %v872 = vld [vmem:[#allocation8 + $0x10] sm:$0xff]
        %v873 = vld [vmem:[#allocation8 + $0x18] sm:$0xff]
        %v874 = vld [vmem:[#allocation8 + $0x20] sm:$0xff]
        %v875 = vld [vmem:[#allocation8 + $0x28] sm:$0xff]
        %v876 = vld [vmem:[#allocation8 + $0x30] sm:$0xff]
        %v877 = vld [vmem:[#allocation8 + $0x38] sm:$0xff]
        %v878 = vld [vmem:[#allocation8 + $0x40] sm:$0xff]
        %v879 = vld [vmem:[#allocation8 + $0x48] sm:$0xff]
        %v880 = vld [vmem:[#allocation8 + $0x50] sm:$0xff]
        %v881 = vld [vmem:[#allocation8 + $0x58] sm:$0xff]
        %v882 = vld [vmem:[#allocation8 + $0x60] sm:$0xff]
        %v883 = vld [vmem:[#allocation8 + $0x68] sm:$0xff]
        %v884 = vld [vmem:[#allocation8 + $0x70] sm:$0xff]
        %v885 = vld [vmem:[#allocation8 + $0x78] sm:$0xff]
        %v886 = vld [vmem:[%s10] sm:$0x3]
        %v887 = vld [vmem:[%s11] sm:$0x3]
        %s888 = scalar_lea.vmem [#allocation2], 8
        %v889 = vld [vmem:[%s888] sm:$0xff]
        %v891 = vperm.slane %v886, 0
        %v892 = vperm.slane %v886, 1
        %v895 = vsel %vm771, %v851, 0
        %897 = vmatpush.msra.mxu0 0.0
        %898 = vmatpush.msra.mxu0 0.0
        %899 = vmatpush.msra.mxu0 0.0
        %900 = vmatpush.msra.mxu0 0.0
        %901 = vmatpush.msra.mxu0 0.0
        %902 = vmatpush.msra.mxu0 0.0
        %903 = vmatpush.msra.mxu0 0.0
        %904 = vmatpush.msra.mxu0 0.0
        %905 = vmatpush.msra.mxu0 %v868
        %906 = vmatpush.msra.mxu0 %v866
        %907 = vmatpush.msra.mxu0 %v864
        %908 = vmatpush.msra.mxu0 %v862
        %909 = vmatpush.msra.mxu0 %v860
        %910 = vmatpush.msra.mxu0 %v858
        %911 = vmatpush.msra.mxu0 %v856
        %912 = vmatpush.msra.mxu0 %v854
        %913 = vmatmul.f32.gmra.mxu0 %v895
        %v914 = vpop.f32.mrf.mxu0
        %v915 = vadd.f32 %v891, %v914
        %916 = vdwg.mxu0
        %917 = vmatpush.msra.mxu0 0.0
        %918 = vmatpush.msra.mxu0 0.0
        %919 = vmatpush.msra.mxu0 0.0
        %920 = vmatpush.msra.mxu0 0.0
        %921 = vmatpush.msra.mxu0 0.0
        %922 = vmatpush.msra.mxu0 0.0
        %923 = vmatpush.msra.mxu0 0.0
        %924 = vmatpush.msra.mxu0 0.0
        %925 = vmatpush.msra.mxu0 %v869
        %926 = vmatpush.msra.mxu0 %v867
        %927 = vmatpush.msra.mxu0 %v865
        %928 = vmatpush.msra.mxu0 %v863
        %929 = vmatpush.msra.mxu0 %v861
        %930 = vmatpush.msra.mxu0 %v859
        %931 = vmatpush.msra.mxu0 %v857
        %932 = vmatpush.msra.mxu0 %v855
        %933 = vmatmul.f32.gmra.mxu0 %v895
        %v934 = vpop.f32.mrf.mxu0
        %v935 = vadd.f32 %v892, %v934
        %936 = vdwg.mxu0
        %v938 = vperm.slane %v887, 0
        %v939 = vperm.slane %v887, 1
        %v943 = vsel %vm771, %v889, 0
        %945 = vmatpush.msra.mxu0 0.0
        %946 = vmatpush.msra.mxu0 0.0
        %947 = vmatpush.msra.mxu0 0.0
        %948 = vmatpush.msra.mxu0 0.0
        %949 = vmatpush.msra.mxu0 0.0
        %950 = vmatpush.msra.mxu0 0.0
        %951 = vmatpush.msra.mxu0 0.0
        %952 = vmatpush.msra.mxu0 0.0
        %953 = vmatpush.msra.mxu0 %v884
        %954 = vmatpush.msra.mxu0 %v882
        %955 = vmatpush.msra.mxu0 %v880
        %956 = vmatpush.msra.mxu0 %v878
        %957 = vmatpush.msra.mxu0 %v876
        %958 = vmatpush.msra.mxu0 %v874
        %959 = vmatpush.msra.mxu0 %v872
        %960 = vmatpush.msra.mxu0 %v870
        %961 = vmatmul.f32.gmra.mxu0 %v943
        %v962 = vpop.f32.mrf.mxu0
        %v963 = vadd.f32 %v938, %v962
        %964 = vdwg.mxu0
        %965 = vmatpush.msra.mxu0 0.0
        %966 = vmatpush.msra.mxu0 0.0
        %967 = vmatpush.msra.mxu0 0.0
        %968 = vmatpush.msra.mxu0 0.0
        %969 = vmatpush.msra.mxu0 0.0
        %970 = vmatpush.msra.mxu0 0.0
        %971 = vmatpush.msra.mxu0 0.0
        %972 = vmatpush.msra.mxu0 0.0
        %973 = vmatpush.msra.mxu0 %v885
        %974 = vmatpush.msra.mxu0 %v883
        %975 = vmatpush.msra.mxu0 %v881
        %976 = vmatpush.msra.mxu0 %v879
        %977 = vmatpush.msra.mxu0 %v877
        %978 = vmatpush.msra.mxu0 %v875
        %979 = vmatpush.msra.mxu0 %v873
        %980 = vmatpush.msra.mxu0 %v871
        %981 = vmatmul.f32.gmra.mxu0 %v943
        %v982 = vpop.f32.mrf.mxu0
        %v983 = vadd.f32 %v939, %v982
        %984 = vdwg.mxu0
        %v985 = vadd.f32 %v915, %v963
        %v986 = vxor.u32 %v985, 2147483648
        %v987 = vmul.f32 %v986, 1.442695
        %v988 = vpow.pop %v987
        %v989 = vadd.f32 %v988, 1.0
        %v990 = vrcp.pop %v989
        %v991 = vmul.f32 %v989, %v990
        %v992 = vsub.f32 1.0, %v991
        %v993 = vmul.f32 %v990, %v992
        %v994 = vadd.f32 %v990, %v993
        %vm995 = vweird.f32 %v989
        %vm996 = vweird.f32 %v990
        %vm997 = vmor %vm995, %vm996
        %v998 = vsel %vm997, %v990, %v994
        %v999 = vand.u32 2147483647, %v989
        %vm1000 = vcmp.eq.f32.partialorder %v999, 8.507059e+37
        %v1001 = vand.u32 %v989, 2147483648
        %v1002 = vor.u32 1.1754944e-38, %v1001
        %v1003 = vsel %vm1000, %v1002, %v998
        %v1004 = vmul.f32 1.0, %v1003
        %v1005 = vmul.f32 %v1004, %v983
        %v1006 = vadd.f32 %v935, %v1005
        %v1007 = vtanh.pop %v1006
        %v1008 = vsub.f32 1.0, %v1004
        %1010 = vrot.lane.b32.xlu0 %v1007, 64
        %v1011 = vpop.permute.xlu0 %1010
        %v1013 = vmul.f32 %v1008, %v1011
        %1014 = vrot.lane.b32.xlu0 %v889, 64
        %v1015 = vpop.permute.xlu0 %1014
        %v1017 = vmul.f32 %v1004, %v1015
        %v1018 = vadd.f32 %v1013, %v1017
        %1020 = vrot.lane.b32.xlu0 %v1018, 64
        %v1021 = vpop.permute.xlu0 %1020
        %1023 = vst.msk [vmem:[%s888] sm:$0xff] %vm771, %v1021
        %v1024 = vld [vmem:[#allocation10] sm:$0xff]
        %v1025 = vld [vmem:[#allocation10 + $0x8] sm:$0xff]
        %v1026 = vld [vmem:[#allocation10 + $0x10] sm:$0xff]
        %v1027 = vld [vmem:[#allocation10 + $0x18] sm:$0xff]
        %v1028 = vld [vmem:[#allocation10 + $0x20] sm:$0xff]
        %v1029 = vld [vmem:[#allocation10 + $0x28] sm:$0xff]
        %v1030 = vld [vmem:[#allocation10 + $0x30] sm:$0xff]
        %v1031 = vld [vmem:[#allocation10 + $0x38] sm:$0xff]
        %v1032 = vld [vmem:[%s13] sm:$0x1]
        %v1033 = vld [vmem:[%s14] sm:$0xff]
        %v1034 = vld [vmem:[%s14 + $0x8] sm:$0xff]
        %v1035 = vld [vmem:[%s14 + $0x10] sm:$0xff]
        %v1036 = vld [vmem:[%s14 + $0x18] sm:$0xff]
        %v1037 = vld [vmem:[%s14 + $0x20] sm:$0xff]
        %v1038 = vld [vmem:[%s14 + $0x28] sm:$0xff]
        %v1039 = vld [vmem:[%s14 + $0x30] sm:$0xff]
        %v1040 = vld [vmem:[%s14 + $0x38] sm:$0xff]
        %v1041 = vld [vmem:[%s14 + $0x40] sm:$0xff]
        %v1042 = vld [vmem:[%s14 + $0x48] sm:$0xff]
        %v1043 = vld [vmem:[%s14 + $0x50] sm:$0xff]
        %v1044 = vld [vmem:[%s14 + $0x58] sm:$0xff]
        %v1045 = vld [vmem:[%s14 + $0x60] sm:$0xff]
        %v1046 = vld [vmem:[%s14 + $0x68] sm:$0xff]
        %v1047 = vld [vmem:[%s14 + $0x70] sm:$0xff]
        %v1048 = vld [vmem:[%s14 + $0x78] sm:$0xff]
        %v1049 = vld [vmem:[%s14 + $0x80] sm:$0xff]
        %v1050 = vld [vmem:[%s14 + $0x88] sm:$0xff]
        %v1051 = vld [vmem:[%s14 + $0x90] sm:$0xff]
        %v1052 = vld [vmem:[%s14 + $0x98] sm:$0xff]
        %v1053 = vld [vmem:[%s14 + $0xa0] sm:$0xff]
        %v1054 = vld [vmem:[%s14 + $0xa8] sm:$0xff]
        %v1055 = vld [vmem:[%s14 + $0xb0] sm:$0xff]
        %v1056 = vld [vmem:[%s14 + $0xb8] sm:$0xff]
        %v1057 = vld [vmem:[%s14 + $0xc0] sm:$0xff]
        %v1058 = vld [vmem:[%s14 + $0xc8] sm:$0xff]
        %v1059 = vld [vmem:[%s14 + $0xd0] sm:$0xff]
        %v1060 = vld [vmem:[%s14 + $0xd8] sm:$0xff]
        %v1061 = vld [vmem:[%s14 + $0xe0] sm:$0xff]
        %v1062 = vld [vmem:[%s14 + $0xe8] sm:$0xff]
        %v1063 = vld [vmem:[%s14 + $0xf0] sm:$0xff]
        %v1064 = vld [vmem:[%s14 + $0xf8] sm:$0xff]
        %v1065 = vld [vmem:[%s15] sm:$0x3]
        %v1066 = vld [vmem:[%s16] sm:$0xff]
        %v1067 = vld [vmem:[%s16 + $0x8] sm:$0xff]
        %v1068 = vld [vmem:[%s16 + $0x10] sm:$0xff]
        %v1069 = vld [vmem:[%s16 + $0x18] sm:$0xff]
        %v1070 = vld [vmem:[%s16 + $0x20] sm:$0xff]
        %v1071 = vld [vmem:[%s16 + $0x28] sm:$0xff]
        %v1072 = vld [vmem:[%s16 + $0x30] sm:$0xff]
        %v1073 = vld [vmem:[%s16 + $0x38] sm:$0xff]
        %v1074 = vld [vmem:[%s16 + $0x40] sm:$0xff]
        %v1075 = vld [vmem:[%s16 + $0x48] sm:$0xff]
        %v1076 = vld [vmem:[%s16 + $0x50] sm:$0xff]
        %v1077 = vld [vmem:[%s16 + $0x58] sm:$0xff]
        %v1078 = vld [vmem:[%s16 + $0x60] sm:$0xff]
        %v1079 = vld [vmem:[%s16 + $0x68] sm:$0xff]
        %v1080 = vld [vmem:[%s16 + $0x70] sm:$0xff]
        %v1081 = vld [vmem:[%s16 + $0x78] sm:$0xff]
        %v1082 = vld [vmem:[%s16 + $0x80] sm:$0xff]
        %v1083 = vld [vmem:[%s16 + $0x88] sm:$0xff]
        %v1084 = vld [vmem:[%s16 + $0x90] sm:$0xff]
        %v1085 = vld [vmem:[%s16 + $0x98] sm:$0xff]
        %v1086 = vld [vmem:[%s16 + $0xa0] sm:$0xff]
        %v1087 = vld [vmem:[%s16 + $0xa8] sm:$0xff]
        %v1088 = vld [vmem:[%s16 + $0xb0] sm:$0xff]
        %v1089 = vld [vmem:[%s16 + $0xb8] sm:$0xff]
        %v1090 = vld [vmem:[%s16 + $0xc0] sm:$0xff]
        %v1091 = vld [vmem:[%s16 + $0xc8] sm:$0xff]
        %v1092 = vld [vmem:[%s16 + $0xd0] sm:$0xff]
        %v1093 = vld [vmem:[%s16 + $0xd8] sm:$0xff]
        %v1094 = vld [vmem:[%s16 + $0xe0] sm:$0xff]
        %v1095 = vld [vmem:[%s16 + $0xe8] sm:$0xff]
        %v1096 = vld [vmem:[%s16 + $0xf0] sm:$0xff]
        %v1097 = vld [vmem:[%s16 + $0xf8] sm:$0xff]
        %v1098 = vld [vmem:[%s17] sm:$0x1]
        %v1100 = vperm.slane %v1032, 0
        %v1102 = vsel %vm771, %v1021, 0
        %1104 = vmatpush.msra.mxu0 0.0
        %1105 = vmatpush.msra.mxu0 0.0
        %1106 = vmatpush.msra.mxu0 0.0
        %1107 = vmatpush.msra.mxu0 0.0
        %1108 = vmatpush.msra.mxu0 0.0
        %1109 = vmatpush.msra.mxu0 0.0
        %1110 = vmatpush.msra.mxu0 0.0
        %1111 = vmatpush.msra.mxu0 0.0
        %1112 = vmatpush.msra.mxu0 %v1031
        %1113 = vmatpush.msra.mxu0 %v1030
        %1114 = vmatpush.msra.mxu0 %v1029
        %1115 = vmatpush.msra.mxu0 %v1028
        %1116 = vmatpush.msra.mxu0 %v1027
        %1117 = vmatpush.msra.mxu0 %v1026
        %1118 = vmatpush.msra.mxu0 %v1025
        %1119 = vmatpush.msra.mxu0 %v1024
        %1120 = vmatmul.f32.gmra.mxu0 %v1102
        %v1121 = vpop.f32.mrf.mxu0
        %v1122 = vadd.f32 %v1100, %v1121
        %1123 = vdwg.mxu0
        %v1125 = vperm.slane %v1065, 0
        %v1126 = vperm.slane %v1065, 1
        %1129 = vmatpush.msra.mxu0 %v1063
        %1130 = vmatpush.msra.mxu0 %v1061
        %1131 = vmatpush.msra.mxu0 %v1059
        %1132 = vmatpush.msra.mxu0 %v1057
        %1133 = vmatpush.msra.mxu0 %v1055
        %1134 = vmatpush.msra.mxu0 %v1053
        %1135 = vmatpush.msra.mxu0 %v1051
        %1136 = vmatpush.msra.mxu0 %v1049
        %1137 = vmatpush.msra.mxu0 %v1047
        %1138 = vmatpush.msra.mxu0 %v1045
        %1139 = vmatpush.msra.mxu0 %v1043
        %1140 = vmatpush.msra.mxu0 %v1041
        %1141 = vmatpush.msra.mxu0 %v1039
        %1142 = vmatpush.msra.mxu0 %v1037
        %1143 = vmatpush.msra.mxu0 %v1035
        %1144 = vmatpush.msra.mxu0 %v1033
        %1145 = vmatmul.f32.gmra.mxu0 %v1122
        %v1146 = vpop.f32.mrf.mxu0
        %v1147 = vadd.f32 %v1125, %v1146
        %1148 = vdwg.mxu0
        %1149 = vmatpush.msra.mxu0 %v1064
        %1150 = vmatpush.msra.mxu0 %v1062
        %1151 = vmatpush.msra.mxu0 %v1060
        %1152 = vmatpush.msra.mxu0 %v1058
        %1153 = vmatpush.msra.mxu0 %v1056
        %1154 = vmatpush.msra.mxu0 %v1054
        %1155 = vmatpush.msra.mxu0 %v1052
        %1156 = vmatpush.msra.mxu0 %v1050
        %1157 = vmatpush.msra.mxu0 %v1048
        %1158 = vmatpush.msra.mxu0 %v1046
        %1159 = vmatpush.msra.mxu0 %v1044
        %1160 = vmatpush.msra.mxu0 %v1042
        %1161 = vmatpush.msra.mxu0 %v1040
        %1162 = vmatpush.msra.mxu0 %v1038
        %1163 = vmatpush.msra.mxu0 %v1036
        %1164 = vmatpush.msra.mxu0 %v1034
        %1165 = vmatmul.f32.gmra.mxu0 %v1122
        %v1166 = vpop.f32.mrf.mxu0
        %v1167 = vadd.f32 %v1126, %v1166
        %1168 = vdwg.mxu0
        %v1170 = vperm.slane %v1098, 0
        %1172 = vmatpush.msra.mxu0 %v1081
        %1173 = vmatpush.msra.mxu0 %v1080
        %1174 = vmatpush.msra.mxu0 %v1079
        %1175 = vmatpush.msra.mxu0 %v1078
        %1176 = vmatpush.msra.mxu0 %v1077
        %1177 = vmatpush.msra.mxu0 %v1076
        %1178 = vmatpush.msra.mxu0 %v1075
        %1179 = vmatpush.msra.mxu0 %v1074
        %1180 = vmatpush.msra.mxu0 %v1073
        %1181 = vmatpush.msra.mxu0 %v1072
        %1182 = vmatpush.msra.mxu0 %v1071
        %1183 = vmatpush.msra.mxu0 %v1070
        %1184 = vmatpush.msra.mxu0 %v1069
        %1185 = vmatpush.msra.mxu0 %v1068
        %1186 = vmatpush.msra.mxu0 %v1067
        %1187 = vmatpush.msra.mxu0 %v1066
        %1188 = vmatmul.f32.gmra.mxu0 %v1147
        %v1189 = vpop.f32.mrf.mxu0
        %v1190 = vadd.f32 %v1170, %v1189
        %1191 = vdwg.mxu0
        %1192 = vmatpush.msra.mxu0 %v1097
        %1193 = vmatpush.msra.mxu0 %v1096
        %1194 = vmatpush.msra.mxu0 %v1095
        %1195 = vmatpush.msra.mxu0 %v1094
        %1196 = vmatpush.msra.mxu0 %v1093
        %1197 = vmatpush.msra.mxu0 %v1092
        %1198 = vmatpush.msra.mxu0 %v1091
        %1199 = vmatpush.msra.mxu0 %v1090
        %1200 = vmatpush.msra.mxu0 %v1089
        %1201 = vmatpush.msra.mxu0 %v1088
        %1202 = vmatpush.msra.mxu0 %v1087
        %1203 = vmatpush.msra.mxu0 %v1086
        %1204 = vmatpush.msra.mxu0 %v1085
        %1205 = vmatpush.msra.mxu0 %v1084
        %1206 = vmatpush.msra.mxu0 %v1083
        %1207 = vmatpush.msra.mxu0 %v1082
        %1208 = vmatmul.f32.gmra.mxu0 %v1167
        %v1209 = vpop.f32.mrf.mxu0
        %v1210 = vadd.f32 %v1190, %v1209
        %1211 = vdwg.mxu0
        %1212 = vst [vmem:[%s619] sm:$0xff] %v1210
        %vm1213 = vcmp.lt.s32.totalorder %v647, 43
        %v1214 = vsel %vm1213, %v1210, -1e+30
        %1215 = vmax.xlane.f32.xlu0 %v1214
        %v1216 = vpop.xlane.xlu0 %1215
        %vm1217 = vcmp.eq.f32.partialorder %v1214, %v1216
        %v1218 = vcvt.s32.f32 %v647
        %v1219 = vsel %vm1217, %v1218, 128.0
        %1220 = vmin.xlane.f32.xlu0 %v1219
        %v1221 = vpop.xlane.xlu0 %1220
        %v1222 = vcvt.f32.s32.to.zero.pseudo %v1221
        %vm1223 = vcmask 7168
        %1224 = vst.msk [vmem:[#allocation3] sm:$0xff] %vm1223, %v1222
        %1225 = vst.msk [vmem:[%s623] sm:$0xff] %vm1223, %v1222
        %p1226 = scmp.lt.s32.totalorder %s41, 6
        %s1227 = scalar_select %p1226, %s41, 6
        %s1228 = smul.addr %s1227, 8
        %s1229 = scalar_lea.vmem %s18, %s1228
        %p1230 = scmp.lt.s32.totalorder %s41, 6
        %s1231 = scalar_select %p1230, %s41, 6
        %s1232 = smul.addr %s1231, 8
        %s1233 = scalar_lea.vmem %s19, %s1232
        // Predicated region
        $region105: #{_forward_jit.3} parent=87 // pred_check
          %p1234 = pneg %p416
        $region106: #{_forward_jit.3} parent=87 // pred_check_branch
          %1236 = sbr.rel (%p1234) target = $region108
        $region107: #{_forward_jit.3} parent=87 // pred_region
          _
        $region108: #{_forward_jit.3} parent=87 // pred_fallthru
          _
        // Predicated region
        $region109: #{_forward_jit.3} parent=87 // pred_check
          %p1237 = pneg %p442
        $region110: #{_forward_jit.3} parent=87 // pred_check_branch
          %1239 = sbr.rel (%p1237) target = $region112
        $region111: #{_forward_jit.3} parent=87 // pred_region
          _
        $region112: #{_forward_jit.3} parent=87 // pred_fallthru
          _
      $region88: #{_forward_jit.3} parent=5 // pred_fallthru
        _
      %p1240 = scmp.le.s32.totalorder 2, %s36
      // Predicated region
      $region113: #{_forward_jit.3} parent=5 // pred_check
        %p1241 = pneg %p1240
      $region114: #{_forward_jit.3} parent=5 // pred_check_branch
        %1243 = sbr.rel (%p1241) target = $region116
      $region115: #{_forward_jit.3} parent=5 // pred_region
        %s1244 = ssub.s32 %s36, 2
        // Predicated region
        $region117: #{_forward_jit.3} parent=115 // pred_check
          %p1245 = pneg %p422
        $region118: #{_forward_jit.3} parent=115 // pred_check_branch
          %1247 = sbr.rel (%p1245) target = $region120
        $region119: #{_forward_jit.3} parent=115 // pred_region
          %p1248 = scmp.lt.s32.totalorder %s42, 6
          %s1249 = scalar_select %p1248, %s42, 6
          %s1250 = smul.addr %s1249, 8
          %s1251 = scalar_lea.vmem %s18, %s1250
        $region120: #{_forward_jit.3} parent=115 // pred_fallthru
          _
        // Predicated region
        $region121: #{_forward_jit.3} parent=115 // pred_check
          %p1252 = pneg %p448
        $region122: #{_forward_jit.3} parent=115 // pred_check_branch
          %1254 = sbr.rel (%p1252) target = $region124
        $region123: #{_forward_jit.3} parent=115 // pred_region
          %p1255 = scmp.lt.s32.totalorder %s42, 6
          %s1256 = scalar_select %p1255, %s42, 6
          %s1257 = smul.addr %s1256, 8
          %s1258 = scalar_lea.vmem %s19, %s1257
        $region124: #{_forward_jit.3} parent=115 // pred_fallthru
          _
      $region116: #{_forward_jit.3} parent=5 // pred_fallthru
        _
    $region6: #{_forward_jit.3} parent=1 // loop_footer
      %s40 = sadd.s32 1, %s36
    $region7: #{_forward_jit.3} parent=1 // loop_footer_branch
      %35 = sbr.rel target = $region3
    $region8: #{_forward_jit.3} parent=1 // loop_exit
      _
    %1259 = vsyncpa [#allocation7], 1
    %s1260 = scalar_lea.sflag [#allocation7], 1
    %1261 = vsyncpa %s1260, 1
    %1262 = vsyncpa [#allocation9], 1

</llo_original>
